<compile_context>
chip_gen: v7x
topology: tpu7x:2x2x1
jax: 0.10.0
libtpu: 0.0.40
codegen_flags: <defaults>
</compile_context>

<pallas_src>
import functools

import jax
import jax.numpy as jnp
from jax import lax
from jax.experimental import pallas as pl
from jax.experimental.pallas import tpu as pltpu


def _xattn_kernel(q_ref, k_ref, v_ref, mask_ref,
                  wq_ref, wk_ref, wv_ref, wo_ref, bo_ref,
                  o_ref, *, num_heads):
    H = num_heads
    q = q_ref[0]                      # (TN, C), native dtype (no fp32 upcast)
    k = k_ref[0]                      # (M,  C)
    v = v_ref[0]                      # (M,  C)
    cdt = q.dtype                     # MXU operand dtype (bf16 stays bf16)

    TN, C = q.shape
    M = k.shape[0]

    # Additive key-padding bias, computed once for all heads / query rows.
    # Large finite negative value (not -inf) -> no NaNs if a row is fully masked.
    bias = jnp.where(mask_ref[0] == 0, jnp.float32(-1e30), jnp.float32(0.0))  # (1, M)

    # Broadcast activations across a leading head axis so every contraction
    # below is a clean batched (head-major) dot_general: no lane slices, no
    # concatenate, no in-kernel reshape/transpose.
    qb = jnp.broadcast_to(q, (H, TN, C))
    kb = jnp.broadcast_to(k, (H, M, C))
    vb = jnp.broadcast_to(v, (H, M, C))

    # Per-head projections ('hnc,hcd->hnd'), f32 accumulation.  The softmax
    # scale is already folded into Wq host-side.  Same total MXU FLOPs as the
    # fused (N,C)@(C,C) projection since C == H*D.
    def _proj(x, w):
        return lax.dot_general(x, w, (((2,), (1,)), ((0,), (0,))),
                               preferred_element_type=jnp.float32)

    qp = _proj(qb, wq_ref[...]).astype(cdt)    # (H, TN, D)
    kp = _proj(kb, wk_ref[...]).astype(cdt)    # (H, M,  D)
    vp = _proj(vb, wv_ref[...]).astype(cdt)    # (H, M,  D)

    # logits: 'hnd,hmd->hnm'  (bf16-in / f32-accumulate on the MXU).
    logits = lax.dot_general(qp, kp, (((2,), (2,)), ((0,), (0,))),
                             preferred_element_type=jnp.float32)   # (H, TN, M)
    logits = logits + bias[None]                                   # (1,1,M) bcast

    # Numerically stable softmax with deferred normalization.
    m = jnp.max(logits, axis=-1, keepdims=True)                    # (H, TN, 1)
    p = jnp.exp(logits - m)                                        # (H, TN, M)
    s = jnp.sum(p, axis=-1, keepdims=True)                         # (H, TN, 1)

    # context: 'hnm,hmd->hnd', then scale the small (H,TN,D) result by the
    # EUP reciprocal instead of dividing the (H,TN,M) probability matrix.
    ctx = lax.dot_general(p.astype(cdt), vp, (((2,), (1,)), ((0,), (0,))),
                          preferred_element_type=jnp.float32)      # (H, TN, D)
    ctx = ctx * pl.reciprocal(s, approx=True)

    # Output projection: 'hnd,hdc->hnc', summed over heads (== concat heads
    # then (TN,C)@(C,C)), plus bias.
    yh = lax.dot_general(ctx.astype(cdt), wo_ref[...],
                         (((2,), (1,)), ((0,), (0,))),
                         preferred_element_type=jnp.float32)       # (H, TN, C)
    y = jnp.sum(yh, axis=0) + bo_ref[...].astype(jnp.float32)      # (TN, C)

    o_ref[0] = y.astype(o_ref.dtype)


def xattention(q, k, v, mask, wq, wk, wv, wo, bo, *, num_heads, tile_n=128):
    """q: (B, N, C), k/v: (B, M, C), mask: (B, M) int (0 == masked out).

    Weights are (C_in, C_out) so y = x @ W (+ b), i.e. PyTorch weights
    pre-transposed.
    """
    B, N, C = q.shape
    M = k.shape[1]
    H = num_heads
    D = C // H
    scale = D ** (-0.5)

    # Host-side, one-time prep:
    #  * fold the softmax scale into Wq,
    #  * split each (C, C) weight into per-head slabs so the kernel only does
    #    batched head-major matmuls (no lane slicing / reshaping in-kernel).
    wq_h = (wq * scale).reshape(C, H, D).transpose(1, 0, 2)   # (H, C, D)
    wk_h = wk.reshape(C, H, D).transpose(1, 0, 2)             # (H, C, D)
    wv_h = wv.reshape(C, H, D).transpose(1, 0, 2)             # (H, C, D)
    wo_h = wo.reshape(H, D, C)                                # (H, D, C)
    mask3 = mask.reshape(B, 1, M).astype(jnp.int32)
    bo2 = bo.reshape(1, C)

    tn = N if N <= tile_n else tile_n
    grid = (B, pl.cdiv(N, tn))

    kernel = functools.partial(_xattn_kernel, num_heads=H)

    return pl.pallas_call(
        kernel,
        out_shape=jax.ShapeDtypeStruct((B, N, C), q.dtype),
        grid_spec=pltpu.PrefetchScalarGridSpec(
            num_scalar_prefetch=0,
            grid=grid,
            in_specs=[
                pl.BlockSpec((1, tn, C), lambda b, n: (b, n, 0)),   # q tile
                pl.BlockSpec((1, M, C), lambda b, n: (b, 0, 0)),    # k
                pl.BlockSpec((1, M, C), lambda b, n: (b, 0, 0)),    # v
                pl.BlockSpec((1, 1, M), lambda b, n: (b, 0, 0)),    # mask
                pl.BlockSpec((H, C, D), lambda b, n: (0, 0, 0)),    # Wq (scaled)
                pl.BlockSpec((H, C, D), lambda b, n: (0, 0, 0)),    # Wk
                pl.BlockSpec((H, C, D), lambda b, n: (0, 0, 0)),    # Wv
                pl.BlockSpec((H, D, C), lambda b, n: (0, 0, 0)),    # W_proj
                pl.BlockSpec((1, C), lambda b, n: (0, 0)),          # b_proj
            ],
            out_specs=pl.BlockSpec((1, tn, C), lambda b, n: (b, n, 0)),
        ),
        compiler_params=pltpu.CompilerParams(
            dimension_semantics=("parallel", "parallel")),
    )(q, k, v, mask3, wq_h, wk_h, wv_h, wo_h, bo2)


def xattention_ref(q, k, v, mask, wq, wk, wv, wo, bo, *, num_heads):
    """Pure-JAX reference matching the PyTorch forward (computed in f32)."""
    f32 = lambda a: a.astype(jnp.float32)
    q, k, v, wq, wk, wv, wo, bo = map(f32, (q, k, v, wq, wk, wv, wo, bo))
    B, N, C = q.shape
    M = k.shape[1]
    D = C // num_heads
    scale = D ** (-0.5)
    qp = (q @ wq).reshape(B, N, num_heads, D).transpose(0, 2, 1, 3)
    kp = (k @ wk).reshape(B, M, num_heads, D).transpose(0, 2, 1, 3)
    vp = (v @ wv).reshape(B, M, num_heads, D).transpose(0, 2, 1, 3)
    attn = jnp.einsum("bhnd,bhmd->bhnm", qp, kp) * scale
    attn = jnp.where(mask[:, None, None, :] == 0, -jnp.inf, attn)
    attn = jax.nn.softmax(attn, axis=-1)
    x = jnp.einsum("bhnm,bhmd->bhnd", attn, vp).transpose(0, 2, 1, 3).reshape(B, N, C)
    return x @ wo + bo[None, None, :]


if __name__ == "__main__":
    B, N, M, C, H = 2, 8, 16, 32, 8   # num_heads=8, head_dim=4

    key = jax.random.PRNGKey(0)
    ks = jax.random.split(key, 8)

    q = jax.random.normal(ks[0], (B, N, C), dtype=jnp.float32)
    k = jax.random.normal(ks[1], (B, M, C), dtype=jnp.float32)
    v = jax.random.normal(ks[2], (B, M, C), dtype=jnp.float32)

    # key padding mask: 0 == masked out; guarantee at least one valid key.
    mask = (jax.random.uniform(ks[3], (B, M)) > 0.3).astype(jnp.int32)
    mask = mask.at[:, 0].set(1)

    # Deterministic "parameters". PyTorch Linear stores (out,in) and computes
    # x @ W.T; here we directly sample the (in,out)-transposed matrices.
    wscale = 1.0 / jnp.sqrt(jnp.float32(C))
    wq = jax.random.normal(ks[4], (C, C), dtype=jnp.float32) * wscale
    wk = jax.random.normal(ks[5], (C, C), dtype=jnp.float32) * wscale
    wv = jax.random.normal(ks[6], (C, C), dtype=jnp.float32) * wscale
    wo = jax.random.normal(ks[7], (C, C), dtype=jnp.float32) * wscale
    bo = jnp.linspace(-0.1, 0.1, C, dtype=jnp.float32)

    # --- float32 path ---------------------------------------------------
    out = xattention(q, k, v, mask, wq, wk, wv, wo, bo, num_heads=H)
    out = jax.block_until_ready(out)
    ref = xattention_ref(q, k, v, mask, wq, wk, wv, wo, bo, num_heads=H)
    assert out.shape == (B, N, C)
    err = float(jnp.max(jnp.abs(out - ref)))
    # Tolerance accounts for the approx (EUP) reciprocal in the deferred
    # softmax normalization.
    assert err < 1e-2, f"f32 mismatch vs reference: {err}"

    # --- bfloat16 path (native MXU bf16-in / f32-accumulate) -------------
    bf = lambda a: a.astype(jnp.bfloat16)
    q16, k16, v16 = bf(q), bf(k), bf(v)
    wq16, wk16, wv16, wo16, bo16 = bf(wq), bf(wk), bf(wv), bf(wo), bf(bo)
    out16 = xattention(q16, k16, v16, mask, wq16, wk16, wv16, wo16, bo16,
                       num_heads=H)
    out16 = jax.block_until_ready(out16)
    ref16 = xattention_ref(q16, k16, v16, mask, wq16, wk16, wv16, wo16, bo16,
                           num_heads=H)
    err16 = float(jnp.max(jnp.abs(out16.astype(jnp.float32) - ref16)))
    assert out16.dtype == jnp.bfloat16
    assert err16 < 2.5e-1, f"bf16 mismatch vs reference: {err16}"

    print("KERNEL_OK")
</pallas_src>

<mosaic_0001>
module attributes {stable_mosaic.version = 11 : i64} {
  func.func @_xattn_kernel(%arg0: i32, %arg1: i32, %arg2: memref<1x8x32xf32, #tpu.memory_space<vmem>>, %arg3: memref<1x16x32xf32, #tpu.memory_space<vmem>>, %arg4: memref<1x16x32xf32, #tpu.memory_space<vmem>>, %arg5: memref<1x1x16xi32, #tpu.memory_space<vmem>>, %arg6: memref<8x32x4xf32, #tpu.memory_space<vmem>>, %arg7: memref<8x32x4xf32, #tpu.memory_space<vmem>>, %arg8: memref<8x32x4xf32, #tpu.memory_space<vmem>>, %arg9: memref<8x4x32xf32, #tpu.memory_space<vmem>>, %arg10: memref<1x32xf32, #tpu.memory_space<vmem>>, %arg11: memref<1x8x32xf32, #tpu.memory_space<vmem>>) attributes {dimension_semantics = [#tpu.dimension_semantics<parallel>, #tpu.dimension_semantics<parallel>], iteration_bounds = array<i64: 2, 1>, scalar_prefetch = 0 : i64, scratch_operands = 0 : i64, tpu.core_type = #tpu.core_type<tc>, window_params = [{transform_indices = @transform_0, window_bounds = array<i64: 1, 8, 32>}, {transform_indices = @transform_1, window_bounds = array<i64: 1, 16, 32>}, {transform_indices = @transform_2, window_bounds = array<i64: 1, 16, 32>}, {transform_indices = @transform_3, window_bounds = array<i64: 1, 1, 16>}, {pipeline_mode = #tpu.pipeline_mode<synchronous>, transform_indices = @transform_4, window_bounds = array<i64: 8, 32, 4>}, {pipeline_mode = #tpu.pipeline_mode<synchronous>, transform_indices = @transform_5, window_bounds = array<i64: 8, 32, 4>}, {pipeline_mode = #tpu.pipeline_mode<synchronous>, transform_indices = @transform_6, window_bounds = array<i64: 8, 32, 4>}, {pipeline_mode = #tpu.pipeline_mode<synchronous>, transform_indices = @transform_7, window_bounds = array<i64: 8, 4, 32>}, {pipeline_mode = #tpu.pipeline_mode<synchronous>, transform_indices = @transform_8, window_bounds = array<i64: 1, 32>}, {transform_indices = @transform_9, window_bounds = array<i64: 1, 8, 32>}]} {
    %c0 = arith.constant 0 : index
    %c0_0 = arith.constant 0 : index
    %c0_1 = arith.constant 0 : index
    %0 = vector.load %arg2[%c0, %c0_0, %c0_1] : memref<1x8x32xf32, #tpu.memory_space<vmem>>, vector<1x8x32xf32>
    %1 = vector.shape_cast %0 : vector<1x8x32xf32> to vector<8x32xf32>
    %c0_2 = arith.constant 0 : index
    %c0_3 = arith.constant 0 : index
    %c0_4 = arith.constant 0 : index
    %2 = vector.load %arg3[%c0_2, %c0_3, %c0_4] : memref<1x16x32xf32, #tpu.memory_space<vmem>>, vector<1x16x32xf32>
    %3 = vector.shape_cast %2 : vector<1x16x32xf32> to vector<16x32xf32>
    %c0_5 = arith.constant 0 : index
    %c0_6 = arith.constant 0 : index
    %c0_7 = arith.constant 0 : index
    %4 = vector.load %arg4[%c0_5, %c0_6, %c0_7] : memref<1x16x32xf32, #tpu.memory_space<vmem>>, vector<1x16x32xf32>
    %5 = vector.shape_cast %4 : vector<1x16x32xf32> to vector<16x32xf32>
    %c0_8 = arith.constant 0 : index
    %c0_9 = arith.constant 0 : index
    %c0_10 = arith.constant 0 : index
    %6 = vector.load %arg5[%c0_8, %c0_9, %c0_10] : memref<1x1x16xi32, #tpu.memory_space<vmem>>, vector<1x1x16xi32>
    %7 = vector.shape_cast %6 : vector<1x1x16xi32> to vector<1x16xi32>
    %c0_i32 = arith.constant 0 : i32
    %8 = vector.broadcast %c0_i32 : i32 to vector<1x16xi32>
    %9 = arith.cmpi eq, %7, %8 : vector<1x16xi32>
    %cst = arith.constant -1.000000e+30 : f32
    %cst_11 = arith.constant 0.000000e+00 : f32
    %10 = vector.broadcast %cst : f32 to vector<1x16xf32>
    %11 = vector.broadcast %cst_11 : f32 to vector<1x16xf32>
    %12 = arith.select %9, %10, %11 : vector<1x16xi1>, vector<1x16xf32>
    %13 = vector.shape_cast %1 : vector<8x32xf32> to vector<1x8x32xf32>
    %14 = vector.broadcast %13 : vector<1x8x32xf32> to vector<8x8x32xf32>
    %15 = vector.shape_cast %3 : vector<16x32xf32> to vector<1x16x32xf32>
    %16 = vector.broadcast %15 : vector<1x16x32xf32> to vector<8x16x32xf32>
    %17 = vector.shape_cast %5 : vector<16x32xf32> to vector<1x16x32xf32>
    %18 = vector.broadcast %17 : vector<1x16x32xf32> to vector<8x16x32xf32>
    %c0_12 = arith.constant 0 : index
    %c0_13 = arith.constant 0 : index
    %c0_14 = arith.constant 0 : index
    %19 = vector.load %arg6[%c0_12, %c0_13, %c0_14] : memref<8x32x4xf32, #tpu.memory_space<vmem>>, vector<8x32x4xf32>
    %cst_15 = arith.constant dense<0.000000e+00> : vector<8x8x4xf32>
    %20 = tpu.matmul %14, %19, %cst_15 {dimension_numbers = #tpu.dot_dimension_numbers<[2], [1], [1], [2], [0, 0, 0, 1, 1, 2], [0], [0]>} : vector<8x8x32xf32>, vector<8x32x4xf32>, vector<8x8x4xf32> -> vector<8x8x4xf32>
    %c0_16 = arith.constant 0 : index
    %c0_17 = arith.constant 0 : index
    %c0_18 = arith.constant 0 : index
    %21 = vector.load %arg7[%c0_16, %c0_17, %c0_18] : memref<8x32x4xf32, #tpu.memory_space<vmem>>, vector<8x32x4xf32>
    %cst_19 = arith.constant dense<0.000000e+00> : vector<8x16x4xf32>
    %22 = tpu.matmul %16, %21, %cst_19 {dimension_numbers = #tpu.dot_dimension_numbers<[2], [1], [1], [2], [0, 0, 0, 1, 1, 2], [0], [0]>} : vector<8x16x32xf32>, vector<8x32x4xf32>, vector<8x16x4xf32> -> vector<8x16x4xf32>
    %c0_20 = arith.constant 0 : index
    %c0_21 = arith.constant 0 : index
    %c0_22 = arith.constant 0 : index
    %23 = vector.load %arg8[%c0_20, %c0_21, %c0_22] : memref<8x32x4xf32, #tpu.memory_space<vmem>>, vector<8x32x4xf32>
    %cst_23 = arith.constant dense<0.000000e+00> : vector<8x16x4xf32>
    %24 = tpu.matmul %18, %23, %cst_23 {dimension_numbers = #tpu.dot_dimension_numbers<[2], [1], [1], [2], [0, 0, 0, 1, 1, 2], [0], [0]>} : vector<8x16x32xf32>, vector<8x32x4xf32>, vector<8x16x4xf32> -> vector<8x16x4xf32>
    %cst_24 = arith.constant dense<0.000000e+00> : vector<8x8x16xf32>
    %25 = tpu.matmul %20, %22, %cst_24 {dimension_numbers = #tpu.dot_dimension_numbers<[2], [2], [1], [1], [0, 0, 0, 1, 1, 1], [0], [0]>} : vector<8x8x4xf32>, vector<8x16x4xf32>, vector<8x8x16xf32> -> vector<8x8x16xf32>
    %26 = vector.shape_cast %12 : vector<1x16xf32> to vector<1x1x16xf32>
    %27 = vector.broadcast %26 : vector<1x1x16xf32> to vector<8x8x16xf32>
    %28 = arith.addf %25, %27 : vector<8x8x16xf32>
    %cst_25 = arith.constant dense<0xFF800000> : vector<8x8xf32>
    %29 = vector.multi_reduction <maximumf>, %28, %cst_25 [2] : vector<8x8x16xf32> to vector<8x8xf32>
    %30 = vector.shape_cast %29 : vector<8x8xf32> to vector<8x8x1xf32>
    %31 = vector.broadcast %30 : vector<8x8x1xf32> to vector<8x8x16xf32>
    %32 = arith.subf %28, %31 : vector<8x8x16xf32>
    %33 = math.exp %32 : vector<8x8x16xf32>
    %cst_26 = arith.constant dense<0.000000e+00> : vector<8x8xf32>
    %34 = vector.multi_reduction <add>, %33, %cst_26 [2] : vector<8x8x16xf32> to vector<8x8xf32>
    %35 = vector.shape_cast %34 : vector<8x8xf32> to vector<8x8x1xf32>
    %cst_27 = arith.constant dense<0.000000e+00> : vector<8x8x4xf32>
    %36 = tpu.matmul %33, %24, %cst_27 {dimension_numbers = #tpu.dot_dimension_numbers<[2], [1], [1], [2], [0, 0, 0, 1, 1, 2], [0], [0]>} : vector<8x8x16xf32>, vector<8x16x4xf32>, vector<8x8x4xf32> -> vector<8x8x4xf32>
    %37 = tpu.reciprocal %35 {approx = true} : vector<8x8x1xf32> -> vector<8x8x1xf32>
    %38 = vector.broadcast %37 : vector<8x8x1xf32> to vector<8x8x4xf32>
    %39 = arith.mulf %36, %38 : vector<8x8x4xf32>
    %c0_28 = arith.constant 0 : index
    %c0_29 = arith.constant 0 : index
    %c0_30 = arith.constant 0 : index
    %40 = vector.load %arg9[%c0_28, %c0_29, %c0_30] : memref<8x4x32xf32, #tpu.memory_space<vmem>>, vector<8x4x32xf32>
    %cst_31 = arith.constant dense<0.000000e+00> : vector<8x8x32xf32>
    %41 = tpu.matmul %39, %40, %cst_31 {dimension_numbers = #tpu.dot_dimension_numbers<[2], [1], [1], [2], [0, 0, 0, 1, 1, 2], [0], [0]>} : vector<8x8x4xf32>, vector<8x4x32xf32>, vector<8x8x32xf32> -> vector<8x8x32xf32>
    %cst_32 = arith.constant dense<0.000000e+00> : vector<8x32xf32>
    %42 = vector.multi_reduction <add>, %41, %cst_32 [0] : vector<8x8x32xf32> to vector<8x32xf32>
    %c0_33 = arith.constant 0 : index
    %c0_34 = arith.constant 0 : index
    %43 = vector.load %arg10[%c0_33, %c0_34] : memref<1x32xf32, #tpu.memory_space<vmem>>, vector<1x32xf32>
    %44 = vector.broadcast %43 : vector<1x32xf32> to vector<8x32xf32>
    %45 = arith.addf %42, %44 : vector<8x32xf32>
    %c0_35 = arith.constant 0 : index
    %c0_36 = arith.constant 0 : index
    %c0_37 = arith.constant 0 : index
    %46 = vector.load %arg11[%c0_35, %c0_36, %c0_37] : memref<1x8x32xf32, #tpu.memory_space<vmem>>, vector<1x8x32xf32>
    %47 = vector.shape_cast %46 : vector<1x8x32xf32> to vector<8x32xf32>
    %48 = vector.shape_cast %45 : vector<8x32xf32> to vector<1x8x32xf32>
    tpu.vector_store %arg11[%c0_35, %c0_36, %c0_37], %48 {strides = array<i32>} : memref<1x8x32xf32, #tpu.memory_space<vmem>>, vector<1x8x32xf32>,
    return
  }
  func.func @transform_0(%arg0: i32, %arg1: i32) -> (i32, i32, i32) {
    %c0_i32 = arith.constant 0 : i32
    %c0_i32_0 = arith.constant 0 : i32
    return %arg0, %arg1, %c0_i32 : i32, i32, i32
  }
  func.func @transform_1(%arg0: i32, %arg1: i32) -> (i32, i32, i32) {
    %c0_i32 = arith.constant 0 : i32
    %c0_i32_0 = arith.constant 0 : i32
    %c0_i32_1 = arith.constant 0 : i32
    return %arg0, %c0_i32, %c0_i32_0 : i32, i32, i32
  }
  func.func @transform_2(%arg0: i32, %arg1: i32) -> (i32, i32, i32) {
    %c0_i32 = arith.constant 0 : i32
    %c0_i32_0 = arith.constant 0 : i32
    %c0_i32_1 = arith.constant 0 : i32
    return %arg0, %c0_i32, %c0_i32_0 : i32, i32, i32
  }
  func.func @transform_3(%arg0: i32, %arg1: i32) -> (i32, i32, i32) {
    %c0_i32 = arith.constant 0 : i32
    %c0_i32_0 = arith.constant 0 : i32
    %c0_i32_1 = arith.constant 0 : i32
    return %arg0, %c0_i32, %c0_i32_0 : i32, i32, i32
  }
  func.func @transform_4(%arg0: i32, %arg1: i32) -> (i32, i32, i32) {
    %c0_i32 = arith.constant 0 : i32
    %c0_i32_0 = arith.constant 0 : i32
    %c0_i32_1 = arith.constant 0 : i32
    %c0_i32_2 = arith.constant 0 : i32
    return %c0_i32, %c0_i32_0, %c0_i32_1 : i32, i32, i32
  }
  func.func @transform_5(%arg0: i32, %arg1: i32) -> (i32, i32, i32) {
    %c0_i32 = arith.constant 0 : i32
    %c0_i32_0 = arith.constant 0 : i32
    %c0_i32_1 = arith.constant 0 : i32
    %c0_i32_2 = arith.constant 0 : i32
    return %c0_i32, %c0_i32_0, %c0_i32_1 : i32, i32, i32
  }
  func.func @transform_6(%arg0: i32, %arg1: i32) -> (i32, i32, i32) {
    %c0_i32 = arith.constant 0 : i32
    %c0_i32_0 = arith.constant 0 : i32
    %c0_i32_1 = arith.constant 0 : i32
    %c0_i32_2 = arith.constant 0 : i32
    return %c0_i32, %c0_i32_0, %c0_i32_1 : i32, i32, i32
  }
  func.func @transform_7(%arg0: i32, %arg1: i32) -> (i32, i32, i32) {
    %c0_i32 = arith.constant 0 : i32
    %c0_i32_0 = arith.constant 0 : i32
    %c0_i32_1 = arith.constant 0 : i32
    %c0_i32_2 = arith.constant 0 : i32
    return %c0_i32, %c0_i32_0, %c0_i32_1 : i32, i32, i32
  }
  func.func @transform_8(%arg0: i32, %arg1: i32) -> (i32, i32) {
    %c0_i32 = arith.constant 0 : i32
    %c0_i32_0 = arith.constant 0 : i32
    %c0_i32_1 = arith.constant 0 : i32
    return %c0_i32, %c0_i32_0 : i32, i32
  }
  func.func @transform_9(%arg0: i32, %arg1: i32) -> (i32, i32, i32) {
    %c0_i32 = arith.constant 0 : i32
    %c0_i32_0 = arith.constant 0 : i32
    return %arg0, %arg1, %c0_i32 : i32, i32, i32
  }
}

</mosaic_0001>

<llo_original>
// kernel: tpu_custom_call.1
$region0: #{tpu_custom_call.1}
  #allocation0 [shape = 'u32[]', space=smem, size = 0x4, offset = 0x4, fixed_abs, tag = 'smem constant byte address 0x4 - core index']
  #allocation1 [shape = 'u32[144,128]{1,0:T(1,128)}', space=vmem, size = 0x12000, scoped, tag = 'internal scratch']
  %s0 = inlined_call_operand.vmem [shape: f32[2,8,32], index: 0, kind: input, shape index: {}]
  %s1 = inlined_call_operand.vmem [shape: f32[2,16,32], index: 1, kind: input, shape index: {}]
  %s2 = inlined_call_operand.vmem [shape: f32[2,16,32], index: 2, kind: input, shape index: {}]
  %s3 = inlined_call_operand.vmem [shape: s32[2,1,16], index: 3, kind: input, shape index: {}]
  %s4 = inlined_call_operand.vmem [shape: f32[8,32,4], index: 4, kind: input, shape index: {}]
  %s5 = inlined_call_operand.vmem [shape: f32[8,32,4], index: 5, kind: input, shape index: {}]
  %s6 = inlined_call_operand.vmem [shape: f32[8,32,4], index: 6, kind: input, shape index: {}]
  %s7 = inlined_call_operand.vmem [shape: f32[8,4,32], index: 7, kind: input, shape index: {}]
  %s8 = inlined_call_operand.vmem [shape: f32[1,32], index: 8, kind: input, shape index: {}]
  %s9 = inlined_call_operand.hbm [shape: f32[2,8,32], index: 9, kind: output, shape index: {}]
  %s10 = sld [smem:[#allocation0]]
  $region69: #{tpu_custom_call.1} parent=0
    _
  %s12 = ssub.s32 1, %s10
  %s13 = scalar_select 0, %s12, %s10
  $region1: #{tpu_custom_call.1} parent=0
    #allocation2 [shape = 'u8[8192]{0}', space=vmem, size = 0x2000, scoped, tag = 'output window, operand 0']
    #allocation3 [shape = 's32[2]{0}', space=sflag, size = 0x8, scoped, tag = 'scoped memory for tpu_custom_call.1']
    %14 = vsyncpa [#allocation3], 0
    %s15 = scalar_lea.sflag [#allocation3], 1
    %16 = vsyncpa %s15, 0
    loop: start=0, step=1, limit=4
    $region2: #{tpu_custom_call.1} parent=1 // loop_pre_header
      _
    $region3: #{tpu_custom_call.1} parent=1 // loop_header
      %s18 = sphi 0, %s22
      %p19 = scmp.ge.s32.totalorder %s18, 4
      %s25 = sphi 0, %s37
      %s26 = sphi 0, %s33
      %s27 = sphi 0, %s25
      %s28 = sphi 0, %s26
      %s29 = sphi 0, %s27
      %s30 = sphi 0, %s28
      %s42 = sphi 0, %s44
      %s45 = sphi 0, %s42
      %s46 = sphi 0, %s45
      %s62 = sphi 0, %s46
      %s68 = sphi 0, %s70
      %s71 = sphi 0, %s68
      %s72 = sphi 0, %s71
      %s88 = sphi 0, %s72
      %s94 = sphi 0, %s96
      %s97 = sphi 0, %s94
      %s98 = sphi 0, %s97
      %s114 = sphi 0, %s98
      %s120 = sphi 0, %s122
      %s123 = sphi 0, %s120
      %s124 = sphi 0, %s123
      %s140 = sphi 0, %s124
      %s144 = sphi 0, %s144
      %s146 = sphi 0, %s144
      %s147 = sphi 0, %s146
      %s161 = sphi 0, %s147
      %s165 = sphi 0, %s165
      %s167 = sphi 0, %s165
      %s168 = sphi 0, %s167
      %s182 = sphi 0, %s168
      %s186 = sphi 0, %s186
      %s188 = sphi 0, %s186
      %s189 = sphi 0, %s188
      %s203 = sphi 0, %s189
      %s207 = sphi 0, %s207
      %s209 = sphi 0, %s207
      %s210 = sphi 0, %s209
      %s224 = sphi 0, %s210
      %s228 = sphi 0, %s228
      %s230 = sphi 0, %s228
      %s231 = sphi 0, %s230
      %s245 = sphi 0, %s231
      %s253 = sphi 0, %s255
      %s256 = sphi 0, %s253
      %s257 = sphi 0, %s256
      %s273 = sphi 0, %s257
    $region4: #{tpu_custom_call.1} parent=1 // loop_header_branch
      %21 = sbr.rel (%p19) target = $region8
    $region5: #{tpu_custom_call.1} parent=1 // loop_body
      %s23 = ssub.s32 %s18, 1
      %s24 = ssub.s32 %s18, 2
      %s31 = sadd.s32 1, %s26
      %p32 = scmp.ge.s32.totalorder %s31, 1
      %s33 = scalar_select %p32, 0, %s31
      %s34 = sadd.s32 1, %s25
      %s35 = scalar_select %p32, %s34, %s25
      %p36 = scmp.ge.s32.totalorder %s35, 2
      %s37 = scalar_select %p36, 0, %s35
      %s38 = ssub.s32 %s25, %s37
      %s39 = ssub.s32 %s26, %s33
      %s40 = sor.u32 %s38, %s39
      %p41 = scmp.eq.s32.totalorder %s40, 0
      %s43 = sadd.s32 %s42, 1
      %s44 = scalar_select %p41, %s42, %s43
      %p47 = pneg %p41
      %p48 = scmp.eq.s32.totalorder %s18, 1
      %p49 = por %p47, %p48
      %p50 = scmp.ne.s32.totalorder %s42, %s45
      %p51 = scmp.eq.s32.totalorder %s18, 0
      %p52 = por %p50, %p51
      %p53 = scmp.ne.s32.totalorder %s42, %s45
      %p54 = scmp.eq.s32.totalorder %s23, 1
      %p55 = por %p53, %p54
      %p56 = scmp.ne.s32.totalorder %s45, %s46
      %p57 = scmp.eq.s32.totalorder %s23, 0
      %p58 = por %p56, %p57
      %p59 = scmp.ne.s32.totalorder %s45, %s46
      %p60 = scmp.eq.s32.totalorder %s24, 1
      %p61 = por %p59, %p60
      %p63 = scmp.ne.s32.totalorder %s46, %s62
      %p64 = scmp.eq.s32.totalorder %s24, 0
      %p65 = por %p63, %p64
      %s66 = ssub.s32 %s25, %s37
      %p67 = scmp.eq.s32.totalorder %s66, 0
      %s69 = sadd.s32 %s68, 1
      %s70 = scalar_select %p67, %s68, %s69
      %p73 = pneg %p67
      %p74 = scmp.eq.s32.totalorder %s18, 1
      %p75 = por %p73, %p74
      %p76 = scmp.ne.s32.totalorder %s68, %s71
      %p77 = scmp.eq.s32.totalorder %s18, 0
      %p78 = por %p76, %p77
      %p79 = scmp.ne.s32.totalorder %s68, %s71
      %p80 = scmp.eq.s32.totalorder %s23, 1
      %p81 = por %p79, %p80
      %p82 = scmp.ne.s32.totalorder %s71, %s72
      %p83 = scmp.eq.s32.totalorder %s23, 0
      %p84 = por %p82, %p83
      %p85 = scmp.ne.s32.totalorder %s71, %s72
      %p86 = scmp.eq.s32.totalorder %s24, 1
      %p87 = por %p85, %p86
      %p89 = scmp.ne.s32.totalorder %s72, %s88
      %p90 = scmp.eq.s32.totalorder %s24, 0
      %p91 = por %p89, %p90
      %s92 = ssub.s32 %s25, %s37
      %p93 = scmp.eq.s32.totalorder %s92, 0
      %s95 = sadd.s32 %s94, 1
      %s96 = scalar_select %p93, %s94, %s95
      %p99 = pneg %p93
      %p100 = scmp.eq.s32.totalorder %s18, 1
      %p101 = por %p99, %p100
      %p102 = scmp.ne.s32.totalorder %s94, %s97
      %p103 = scmp.eq.s32.totalorder %s18, 0
      %p104 = por %p102, %p103
      %p105 = scmp.ne.s32.totalorder %s94, %s97
      %p106 = scmp.eq.s32.totalorder %s23, 1
      %p107 = por %p105, %p106
      %p108 = scmp.ne.s32.totalorder %s97, %s98
      %p109 = scmp.eq.s32.totalorder %s23, 0
      %p110 = por %p108, %p109
      %p111 = scmp.ne.s32.totalorder %s97, %s98
      %p112 = scmp.eq.s32.totalorder %s24, 1
      %p113 = por %p111, %p112
      %p115 = scmp.ne.s32.totalorder %s98, %s114
      %p116 = scmp.eq.s32.totalorder %s24, 0
      %p117 = por %p115, %p116
      %s118 = ssub.s32 %s25, %s37
      %p119 = scmp.eq.s32.totalorder %s118, 0
      %s121 = sadd.s32 %s120, 1
      %s122 = scalar_select %p119, %s120, %s121
      %p125 = pneg %p119
      %p126 = scmp.eq.s32.totalorder %s18, 1
      %p127 = por %p125, %p126
      %p128 = scmp.ne.s32.totalorder %s120, %s123
      %p129 = scmp.eq.s32.totalorder %s18, 0
      %p130 = por %p128, %p129
      %p131 = scmp.ne.s32.totalorder %s120, %s123
      %p132 = scmp.eq.s32.totalorder %s23, 1
      %p133 = por %p131, %p132
      %p134 = scmp.ne.s32.totalorder %s123, %s124
      %p135 = scmp.eq.s32.totalorder %s23, 0
      %p136 = por %p134, %p135
      %p137 = scmp.ne.s32.totalorder %s123, %s124
      %p138 = scmp.eq.s32.totalorder %s24, 1
      %p139 = por %p137, %p138
      %p141 = scmp.ne.s32.totalorder %s124, %s140
      %p142 = scmp.eq.s32.totalorder %s24, 0
      %p143 = por %p141, %p142
      %s145 = sadd.s32 %s144, 1
      %p148 = scmp.eq.s32.totalorder %s18, 1
      %p149 = scmp.ne.s32.totalorder %s144, %s146
      %p150 = scmp.eq.s32.totalorder %s18, 0
      %p151 = por %p149, %p150
      %p152 = scmp.ne.s32.totalorder %s144, %s146
      %p153 = scmp.eq.s32.totalorder %s23, 1
      %p154 = por %p152, %p153
      %p155 = scmp.ne.s32.totalorder %s146, %s147
      %p156 = scmp.eq.s32.totalorder %s23, 0
      %p157 = por %p155, %p156
      %p158 = scmp.ne.s32.totalorder %s146, %s147
      %p159 = scmp.eq.s32.totalorder %s24, 1
      %p160 = por %p158, %p159
      %p162 = scmp.ne.s32.totalorder %s147, %s161
      %p163 = scmp.eq.s32.totalorder %s24, 0
      %p164 = por %p162, %p163
      %s166 = sadd.s32 %s165, 1
      %p169 = scmp.eq.s32.totalorder %s18, 1
      %p170 = scmp.ne.s32.totalorder %s165, %s167
      %p171 = scmp.eq.s32.totalorder %s18, 0
      %p172 = por %p170, %p171
      %p173 = scmp.ne.s32.totalorder %s165, %s167
      %p174 = scmp.eq.s32.totalorder %s23, 1
      %p175 = por %p173, %p174
      %p176 = scmp.ne.s32.totalorder %s167, %s168
      %p177 = scmp.eq.s32.totalorder %s23, 0
      %p178 = por %p176, %p177
      %p179 = scmp.ne.s32.totalorder %s167, %s168
      %p180 = scmp.eq.s32.totalorder %s24, 1
      %p181 = por %p179, %p180
      %p183 = scmp.ne.s32.totalorder %s168, %s182
      %p184 = scmp.eq.s32.totalorder %s24, 0
      %p185 = por %p183, %p184
      %s187 = sadd.s32 %s186, 1
      %p190 = scmp.eq.s32.totalorder %s18, 1
      %p191 = scmp.ne.s32.totalorder %s186, %s188
      %p192 = scmp.eq.s32.totalorder %s18, 0
      %p193 = por %p191, %p192
      %p194 = scmp.ne.s32.totalorder %s186, %s188
      %p195 = scmp.eq.s32.totalorder %s23, 1
      %p196 = por %p194, %p195
      %p197 = scmp.ne.s32.totalorder %s188, %s189
      %p198 = scmp.eq.s32.totalorder %s23, 0
      %p199 = por %p197, %p198
      %p200 = scmp.ne.s32.totalorder %s188, %s189
      %p201 = scmp.eq.s32.totalorder %s24, 1
      %p202 = por %p200, %p201
      %p204 = scmp.ne.s32.totalorder %s189, %s203
      %p205 = scmp.eq.s32.totalorder %s24, 0
      %p206 = por %p204, %p205
      %s208 = sadd.s32 %s207, 1
      %p211 = scmp.eq.s32.totalorder %s18, 1
      %p212 = scmp.ne.s32.totalorder %s207, %s209
      %p213 = scmp.eq.s32.totalorder %s18, 0
      %p214 = por %p212, %p213
      %p215 = scmp.ne.s32.totalorder %s207, %s209
      %p216 = scmp.eq.s32.totalorder %s23, 1
      %p217 = por %p215, %p216
      %p218 = scmp.ne.s32.totalorder %s209, %s210
      %p219 = scmp.eq.s32.totalorder %s23, 0
      %p220 = por %p218, %p219
      %p221 = scmp.ne.s32.totalorder %s209, %s210
      %p222 = scmp.eq.s32.totalorder %s24, 1
      %p223 = por %p221, %p222
      %p225 = scmp.ne.s32.totalorder %s210, %s224
      %p226 = scmp.eq.s32.totalorder %s24, 0
      %p227 = por %p225, %p226
      %s229 = sadd.s32 %s228, 1
      %p232 = scmp.eq.s32.totalorder %s18, 1
      %p233 = scmp.ne.s32.totalorder %s228, %s230
      %p234 = scmp.eq.s32.totalorder %s18, 0
      %p235 = por %p233, %p234
      %p236 = scmp.ne.s32.totalorder %s228, %s230
      %p237 = scmp.eq.s32.totalorder %s23, 1
      %p238 = por %p236, %p237
      %p239 = scmp.ne.s32.totalorder %s230, %s231
      %p240 = scmp.eq.s32.totalorder %s23, 0
      %p241 = por %p239, %p240
      %p242 = scmp.ne.s32.totalorder %s230, %s231
      %p243 = scmp.eq.s32.totalorder %s24, 1
      %p244 = por %p242, %p243
      %p246 = scmp.ne.s32.totalorder %s231, %s245
      %p247 = scmp.eq.s32.totalorder %s24, 0
      %p248 = por %p246, %p247
      %s249 = ssub.s32 %s25, %s37
      %s250 = ssub.s32 %s26, %s33
      %s251 = sor.u32 %s249, %s250
      %p252 = scmp.eq.s32.totalorder %s251, 0
      %s254 = sadd.s32 %s253, 1
      %s255 = scalar_select %p252, %s253, %s254
      %p258 = pneg %p252
      %p259 = scmp.eq.s32.totalorder %s18, 1
      %p260 = por %p258, %p259
      %p261 = scmp.ne.s32.totalorder %s253, %s256
      %p262 = scmp.eq.s32.totalorder %s18, 0
      %p263 = por %p261, %p262
      %p264 = scmp.ne.s32.totalorder %s253, %s256
      %p265 = scmp.eq.s32.totalorder %s23, 1
      %p266 = por %p264, %p265
      %p267 = scmp.ne.s32.totalorder %s256, %s257
      %p268 = scmp.eq.s32.totalorder %s23, 0
      %p269 = por %p267, %p268
      %p270 = scmp.ne.s32.totalorder %s256, %s257
      %p271 = scmp.eq.s32.totalorder %s24, 1
      %p272 = por %p270, %p271
      %p274 = scmp.ne.s32.totalorder %s257, %s273
      %p275 = scmp.eq.s32.totalorder %s24, 0
      %p276 = por %p274, %p275
      %p277 = scmp.le.s32.totalorder 1, %s18
      %p278 = scmp.lt.s32.totalorder %s18, 3
      %p279 = pnand %p277, %p278
      %p280 = pneg %p279
      // Predicated region
      $region9: #{tpu_custom_call.1} parent=5 // pred_check
        _
      $region10: #{tpu_custom_call.1} parent=5 // pred_check_branch
        %282 = sbr.rel (%p279) target = $region12
      $region11: #{tpu_custom_call.1} parent=5 // pred_region
        %s283 = ssub.s32 %s18, 1
        // Predicated region
        $region13: #{tpu_custom_call.1} parent=11 // pred_check
          %p284 = pneg %p157
        $region14: #{tpu_custom_call.1} parent=11 // pred_check_branch
          %286 = sbr.rel (%p284) target = $region16
        $region15: #{tpu_custom_call.1} parent=11 // pred_region
          _
        $region16: #{tpu_custom_call.1} parent=11 // pred_fallthru
          _
        // Predicated region
        $region17: #{tpu_custom_call.1} parent=11 // pred_check
          %p287 = pneg %p178
        $region18: #{tpu_custom_call.1} parent=11 // pred_check_branch
          %289 = sbr.rel (%p287) target = $region20
        $region19: #{tpu_custom_call.1} parent=11 // pred_region
          _
        $region20: #{tpu_custom_call.1} parent=11 // pred_fallthru
          _
        // Predicated region
        $region21: #{tpu_custom_call.1} parent=11 // pred_check
          %p290 = pneg %p199
        $region22: #{tpu_custom_call.1} parent=11 // pred_check_branch
          %292 = sbr.rel (%p290) target = $region24
        $region23: #{tpu_custom_call.1} parent=11 // pred_region
          _
        $region24: #{tpu_custom_call.1} parent=11 // pred_fallthru
          _
        // Predicated region
        $region25: #{tpu_custom_call.1} parent=11 // pred_check
          %p293 = pneg %p220
        $region26: #{tpu_custom_call.1} parent=11 // pred_check_branch
          %295 = sbr.rel (%p293) target = $region28
        $region27: #{tpu_custom_call.1} parent=11 // pred_region
          _
        $region28: #{tpu_custom_call.1} parent=11 // pred_fallthru
          _
        // Predicated region
        $region29: #{tpu_custom_call.1} parent=11 // pred_check
          %p296 = pneg %p241
        $region30: #{tpu_custom_call.1} parent=11 // pred_check_branch
          %298 = sbr.rel (%p296) target = $region32
        $region31: #{tpu_custom_call.1} parent=11 // pred_region
          _
        $region32: #{tpu_custom_call.1} parent=11 // pred_fallthru
          _
      $region12: #{tpu_custom_call.1} parent=5 // pred_fallthru
        _
      %p299 = scmp.lt.s32.totalorder %s18, 2
      // Predicated region
      $region33: #{tpu_custom_call.1} parent=5 // pred_check
        %p300 = pneg %p299
      $region34: #{tpu_custom_call.1} parent=5 // pred_check_branch
        %302 = sbr.rel (%p300) target = $region36
      $region35: #{tpu_custom_call.1} parent=5 // pred_region
        // Predicated region
        $region37: #{tpu_custom_call.1} parent=35 // pred_check
          %p303 = pneg %p52
        $region38: #{tpu_custom_call.1} parent=35 // pred_check_branch
          %305 = sbr.rel (%p303) target = $region40
        $region39: #{tpu_custom_call.1} parent=35 // pred_region
          %p306 = scmp.lt.s32.totalorder %s25, 1
          %s307 = scalar_select %p306, %s25, 1
          %p308 = scmp.lt.s32.totalorder %s26, 0
          %s309 = scalar_select %p308, %s26, 0
          %s310 = sadd.s32 %s309, %s307
          %s311 = smul.addr %s310, 8
          %s312 = scalar_lea.vmem %s0, %s311
        $region40: #{tpu_custom_call.1} parent=35 // pred_fallthru
          _
        // Predicated region
        $region41: #{tpu_custom_call.1} parent=35 // pred_check
          %p313 = pneg %p78
        $region42: #{tpu_custom_call.1} parent=35 // pred_check_branch
          %315 = sbr.rel (%p313) target = $region44
        $region43: #{tpu_custom_call.1} parent=35 // pred_region
          %p316 = scmp.lt.s32.totalorder %s25, 1
          %s317 = scalar_select %p316, %s25, 1
          %s318 = smul.addr %s317, 2
          %s319 = smul.addr %s318, 8
          %s320 = scalar_lea.vmem %s1, %s319
        $region44: #{tpu_custom_call.1} parent=35 // pred_fallthru
          _
        // Predicated region
        $region45: #{tpu_custom_call.1} parent=35 // pred_check
          %p321 = pneg %p104
        $region46: #{tpu_custom_call.1} parent=35 // pred_check_branch
          %323 = sbr.rel (%p321) target = $region48
        $region47: #{tpu_custom_call.1} parent=35 // pred_region
          %p324 = scmp.lt.s32.totalorder %s25, 1
          %s325 = scalar_select %p324, %s25, 1
          %s326 = smul.addr %s325, 2
          %s327 = smul.addr %s326, 8
          %s328 = scalar_lea.vmem %s2, %s327
        $region48: #{tpu_custom_call.1} parent=35 // pred_fallthru
          _
        // Predicated region
        $region49: #{tpu_custom_call.1} parent=35 // pred_check
          %p329 = pneg %p130
        $region50: #{tpu_custom_call.1} parent=35 // pred_check_branch
          %331 = sbr.rel (%p329) target = $region52
        $region51: #{tpu_custom_call.1} parent=35 // pred_region
          %p332 = scmp.lt.s32.totalorder %s25, 1
          %s333 = scalar_select %p332, %s25, 1
          %s334 = scalar_lea.vmem %s3, %s333
        $region52: #{tpu_custom_call.1} parent=35 // pred_fallthru
          _
      $region36: #{tpu_custom_call.1} parent=5 // pred_fallthru
        _
      %p335 = scmp.le.s32.totalorder 1, %s18
      %p336 = scmp.lt.s32.totalorder %s18, 3
      %p337 = pnand %p335, %p336
      %p338 = pneg %p337
      // Predicated region
      $region53: #{tpu_custom_call.1} parent=5 // pred_check
        _
      $region54: #{tpu_custom_call.1} parent=5 // pred_check_branch
        %340 = sbr.rel (%p337) target = $region56
      $region55: #{tpu_custom_call.1} parent=5 // pred_region
        %s341 = ssub.s32 %s18, 1
        %p342 = scmp.lt.s32.totalorder %s27, 1
        %s343 = scalar_select %p342, %s27, 1
        %p344 = scmp.lt.s32.totalorder %s28, 0
        %s345 = scalar_select %p344, %s28, 0
        %s346 = sadd.s32 %s345, %s343
        %s347 = smul.addr %s346, 8
        %s348 = scalar_lea.vmem %s0, %s347
        %p349 = pneg %p58
        %p350 = pneg %p55
        %p351 = scmp.lt.s32.totalorder %s27, 1
        %s352 = scalar_select %p351, %s27, 1
        %s353 = smul.addr %s352, 2
        %s354 = smul.addr %s353, 8
        %s355 = scalar_lea.vmem %s1, %s354
        %p356 = pneg %p84
        %p357 = pneg %p81
        %p358 = scmp.lt.s32.totalorder %s27, 1
        %s359 = scalar_select %p358, %s27, 1
        %s360 = smul.addr %s359, 2
        %s361 = smul.addr %s360, 8
        %s362 = scalar_lea.vmem %s2, %s361
        %p363 = pneg %p110
        %p364 = pneg %p107
        %p365 = scmp.lt.s32.totalorder %s27, 1
        %s366 = scalar_select %p365, %s27, 1
        %s367 = scalar_lea.vmem %s3, %s366
        %p368 = pneg %p136
        %p369 = pneg %p133
        %p370 = pneg %p157
        %p371 = pneg %p154
        %p372 = pneg %p178
        %p373 = pneg %p175
        %p374 = pneg %p199
        %p375 = pneg %p196
        %p376 = pneg %p220
        %p377 = pneg %p217
        %p378 = pneg %p241
        %p379 = pneg %p238
        %p380 = pneg %p269
        %p381 = pneg %p266
        %s382 = sand.u32 %s256, 1
        %s383 = scalar_lea.sflag [#allocation3], %s382
        %s384 = sand.u32 %s256, 1
        %s385 = smul.addr %s384, 8
        %s386 = scalar_lea.vmem [#allocation2], %s385
        %p387 = scmp.lt.s32.totalorder %s27, 1
        %s388 = scalar_select %p387, %s27, 1
        %p389 = scmp.lt.s32.totalorder %s28, 0
        %s390 = scalar_select %p389, %s28, 0
        %s391 = sadd.s32 %s390, %s388
        %s392 = smul.addr %s391, 8
        %s393 = scalar_lea.vmem %s0, %s392
        %p394 = scmp.lt.s32.totalorder %s27, 1
        %s395 = scalar_select %p394, %s27, 1
        %s396 = smul.addr %s395, 2
        %s397 = smul.addr %s396, 8
        %s398 = scalar_lea.vmem %s1, %s397
        %p399 = scmp.lt.s32.totalorder %s27, 1
        %s400 = scalar_select %p399, %s27, 1
        %s401 = smul.addr %s400, 2
        %s402 = smul.addr %s401, 8
        %s403 = scalar_lea.vmem %s2, %s402
        %p404 = scmp.lt.s32.totalorder %s27, 1
        %s405 = scalar_select %p404, %s27, 1
        %s406 = scalar_lea.vmem %s3, %s405
        %v407 = vld [vmem:[%s393] sm:$0xff]
        %v408 = vld [vmem:[%s398] sm:$0xff]
        %v409 = vld [vmem:[%s398 + $0x8] sm:$0xff]
        %v410 = vld [vmem:[%s403] sm:$0xff]
        %v411 = vld [vmem:[%s403 + $0x8] sm:$0xff]
        %v412 = vld [vmem:[%s406] sm:$0x1]
        %vm413 = vcmp.eq.s32.totalorder %v412, 0
        %v414 = vsel %vm413, -1e+30, 0.0
        %v415 = vld [vmem:[%s4] sm:$0xff]
        %v416 = vld [vmem:[%s4 + $0x8] sm:$0xff]
        %v417 = vld [vmem:[%s4 + $0x10] sm:$0xff]
        %v418 = vld [vmem:[%s4 + $0x18] sm:$0xff]
        %v419 = vld [vmem:[%s4 + $0x20] sm:$0xff]
        %v420 = vld [vmem:[%s4 + $0x28] sm:$0xff]
        %v421 = vld [vmem:[%s4 + $0x30] sm:$0xff]
        %v422 = vld [vmem:[%s4 + $0x38] sm:$0xff]
        %v423 = vld [vmem:[%s4 + $0x40] sm:$0xff]
        %v424 = vld [vmem:[%s4 + $0x48] sm:$0xff]
        %v425 = vld [vmem:[%s4 + $0x50] sm:$0xff]
        %v426 = vld [vmem:[%s4 + $0x58] sm:$0xff]
        %v427 = vld [vmem:[%s4 + $0x60] sm:$0xff]
        %v428 = vld [vmem:[%s4 + $0x68] sm:$0xff]
        %v429 = vld [vmem:[%s4 + $0x70] sm:$0xff]
        %v430 = vld [vmem:[%s4 + $0x78] sm:$0xff]
        %v431 = vld [vmem:[%s4 + $0x80] sm:$0xff]
        %v432 = vld [vmem:[%s4 + $0x88] sm:$0xff]
        %v433 = vld [vmem:[%s4 + $0x90] sm:$0xff]
        %v434 = vld [vmem:[%s4 + $0x98] sm:$0xff]
        %v435 = vld [vmem:[%s4 + $0xa0] sm:$0xff]
        %v436 = vld [vmem:[%s4 + $0xa8] sm:$0xff]
        %v437 = vld [vmem:[%s4 + $0xb0] sm:$0xff]
        %v438 = vld [vmem:[%s4 + $0xb8] sm:$0xff]
        %v439 = vld [vmem:[%s4 + $0xc0] sm:$0xff]
        %v440 = vld [vmem:[%s4 + $0xc8] sm:$0xff]
        %v441 = vld [vmem:[%s4 + $0xd0] sm:$0xff]
        %v442 = vld [vmem:[%s4 + $0xd8] sm:$0xff]
        %v443 = vld [vmem:[%s4 + $0xe0] sm:$0xff]
        %v444 = vld [vmem:[%s4 + $0xe8] sm:$0xff]
        %v445 = vld [vmem:[%s4 + $0xf0] sm:$0xff]
        %v446 = vld [vmem:[%s4 + $0xf8] sm:$0xff]
        %vm447 = vcmask 261120
        %v449 = vsel %vm447, %v407, 0
        %451 = vmatprep.subr.mxu0 0.0
        %452 = vmatpush1.msra.mxu0 %v415
        %453 = vmatprep.subr.mxu0 0.0
        %454 = vmatpush1.msra.mxu0 %v416
        %455 = vmatprep.subr.mxu0 0.0
        %456 = vmatpush1.msra.mxu0 %v417
        %457 = vmatprep.subr.mxu0 0.0
        %458 = vmatpush1.msra.mxu0 %v418
        %459 = vmatprep.subr.mxu0 0.0
        %460 = vmatpush1.msra.mxu0 0.0
        %461 = vmatprep.subr.mxu0 0.0
        %462 = vmatpush1.msra.mxu0 0.0
        %463 = vmatprep.subr.mxu0 0.0
        %464 = vmatpush1.msra.mxu0 0.0
        %465 = vmatprep.subr.mxu0 0.0
        %466 = vmatpush1.msra.mxu0 0.0
        %467 = vmatprep.subr.mxu0 0.0
        %468 = vmatpush1.msra.mxu0 0.0
        %469 = vmatprep.subr.mxu0 0.0
        %470 = vmatpush1.msra.mxu0 0.0
        %471 = vmatprep.subr.mxu0 0.0
        %472 = vmatpush1.msra.mxu0 0.0
        %473 = vmatprep.subr.mxu0 0.0
        %474 = vmatpush1.msra.mxu0 0.0
        %475 = vmatprep.subr.mxu0 0.0
        %476 = vmatpush1.msra.mxu0 0.0
        %477 = vmatprep.subr.mxu0 0.0
        %478 = vmatpush1.msra.mxu0 0.0
        %479 = vmatprep.subr.mxu0 0.0
        %480 = vmatpush1.msra.mxu0 0.0
        %481 = vmatprep.subr.mxu0 0.0
        %482 = vmatpush1.msra.mxu0 0.0
        %483 = vmatprep.subr.mxu0 0.0
        %484 = vmatpush1.msra.mxu0 0.0
        %485 = vmatprep.subr.mxu0 0.0
        %486 = vmatpush1.msra.mxu0 0.0
        %487 = vmatprep.subr.mxu0 0.0
        %488 = vmatpush1.msra.mxu0 0.0
        %489 = vmatprep.subr.mxu0 0.0
        %490 = vmatpush1.msra.mxu0 0.0
        %491 = vmatprep.subr.mxu0 0.0
        %492 = vmatpush1.msra.mxu0 0.0
        %493 = vmatprep.subr.mxu0 0.0
        %494 = vmatpush1.msra.mxu0 0.0
        %495 = vmatprep.subr.mxu0 0.0
        %496 = vmatpush1.msra.mxu0 0.0
        %497 = vmatprep.subr.mxu0 0.0
        %498 = vmatpush1.msra.mxu0 0.0
        %499 = vmatprep.subr.mxu0 0.0
        %500 = vmatpush1.msra.mxu0 0.0
        %501 = vmatprep.subr.mxu0 0.0
        %502 = vmatpush1.msra.mxu0 0.0
        %503 = vmatprep.subr.mxu0 0.0
        %504 = vmatpush1.msra.mxu0 0.0
        %505 = vmatprep.subr.mxu0 0.0
        %506 = vmatpush1.msra.mxu0 0.0
        %507 = vmatprep.subr.mxu0 0.0
        %508 = vmatpush1.msra.mxu0 0.0
        %509 = vmatprep.subr.mxu0 0.0
        %510 = vmatpush1.msra.mxu0 0.0
        %511 = vmatprep.subr.mxu0 0.0
        %512 = vmatpush1.msra.mxu0 0.0
        %513 = vmatprep.subr.mxu0 0.0
        %514 = vmatpush1.msra.mxu0 0.0
        %515 = vmatprep.mubr.f32.mxu0 0.0
        %516 = vmatmul.mubr.f32.gmra.mrb[0].mxu0 %v449
        %v517 = vpop.f32.mrb[0].mxu0
        %v518 = vadd.f32 0.0, %v517
        %v519 = vpop.f32.mrb[0].mxu0
        %520 = vdwg.mxu0
        %521 = vmatprep.subr.mxu0 0.0
        %522 = vmatpush1.msra.mxu0 %v419
        %523 = vmatprep.subr.mxu0 0.0
        %524 = vmatpush1.msra.mxu0 %v420
        %525 = vmatprep.subr.mxu0 0.0
        %526 = vmatpush1.msra.mxu0 %v421
        %527 = vmatprep.subr.mxu0 0.0
        %528 = vmatpush1.msra.mxu0 %v422
        %529 = vmatprep.subr.mxu0 0.0
        %530 = vmatpush1.msra.mxu0 0.0
        %531 = vmatprep.subr.mxu0 0.0
        %532 = vmatpush1.msra.mxu0 0.0
        %533 = vmatprep.subr.mxu0 0.0
        %534 = vmatpush1.msra.mxu0 0.0
        %535 = vmatprep.subr.mxu0 0.0
        %536 = vmatpush1.msra.mxu0 0.0
        %537 = vmatprep.subr.mxu0 0.0
        %538 = vmatpush1.msra.mxu0 0.0
        %539 = vmatprep.subr.mxu0 0.0
        %540 = vmatpush1.msra.mxu0 0.0
        %541 = vmatprep.subr.mxu0 0.0
        %542 = vmatpush1.msra.mxu0 0.0
        %543 = vmatprep.subr.mxu0 0.0
        %544 = vmatpush1.msra.mxu0 0.0
        %545 = vmatprep.subr.mxu0 0.0
        %546 = vmatpush1.msra.mxu0 0.0
        %547 = vmatprep.subr.mxu0 0.0
        %548 = vmatpush1.msra.mxu0 0.0
        %549 = vmatprep.subr.mxu0 0.0
        %550 = vmatpush1.msra.mxu0 0.0
        %551 = vmatprep.subr.mxu0 0.0
        %552 = vmatpush1.msra.mxu0 0.0
        %553 = vmatprep.subr.mxu0 0.0
        %554 = vmatpush1.msra.mxu0 0.0
        %555 = vmatprep.subr.mxu0 0.0
        %556 = vmatpush1.msra.mxu0 0.0
        %557 = vmatprep.subr.mxu0 0.0
        %558 = vmatpush1.msra.mxu0 0.0
        %559 = vmatprep.subr.mxu0 0.0
        %560 = vmatpush1.msra.mxu0 0.0
        %561 = vmatprep.subr.mxu0 0.0
        %562 = vmatpush1.msra.mxu0 0.0
        %563 = vmatprep.subr.mxu0 0.0
        %564 = vmatpush1.msra.mxu0 0.0
        %565 = vmatprep.subr.mxu0 0.0
        %566 = vmatpush1.msra.mxu0 0.0
        %567 = vmatprep.subr.mxu0 0.0
        %568 = vmatpush1.msra.mxu0 0.0
        %569 = vmatprep.subr.mxu0 0.0
        %570 = vmatpush1.msra.mxu0 0.0
        %571 = vmatprep.subr.mxu0 0.0
        %572 = vmatpush1.msra.mxu0 0.0
        %573 = vmatprep.subr.mxu0 0.0
        %574 = vmatpush1.msra.mxu0 0.0
        %575 = vmatprep.subr.mxu0 0.0
        %576 = vmatpush1.msra.mxu0 0.0
        %577 = vmatprep.subr.mxu0 0.0
        %578 = vmatpush1.msra.mxu0 0.0
        %579 = vmatprep.subr.mxu0 0.0
        %580 = vmatpush1.msra.mxu0 0.0
        %581 = vmatprep.subr.mxu0 0.0
        %582 = vmatpush1.msra.mxu0 0.0
        %583 = vmatprep.subr.mxu0 0.0
        %584 = vmatpush1.msra.mxu0 0.0
        %585 = vmatprep.mubr.f32.mxu0 0.0
        %586 = vmatmul.mubr.f32.gmra.mrb[0].mxu0 %v449
        %v587 = vpop.f32.mrb[0].mxu0
        %v588 = vadd.f32 0.0, %v587
        %v589 = vpop.f32.mrb[0].mxu0
        %590 = vdwg.mxu0
        %591 = vmatprep.subr.mxu0 0.0
        %592 = vmatpush1.msra.mxu0 %v423
        %593 = vmatprep.subr.mxu0 0.0
        %594 = vmatpush1.msra.mxu0 %v424
        %595 = vmatprep.subr.mxu0 0.0
        %596 = vmatpush1.msra.mxu0 %v425
        %597 = vmatprep.subr.mxu0 0.0
        %598 = vmatpush1.msra.mxu0 %v426
        %599 = vmatprep.subr.mxu0 0.0
        %600 = vmatpush1.msra.mxu0 0.0
        %601 = vmatprep.subr.mxu0 0.0
        %602 = vmatpush1.msra.mxu0 0.0
        %603 = vmatprep.subr.mxu0 0.0
        %604 = vmatpush1.msra.mxu0 0.0
        %605 = vmatprep.subr.mxu0 0.0
        %606 = vmatpush1.msra.mxu0 0.0
        %607 = vmatprep.subr.mxu0 0.0
        %608 = vmatpush1.msra.mxu0 0.0
        %609 = vmatprep.subr.mxu0 0.0
        %610 = vmatpush1.msra.mxu0 0.0
        %611 = vmatprep.subr.mxu0 0.0
        %612 = vmatpush1.msra.mxu0 0.0
        %613 = vmatprep.subr.mxu0 0.0
        %614 = vmatpush1.msra.mxu0 0.0
        %615 = vmatprep.subr.mxu0 0.0
        %616 = vmatpush1.msra.mxu0 0.0
        %617 = vmatprep.subr.mxu0 0.0
        %618 = vmatpush1.msra.mxu0 0.0
        %619 = vmatprep.subr.mxu0 0.0
        %620 = vmatpush1.msra.mxu0 0.0
        %621 = vmatprep.subr.mxu0 0.0
        %622 = vmatpush1.msra.mxu0 0.0
        %623 = vmatprep.subr.mxu0 0.0
        %624 = vmatpush1.msra.mxu0 0.0
        %625 = vmatprep.subr.mxu0 0.0
        %626 = vmatpush1.msra.mxu0 0.0
        %627 = vmatprep.subr.mxu0 0.0
        %628 = vmatpush1.msra.mxu0 0.0
        %629 = vmatprep.subr.mxu0 0.0
        %630 = vmatpush1.msra.mxu0 0.0
        %631 = vmatprep.subr.mxu0 0.0
        %632 = vmatpush1.msra.mxu0 0.0
        %633 = vmatprep.subr.mxu0 0.0
        %634 = vmatpush1.msra.mxu0 0.0
        %635 = vmatprep.subr.mxu0 0.0
        %636 = vmatpush1.msra.mxu0 0.0
        %637 = vmatprep.subr.mxu0 0.0
        %638 = vmatpush1.msra.mxu0 0.0
        %639 = vmatprep.subr.mxu0 0.0
        %640 = vmatpush1.msra.mxu0 0.0
        %641 = vmatprep.subr.mxu0 0.0
        %642 = vmatpush1.msra.mxu0 0.0
        %643 = vmatprep.subr.mxu0 0.0
        %644 = vmatpush1.msra.mxu0 0.0
        %645 = vmatprep.subr.mxu0 0.0
        %646 = vmatpush1.msra.mxu0 0.0
        %647 = vmatprep.subr.mxu0 0.0
        %648 = vmatpush1.msra.mxu0 0.0
        %649 = vmatprep.subr.mxu0 0.0
        %650 = vmatpush1.msra.mxu0 0.0
        %651 = vmatprep.subr.mxu0 0.0
        %652 = vmatpush1.msra.mxu0 0.0
        %653 = vmatprep.subr.mxu0 0.0
        %654 = vmatpush1.msra.mxu0 0.0
        %655 = vmatprep.mubr.f32.mxu0 0.0
        %656 = vmatmul.mubr.f32.gmra.mrb[0].mxu0 %v449
        %v657 = vpop.f32.mrb[0].mxu0
        %v658 = vadd.f32 0.0, %v657
        %v659 = vpop.f32.mrb[0].mxu0
        %660 = vdwg.mxu0
        %661 = vmatprep.subr.mxu0 0.0
        %662 = vmatpush1.msra.mxu0 %v427
        %663 = vmatprep.subr.mxu0 0.0
        %664 = vmatpush1.msra.mxu0 %v428
        %665 = vmatprep.subr.mxu0 0.0
        %666 = vmatpush1.msra.mxu0 %v429
        %667 = vmatprep.subr.mxu0 0.0
        %668 = vmatpush1.msra.mxu0 %v430
        %669 = vmatprep.subr.mxu0 0.0
        %670 = vmatpush1.msra.mxu0 0.0
        %671 = vmatprep.subr.mxu0 0.0
        %672 = vmatpush1.msra.mxu0 0.0
        %673 = vmatprep.subr.mxu0 0.0
        %674 = vmatpush1.msra.mxu0 0.0
        %675 = vmatprep.subr.mxu0 0.0
        %676 = vmatpush1.msra.mxu0 0.0
        %677 = vmatprep.subr.mxu0 0.0
        %678 = vmatpush1.msra.mxu0 0.0
        %679 = vmatprep.subr.mxu0 0.0
        %680 = vmatpush1.msra.mxu0 0.0
        %681 = vmatprep.subr.mxu0 0.0
        %682 = vmatpush1.msra.mxu0 0.0
        %683 = vmatprep.subr.mxu0 0.0
        %684 = vmatpush1.msra.mxu0 0.0
        %685 = vmatprep.subr.mxu0 0.0
        %686 = vmatpush1.msra.mxu0 0.0
        %687 = vmatprep.subr.mxu0 0.0
        %688 = vmatpush1.msra.mxu0 0.0
        %689 = vmatprep.subr.mxu0 0.0
        %690 = vmatpush1.msra.mxu0 0.0
        %691 = vmatprep.subr.mxu0 0.0
        %692 = vmatpush1.msra.mxu0 0.0
        %693 = vmatprep.subr.mxu0 0.0
        %694 = vmatpush1.msra.mxu0 0.0
        %695 = vmatprep.subr.mxu0 0.0
        %696 = vmatpush1.msra.mxu0 0.0
        %697 = vmatprep.subr.mxu0 0.0
        %698 = vmatpush1.msra.mxu0 0.0
        %699 = vmatprep.subr.mxu0 0.0
        %700 = vmatpush1.msra.mxu0 0.0
        %701 = vmatprep.subr.mxu0 0.0
        %702 = vmatpush1.msra.mxu0 0.0
        %703 = vmatprep.subr.mxu0 0.0
        %704 = vmatpush1.msra.mxu0 0.0
        %705 = vmatprep.subr.mxu0 0.0
        %706 = vmatpush1.msra.mxu0 0.0
        %707 = vmatprep.subr.mxu0 0.0
        %708 = vmatpush1.msra.mxu0 0.0
        %709 = vmatprep.subr.mxu0 0.0
        %710 = vmatpush1.msra.mxu0 0.0
        %711 = vmatprep.subr.mxu0 0.0
        %712 = vmatpush1.msra.mxu0 0.0
        %713 = vmatprep.subr.mxu0 0.0
        %714 = vmatpush1.msra.mxu0 0.0
        %715 = vmatprep.subr.mxu0 0.0
        %716 = vmatpush1.msra.mxu0 0.0
        %717 = vmatprep.subr.mxu0 0.0
        %718 = vmatpush1.msra.mxu0 0.0
        %719 = vmatprep.subr.mxu0 0.0
        %720 = vmatpush1.msra.mxu0 0.0
        %721 = vmatprep.subr.mxu0 0.0
        %722 = vmatpush1.msra.mxu0 0.0
        %723 = vmatprep.subr.mxu0 0.0
        %724 = vmatpush1.msra.mxu0 0.0
        %725 = vmatprep.mubr.f32.mxu0 0.0
        %726 = vmatmul.mubr.f32.gmra.mrb[0].mxu0 %v449
        %v727 = vpop.f32.mrb[0].mxu0
        %v728 = vadd.f32 0.0, %v727
        %v729 = vpop.f32.mrb[0].mxu0
        %730 = vdwg.mxu0
        %731 = vmatprep.subr.mxu0 0.0
        %732 = vmatpush1.msra.mxu0 %v431
        %733 = vmatprep.subr.mxu0 0.0
        %734 = vmatpush1.msra.mxu0 %v432
        %735 = vmatprep.subr.mxu0 0.0
        %736 = vmatpush1.msra.mxu0 %v433
        %737 = vmatprep.subr.mxu0 0.0
        %738 = vmatpush1.msra.mxu0 %v434
        %739 = vmatprep.subr.mxu0 0.0
        %740 = vmatpush1.msra.mxu0 0.0
        %741 = vmatprep.subr.mxu0 0.0
        %742 = vmatpush1.msra.mxu0 0.0
        %743 = vmatprep.subr.mxu0 0.0
        %744 = vmatpush1.msra.mxu0 0.0
        %745 = vmatprep.subr.mxu0 0.0
        %746 = vmatpush1.msra.mxu0 0.0
        %747 = vmatprep.subr.mxu0 0.0
        %748 = vmatpush1.msra.mxu0 0.0
        %749 = vmatprep.subr.mxu0 0.0
        %750 = vmatpush1.msra.mxu0 0.0
        %751 = vmatprep.subr.mxu0 0.0
        %752 = vmatpush1.msra.mxu0 0.0
        %753 = vmatprep.subr.mxu0 0.0
        %754 = vmatpush1.msra.mxu0 0.0
        %755 = vmatprep.subr.mxu0 0.0
        %756 = vmatpush1.msra.mxu0 0.0
        %757 = vmatprep.subr.mxu0 0.0
        %758 = vmatpush1.msra.mxu0 0.0
        %759 = vmatprep.subr.mxu0 0.0
        %760 = vmatpush1.msra.mxu0 0.0
        %761 = vmatprep.subr.mxu0 0.0
        %762 = vmatpush1.msra.mxu0 0.0
        %763 = vmatprep.subr.mxu0 0.0
        %764 = vmatpush1.msra.mxu0 0.0
        %765 = vmatprep.subr.mxu0 0.0
        %766 = vmatpush1.msra.mxu0 0.0
        %767 = vmatprep.subr.mxu0 0.0
        %768 = vmatpush1.msra.mxu0 0.0
        %769 = vmatprep.subr.mxu0 0.0
        %770 = vmatpush1.msra.mxu0 0.0
        %771 = vmatprep.subr.mxu0 0.0
        %772 = vmatpush1.msra.mxu0 0.0
        %773 = vmatprep.subr.mxu0 0.0
        %774 = vmatpush1.msra.mxu0 0.0
        %775 = vmatprep.subr.mxu0 0.0
        %776 = vmatpush1.msra.mxu0 0.0
        %777 = vmatprep.subr.mxu0 0.0
        %778 = vmatpush1.msra.mxu0 0.0
        %779 = vmatprep.subr.mxu0 0.0
        %780 = vmatpush1.msra.mxu0 0.0
        %781 = vmatprep.subr.mxu0 0.0
        %782 = vmatpush1.msra.mxu0 0.0
        %783 = vmatprep.subr.mxu0 0.0
        %784 = vmatpush1.msra.mxu0 0.0
        %785 = vmatprep.subr.mxu0 0.0
        %786 = vmatpush1.msra.mxu0 0.0
        %787 = vmatprep.subr.mxu0 0.0
        %788 = vmatpush1.msra.mxu0 0.0
        %789 = vmatprep.subr.mxu0 0.0
        %790 = vmatpush1.msra.mxu0 0.0
        %791 = vmatprep.subr.mxu0 0.0
        %792 = vmatpush1.msra.mxu0 0.0
        %793 = vmatprep.subr.mxu0 0.0
        %794 = vmatpush1.msra.mxu0 0.0
        %795 = vmatprep.mubr.f32.mxu0 0.0
        %796 = vmatmul.mubr.f32.gmra.mrb[0].mxu0 %v449
        %v797 = vpop.f32.mrb[0].mxu0
        %v798 = vadd.f32 0.0, %v797
        %v799 = vpop.f32.mrb[0].mxu0
        %800 = vdwg.mxu0
        %801 = vmatprep.subr.mxu0 0.0
        %802 = vmatpush1.msra.mxu0 %v435
        %803 = vmatprep.subr.mxu0 0.0
        %804 = vmatpush1.msra.mxu0 %v436
        %805 = vmatprep.subr.mxu0 0.0
        %806 = vmatpush1.msra.mxu0 %v437
        %807 = vmatprep.subr.mxu0 0.0
        %808 = vmatpush1.msra.mxu0 %v438
        %809 = vmatprep.subr.mxu0 0.0
        %810 = vmatpush1.msra.mxu0 0.0
        %811 = vmatprep.subr.mxu0 0.0
        %812 = vmatpush1.msra.mxu0 0.0
        %813 = vmatprep.subr.mxu0 0.0
        %814 = vmatpush1.msra.mxu0 0.0
        %815 = vmatprep.subr.mxu0 0.0
        %816 = vmatpush1.msra.mxu0 0.0
        %817 = vmatprep.subr.mxu0 0.0
        %818 = vmatpush1.msra.mxu0 0.0
        %819 = vmatprep.subr.mxu0 0.0
        %820 = vmatpush1.msra.mxu0 0.0
        %821 = vmatprep.subr.mxu0 0.0
        %822 = vmatpush1.msra.mxu0 0.0
        %823 = vmatprep.subr.mxu0 0.0
        %824 = vmatpush1.msra.mxu0 0.0
        %825 = vmatprep.subr.mxu0 0.0
        %826 = vmatpush1.msra.mxu0 0.0
        %827 = vmatprep.subr.mxu0 0.0
        %828 = vmatpush1.msra.mxu0 0.0
        %829 = vmatprep.subr.mxu0 0.0
        %830 = vmatpush1.msra.mxu0 0.0
        %831 = vmatprep.subr.mxu0 0.0
        %832 = vmatpush1.msra.mxu0 0.0
        %833 = vmatprep.subr.mxu0 0.0
        %834 = vmatpush1.msra.mxu0 0.0
        %835 = vmatprep.subr.mxu0 0.0
        %836 = vmatpush1.msra.mxu0 0.0
        %837 = vmatprep.subr.mxu0 0.0
        %838 = vmatpush1.msra.mxu0 0.0
        %839 = vmatprep.subr.mxu0 0.0
        %840 = vmatpush1.msra.mxu0 0.0
        %841 = vmatprep.subr.mxu0 0.0
        %842 = vmatpush1.msra.mxu0 0.0
        %843 = vmatprep.subr.mxu0 0.0
        %844 = vmatpush1.msra.mxu0 0.0
        %845 = vmatprep.subr.mxu0 0.0
        %846 = vmatpush1.msra.mxu0 0.0
        %847 = vmatprep.subr.mxu0 0.0
        %848 = vmatpush1.msra.mxu0 0.0
        %849 = vmatprep.subr.mxu0 0.0
        %850 = vmatpush1.msra.mxu0 0.0
        %851 = vmatprep.subr.mxu0 0.0
        %852 = vmatpush1.msra.mxu0 0.0
        %853 = vmatprep.subr.mxu0 0.0
        %854 = vmatpush1.msra.mxu0 0.0
        %855 = vmatprep.subr.mxu0 0.0
        %856 = vmatpush1.msra.mxu0 0.0
        %857 = vmatprep.subr.mxu0 0.0
        %858 = vmatpush1.msra.mxu0 0.0
        %859 = vmatprep.subr.mxu0 0.0
        %860 = vmatpush1.msra.mxu0 0.0
        %861 = vmatprep.subr.mxu0 0.0
        %862 = vmatpush1.msra.mxu0 0.0
        %863 = vmatprep.subr.mxu0 0.0
        %864 = vmatpush1.msra.mxu0 0.0
        %865 = vmatprep.mubr.f32.mxu0 0.0
        %866 = vmatmul.mubr.f32.gmra.mrb[0].mxu0 %v449
        %v867 = vpop.f32.mrb[0].mxu0
        %v868 = vadd.f32 0.0, %v867
        %v869 = vpop.f32.mrb[0].mxu0
        %870 = vdwg.mxu0
        %871 = vmatprep.subr.mxu0 0.0
        %872 = vmatpush1.msra.mxu0 %v439
        %873 = vmatprep.subr.mxu0 0.0
        %874 = vmatpush1.msra.mxu0 %v440
        %875 = vmatprep.subr.mxu0 0.0
        %876 = vmatpush1.msra.mxu0 %v441
        %877 = vmatprep.subr.mxu0 0.0
        %878 = vmatpush1.msra.mxu0 %v442
        %879 = vmatprep.subr.mxu0 0.0
        %880 = vmatpush1.msra.mxu0 0.0
        %881 = vmatprep.subr.mxu0 0.0
        %882 = vmatpush1.msra.mxu0 0.0
        %883 = vmatprep.subr.mxu0 0.0
        %884 = vmatpush1.msra.mxu0 0.0
        %885 = vmatprep.subr.mxu0 0.0
        %886 = vmatpush1.msra.mxu0 0.0
        %887 = vmatprep.subr.mxu0 0.0
        %888 = vmatpush1.msra.mxu0 0.0
        %889 = vmatprep.subr.mxu0 0.0
        %890 = vmatpush1.msra.mxu0 0.0
        %891 = vmatprep.subr.mxu0 0.0
        %892 = vmatpush1.msra.mxu0 0.0
        %893 = vmatprep.subr.mxu0 0.0
        %894 = vmatpush1.msra.mxu0 0.0
        %895 = vmatprep.subr.mxu0 0.0
        %896 = vmatpush1.msra.mxu0 0.0
        %897 = vmatprep.subr.mxu0 0.0
        %898 = vmatpush1.msra.mxu0 0.0
        %899 = vmatprep.subr.mxu0 0.0
        %900 = vmatpush1.msra.mxu0 0.0
        %901 = vmatprep.subr.mxu0 0.0
        %902 = vmatpush1.msra.mxu0 0.0
        %903 = vmatprep.subr.mxu0 0.0
        %904 = vmatpush1.msra.mxu0 0.0
        %905 = vmatprep.subr.mxu0 0.0
        %906 = vmatpush1.msra.mxu0 0.0
        %907 = vmatprep.subr.mxu0 0.0
        %908 = vmatpush1.msra.mxu0 0.0
        %909 = vmatprep.subr.mxu0 0.0
        %910 = vmatpush1.msra.mxu0 0.0
        %911 = vmatprep.subr.mxu0 0.0
        %912 = vmatpush1.msra.mxu0 0.0
        %913 = vmatprep.subr.mxu0 0.0
        %914 = vmatpush1.msra.mxu0 0.0
        %915 = vmatprep.subr.mxu0 0.0
        %916 = vmatpush1.msra.mxu0 0.0
        %917 = vmatprep.subr.mxu0 0.0
        %918 = vmatpush1.msra.mxu0 0.0
        %919 = vmatprep.subr.mxu0 0.0
        %920 = vmatpush1.msra.mxu0 0.0
        %921 = vmatprep.subr.mxu0 0.0
        %922 = vmatpush1.msra.mxu0 0.0
        %923 = vmatprep.subr.mxu0 0.0
        %924 = vmatpush1.msra.mxu0 0.0
        %925 = vmatprep.subr.mxu0 0.0
        %926 = vmatpush1.msra.mxu0 0.0
        %927 = vmatprep.subr.mxu0 0.0
        %928 = vmatpush1.msra.mxu0 0.0
        %929 = vmatprep.subr.mxu0 0.0
        %930 = vmatpush1.msra.mxu0 0.0
        %931 = vmatprep.subr.mxu0 0.0
        %932 = vmatpush1.msra.mxu0 0.0
        %933 = vmatprep.subr.mxu0 0.0
        %934 = vmatpush1.msra.mxu0 0.0
        %935 = vmatprep.mubr.f32.mxu0 0.0
        %936 = vmatmul.mubr.f32.gmra.mrb[0].mxu0 %v449
        %v937 = vpop.f32.mrb[0].mxu0
        %v938 = vadd.f32 0.0, %v937
        %v939 = vpop.f32.mrb[0].mxu0
        %940 = vdwg.mxu0
        %941 = vmatprep.subr.mxu0 0.0
        %942 = vmatpush1.msra.mxu0 %v443
        %943 = vmatprep.subr.mxu0 0.0
        %944 = vmatpush1.msra.mxu0 %v444
        %945 = vmatprep.subr.mxu0 0.0
        %946 = vmatpush1.msra.mxu0 %v445
        %947 = vmatprep.subr.mxu0 0.0
        %948 = vmatpush1.msra.mxu0 %v446
        %949 = vmatprep.subr.mxu0 0.0
        %950 = vmatpush1.msra.mxu0 0.0
        %951 = vmatprep.subr.mxu0 0.0
        %952 = vmatpush1.msra.mxu0 0.0
        %953 = vmatprep.subr.mxu0 0.0
        %954 = vmatpush1.msra.mxu0 0.0
        %955 = vmatprep.subr.mxu0 0.0
        %956 = vmatpush1.msra.mxu0 0.0
        %957 = vmatprep.subr.mxu0 0.0
        %958 = vmatpush1.msra.mxu0 0.0
        %959 = vmatprep.subr.mxu0 0.0
        %960 = vmatpush1.msra.mxu0 0.0
        %961 = vmatprep.subr.mxu0 0.0
        %962 = vmatpush1.msra.mxu0 0.0
        %963 = vmatprep.subr.mxu0 0.0
        %964 = vmatpush1.msra.mxu0 0.0
        %965 = vmatprep.subr.mxu0 0.0
        %966 = vmatpush1.msra.mxu0 0.0
        %967 = vmatprep.subr.mxu0 0.0
        %968 = vmatpush1.msra.mxu0 0.0
        %969 = vmatprep.subr.mxu0 0.0
        %970 = vmatpush1.msra.mxu0 0.0
        %971 = vmatprep.subr.mxu0 0.0
        %972 = vmatpush1.msra.mxu0 0.0
        %973 = vmatprep.subr.mxu0 0.0
        %974 = vmatpush1.msra.mxu0 0.0
        %975 = vmatprep.subr.mxu0 0.0
        %976 = vmatpush1.msra.mxu0 0.0
        %977 = vmatprep.subr.mxu0 0.0
        %978 = vmatpush1.msra.mxu0 0.0
        %979 = vmatprep.subr.mxu0 0.0
        %980 = vmatpush1.msra.mxu0 0.0
        %981 = vmatprep.subr.mxu0 0.0
        %982 = vmatpush1.msra.mxu0 0.0
        %983 = vmatprep.subr.mxu0 0.0
        %984 = vmatpush1.msra.mxu0 0.0
        %985 = vmatprep.subr.mxu0 0.0
        %986 = vmatpush1.msra.mxu0 0.0
        %987 = vmatprep.subr.mxu0 0.0
        %988 = vmatpush1.msra.mxu0 0.0
        %989 = vmatprep.subr.mxu0 0.0
        %990 = vmatpush1.msra.mxu0 0.0
        %991 = vmatprep.subr.mxu0 0.0
        %992 = vmatpush1.msra.mxu0 0.0
        %993 = vmatprep.subr.mxu0 0.0
        %994 = vmatpush1.msra.mxu0 0.0
        %995 = vmatprep.subr.mxu0 0.0
        %996 = vmatpush1.msra.mxu0 0.0
        %997 = vmatprep.subr.mxu0 0.0
        %998 = vmatpush1.msra.mxu0 0.0
        %999 = vmatprep.subr.mxu0 0.0
        %1000 = vmatpush1.msra.mxu0 0.0
        %1001 = vmatprep.subr.mxu0 0.0
        %1002 = vmatpush1.msra.mxu0 0.0
        %1003 = vmatprep.subr.mxu0 0.0
        %1004 = vmatpush1.msra.mxu0 0.0
        %1005 = vmatprep.mubr.f32.mxu0 0.0
        %1006 = vmatmul.mubr.f32.gmra.mrb[0].mxu0 %v449
        %v1007 = vpop.f32.mrb[0].mxu0
        %v1008 = vadd.f32 0.0, %v1007
        %v1009 = vpop.f32.mrb[0].mxu0
        %1010 = vdwg.mxu0
        %v1011 = vld [vmem:[%s5] sm:$0xff]
        %v1012 = vld [vmem:[%s5 + $0x8] sm:$0xff]
        %v1013 = vld [vmem:[%s5 + $0x10] sm:$0xff]
        %v1014 = vld [vmem:[%s5 + $0x18] sm:$0xff]
        %v1015 = vld [vmem:[%s5 + $0x20] sm:$0xff]
        %v1016 = vld [vmem:[%s5 + $0x28] sm:$0xff]
        %v1017 = vld [vmem:[%s5 + $0x30] sm:$0xff]
        %v1018 = vld [vmem:[%s5 + $0x38] sm:$0xff]
        %v1019 = vld [vmem:[%s5 + $0x40] sm:$0xff]
        %v1020 = vld [vmem:[%s5 + $0x48] sm:$0xff]
        %v1021 = vld [vmem:[%s5 + $0x50] sm:$0xff]
        %v1022 = vld [vmem:[%s5 + $0x58] sm:$0xff]
        %v1023 = vld [vmem:[%s5 + $0x60] sm:$0xff]
        %v1024 = vld [vmem:[%s5 + $0x68] sm:$0xff]
        %v1025 = vld [vmem:[%s5 + $0x70] sm:$0xff]
        %v1026 = vld [vmem:[%s5 + $0x78] sm:$0xff]
        %v1027 = vld [vmem:[%s5 + $0x80] sm:$0xff]
        %v1028 = vld [vmem:[%s5 + $0x88] sm:$0xff]
        %v1029 = vld [vmem:[%s5 + $0x90] sm:$0xff]
        %v1030 = vld [vmem:[%s5 + $0x98] sm:$0xff]
        %v1031 = vld [vmem:[%s5 + $0xa0] sm:$0xff]
        %v1032 = vld [vmem:[%s5 + $0xa8] sm:$0xff]
        %v1033 = vld [vmem:[%s5 + $0xb0] sm:$0xff]
        %v1034 = vld [vmem:[%s5 + $0xb8] sm:$0xff]
        %v1035 = vld [vmem:[%s5 + $0xc0] sm:$0xff]
        %v1036 = vld [vmem:[%s5 + $0xc8] sm:$0xff]
        %v1037 = vld [vmem:[%s5 + $0xd0] sm:$0xff]
        %v1038 = vld [vmem:[%s5 + $0xd8] sm:$0xff]
        %v1039 = vld [vmem:[%s5 + $0xe0] sm:$0xff]
        %v1040 = vld [vmem:[%s5 + $0xe8] sm:$0xff]
        %v1041 = vld [vmem:[%s5 + $0xf0] sm:$0xff]
        %v1042 = vld [vmem:[%s5 + $0xf8] sm:$0xff]
        %v1044 = vsel %vm447, %v408, 0
        %v1047 = vsel %vm447, %v409, 0
        %1049 = vmatprep.subr.mxu0 0.0
        %1050 = vmatpush1.msra.mxu0 %v1011
        %1051 = vmatprep.subr.mxu0 0.0
        %1052 = vmatpush1.msra.mxu0 %v1012
        %1053 = vmatprep.subr.mxu0 0.0
        %1054 = vmatpush1.msra.mxu0 %v1013
        %1055 = vmatprep.subr.mxu0 0.0
        %1056 = vmatpush1.msra.mxu0 %v1014
        %1057 = vmatprep.subr.mxu0 0.0
        %1058 = vmatpush1.msra.mxu0 0.0
        %1059 = vmatprep.subr.mxu0 0.0
        %1060 = vmatpush1.msra.mxu0 0.0
        %1061 = vmatprep.subr.mxu0 0.0
        %1062 = vmatpush1.msra.mxu0 0.0
        %1063 = vmatprep.subr.mxu0 0.0
        %1064 = vmatpush1.msra.mxu0 0.0
        %1065 = vmatprep.subr.mxu0 0.0
        %1066 = vmatpush1.msra.mxu0 0.0
        %1067 = vmatprep.subr.mxu0 0.0
        %1068 = vmatpush1.msra.mxu0 0.0
        %1069 = vmatprep.subr.mxu0 0.0
        %1070 = vmatpush1.msra.mxu0 0.0
        %1071 = vmatprep.subr.mxu0 0.0
        %1072 = vmatpush1.msra.mxu0 0.0
        %1073 = vmatprep.subr.mxu0 0.0
        %1074 = vmatpush1.msra.mxu0 0.0
        %1075 = vmatprep.subr.mxu0 0.0
        %1076 = vmatpush1.msra.mxu0 0.0
        %1077 = vmatprep.subr.mxu0 0.0
        %1078 = vmatpush1.msra.mxu0 0.0
        %1079 = vmatprep.subr.mxu0 0.0
        %1080 = vmatpush1.msra.mxu0 0.0
        %1081 = vmatprep.subr.mxu0 0.0
        %1082 = vmatpush1.msra.mxu0 0.0
        %1083 = vmatprep.subr.mxu0 0.0
        %1084 = vmatpush1.msra.mxu0 0.0
        %1085 = vmatprep.subr.mxu0 0.0
        %1086 = vmatpush1.msra.mxu0 0.0
        %1087 = vmatprep.subr.mxu0 0.0
        %1088 = vmatpush1.msra.mxu0 0.0
        %1089 = vmatprep.subr.mxu0 0.0
        %1090 = vmatpush1.msra.mxu0 0.0
        %1091 = vmatprep.subr.mxu0 0.0
        %1092 = vmatpush1.msra.mxu0 0.0
        %1093 = vmatprep.subr.mxu0 0.0
        %1094 = vmatpush1.msra.mxu0 0.0
        %1095 = vmatprep.subr.mxu0 0.0
        %1096 = vmatpush1.msra.mxu0 0.0
        %1097 = vmatprep.subr.mxu0 0.0
        %1098 = vmatpush1.msra.mxu0 0.0
        %1099 = vmatprep.subr.mxu0 0.0
        %1100 = vmatpush1.msra.mxu0 0.0
        %1101 = vmatprep.subr.mxu0 0.0
        %1102 = vmatpush1.msra.mxu0 0.0
        %1103 = vmatprep.subr.mxu0 0.0
        %1104 = vmatpush1.msra.mxu0 0.0
        %1105 = vmatprep.subr.mxu0 0.0
        %1106 = vmatpush1.msra.mxu0 0.0
        %1107 = vmatprep.subr.mxu0 0.0
        %1108 = vmatpush1.msra.mxu0 0.0
        %1109 = vmatprep.subr.mxu0 0.0
        %1110 = vmatpush1.msra.mxu0 0.0
        %1111 = vmatprep.subr.mxu0 0.0
        %1112 = vmatpush1.msra.mxu0 0.0
        %1113 = vmatprep.mubr.f32.mxu0 0.0
        %1114 = vmatmul.mubr.f32.gmra.mrb[0].mxu0 %v1044
        %v1115 = vpop.f32.mrb[0].mxu0
        %v1116 = vadd.f32 0.0, %v1115
        %v1117 = vpop.f32.mrb[0].mxu0
        %1118 = vmatprep.mubr.f32.mxu0 0.0
        %1119 = vmatmul.mubr.f32.gmra.mrb[0].mxu0 %v1047
        %v1120 = vpop.f32.mrb[0].mxu0
        %v1121 = vadd.f32 0.0, %v1120
        %v1122 = vpop.f32.mrb[0].mxu0
        %1123 = vdwg.mxu0
        %1124 = vmatprep.subr.mxu0 0.0
        %1125 = vmatpush1.msra.mxu0 %v1015
        %1126 = vmatprep.subr.mxu0 0.0
        %1127 = vmatpush1.msra.mxu0 %v1016
        %1128 = vmatprep.subr.mxu0 0.0
        %1129 = vmatpush1.msra.mxu0 %v1017
        %1130 = vmatprep.subr.mxu0 0.0
        %1131 = vmatpush1.msra.mxu0 %v1018
        %1132 = vmatprep.subr.mxu0 0.0
        %1133 = vmatpush1.msra.mxu0 0.0
        %1134 = vmatprep.subr.mxu0 0.0
        %1135 = vmatpush1.msra.mxu0 0.0
        %1136 = vmatprep.subr.mxu0 0.0
        %1137 = vmatpush1.msra.mxu0 0.0
        %1138 = vmatprep.subr.mxu0 0.0
        %1139 = vmatpush1.msra.mxu0 0.0
        %1140 = vmatprep.subr.mxu0 0.0
        %1141 = vmatpush1.msra.mxu0 0.0
        %1142 = vmatprep.subr.mxu0 0.0
        %1143 = vmatpush1.msra.mxu0 0.0
        %1144 = vmatprep.subr.mxu0 0.0
        %1145 = vmatpush1.msra.mxu0 0.0
        %1146 = vmatprep.subr.mxu0 0.0
        %1147 = vmatpush1.msra.mxu0 0.0
        %1148 = vmatprep.subr.mxu0 0.0
        %1149 = vmatpush1.msra.mxu0 0.0
        %1150 = vmatprep.subr.mxu0 0.0
        %1151 = vmatpush1.msra.mxu0 0.0
        %1152 = vmatprep.subr.mxu0 0.0
        %1153 = vmatpush1.msra.mxu0 0.0
        %1154 = vmatprep.subr.mxu0 0.0
        %1155 = vmatpush1.msra.mxu0 0.0
        %1156 = vmatprep.subr.mxu0 0.0
        %1157 = vmatpush1.msra.mxu0 0.0
        %1158 = vmatprep.subr.mxu0 0.0
        %1159 = vmatpush1.msra.mxu0 0.0
        %1160 = vmatprep.subr.mxu0 0.0
        %1161 = vmatpush1.msra.mxu0 0.0
        %1162 = vmatprep.subr.mxu0 0.0
        %1163 = vmatpush1.msra.mxu0 0.0
        %1164 = vmatprep.subr.mxu0 0.0
        %1165 = vmatpush1.msra.mxu0 0.0
        %1166 = vmatprep.subr.mxu0 0.0
        %1167 = vmatpush1.msra.mxu0 0.0
        %1168 = vmatprep.subr.mxu0 0.0
        %1169 = vmatpush1.msra.mxu0 0.0
        %1170 = vmatprep.subr.mxu0 0.0
        %1171 = vmatpush1.msra.mxu0 0.0
        %1172 = vmatprep.subr.mxu0 0.0
        %1173 = vmatpush1.msra.mxu0 0.0
        %1174 = vmatprep.subr.mxu0 0.0
        %1175 = vmatpush1.msra.mxu0 0.0
        %1176 = vmatprep.subr.mxu0 0.0
        %1177 = vmatpush1.msra.mxu0 0.0
        %1178 = vmatprep.subr.mxu0 0.0
        %1179 = vmatpush1.msra.mxu0 0.0
        %1180 = vmatprep.subr.mxu0 0.0
        %1181 = vmatpush1.msra.mxu0 0.0
        %1182 = vmatprep.subr.mxu0 0.0
        %1183 = vmatpush1.msra.mxu0 0.0
        %1184 = vmatprep.subr.mxu0 0.0
        %1185 = vmatpush1.msra.mxu0 0.0
        %1186 = vmatprep.subr.mxu0 0.0
        %1187 = vmatpush1.msra.mxu0 0.0
        %1188 = vmatprep.mubr.f32.mxu0 0.0
        %1189 = vmatmul.mubr.f32.gmra.mrb[0].mxu0 %v1044
        %v1190 = vpop.f32.mrb[0].mxu0
        %v1191 = vadd.f32 0.0, %v1190
        %v1192 = vpop.f32.mrb[0].mxu0
        %1193 = vmatprep.mubr.f32.mxu0 0.0
        %1194 = vmatmul.mubr.f32.gmra.mrb[0].mxu0 %v1047
        %v1195 = vpop.f32.mrb[0].mxu0
        %v1196 = vadd.f32 0.0, %v1195
        %v1197 = vpop.f32.mrb[0].mxu0
        %1198 = vdwg.mxu0
        %1199 = vmatprep.subr.mxu0 0.0
        %1200 = vmatpush1.msra.mxu0 %v1019
        %1201 = vmatprep.subr.mxu0 0.0
        %1202 = vmatpush1.msra.mxu0 %v1020
        %1203 = vmatprep.subr.mxu0 0.0
        %1204 = vmatpush1.msra.mxu0 %v1021
        %1205 = vmatprep.subr.mxu0 0.0
        %1206 = vmatpush1.msra.mxu0 %v1022
        %1207 = vmatprep.subr.mxu0 0.0
        %1208 = vmatpush1.msra.mxu0 0.0
        %1209 = vmatprep.subr.mxu0 0.0
        %1210 = vmatpush1.msra.mxu0 0.0
        %1211 = vmatprep.subr.mxu0 0.0
        %1212 = vmatpush1.msra.mxu0 0.0
        %1213 = vmatprep.subr.mxu0 0.0
        %1214 = vmatpush1.msra.mxu0 0.0
        %1215 = vmatprep.subr.mxu0 0.0
        %1216 = vmatpush1.msra.mxu0 0.0
        %1217 = vmatprep.subr.mxu0 0.0
        %1218 = vmatpush1.msra.mxu0 0.0
        %1219 = vmatprep.subr.mxu0 0.0
        %1220 = vmatpush1.msra.mxu0 0.0
        %1221 = vmatprep.subr.mxu0 0.0
        %1222 = vmatpush1.msra.mxu0 0.0
        %1223 = vmatprep.subr.mxu0 0.0
        %1224 = vmatpush1.msra.mxu0 0.0
        %1225 = vmatprep.subr.mxu0 0.0
        %1226 = vmatpush1.msra.mxu0 0.0
        %1227 = vmatprep.subr.mxu0 0.0
        %1228 = vmatpush1.msra.mxu0 0.0
        %1229 = vmatprep.subr.mxu0 0.0
        %1230 = vmatpush1.msra.mxu0 0.0
        %1231 = vmatprep.subr.mxu0 0.0
        %1232 = vmatpush1.msra.mxu0 0.0
        %1233 = vmatprep.subr.mxu0 0.0
        %1234 = vmatpush1.msra.mxu0 0.0
        %1235 = vmatprep.subr.mxu0 0.0
        %1236 = vmatpush1.msra.mxu0 0.0
        %1237 = vmatprep.subr.mxu0 0.0
        %1238 = vmatpush1.msra.mxu0 0.0
        %1239 = vmatprep.subr.mxu0 0.0
        %1240 = vmatpush1.msra.mxu0 0.0
        %1241 = vmatprep.subr.mxu0 0.0
        %1242 = vmatpush1.msra.mxu0 0.0
        %1243 = vmatprep.subr.mxu0 0.0
        %1244 = vmatpush1.msra.mxu0 0.0
        %1245 = vmatprep.subr.mxu0 0.0
        %1246 = vmatpush1.msra.mxu0 0.0
        %1247 = vmatprep.subr.mxu0 0.0
        %1248 = vmatpush1.msra.mxu0 0.0
        %1249 = vmatprep.subr.mxu0 0.0
        %1250 = vmatpush1.msra.mxu0 0.0
        %1251 = vmatprep.subr.mxu0 0.0
        %1252 = vmatpush1.msra.mxu0 0.0
        %1253 = vmatprep.subr.mxu0 0.0
        %1254 = vmatpush1.msra.mxu0 0.0
        %1255 = vmatprep.subr.mxu0 0.0
        %1256 = vmatpush1.msra.mxu0 0.0
        %1257 = vmatprep.subr.mxu0 0.0
        %1258 = vmatpush1.msra.mxu0 0.0
        %1259 = vmatprep.subr.mxu0 0.0
        %1260 = vmatpush1.msra.mxu0 0.0
        %1261 = vmatprep.subr.mxu0 0.0
        %1262 = vmatpush1.msra.mxu0 0.0
        %1263 = vmatprep.mubr.f32.mxu0 0.0
        %1264 = vmatmul.mubr.f32.gmra.mrb[0].mxu0 %v1044
        %v1265 = vpop.f32.mrb[0].mxu0
        %v1266 = vadd.f32 0.0, %v1265
        %v1267 = vpop.f32.mrb[0].mxu0
        %1268 = vmatprep.mubr.f32.mxu0 0.0
        %1269 = vmatmul.mubr.f32.gmra.mrb[0].mxu0 %v1047
        %v1270 = vpop.f32.mrb[0].mxu0
        %v1271 = vadd.f32 0.0, %v1270
        %v1272 = vpop.f32.mrb[0].mxu0
        %1273 = vdwg.mxu0
        %1274 = vmatprep.subr.mxu0 0.0
        %1275 = vmatpush1.msra.mxu0 %v1023
        %1276 = vmatprep.subr.mxu0 0.0
        %1277 = vmatpush1.msra.mxu0 %v1024
        %1278 = vmatprep.subr.mxu0 0.0
        %1279 = vmatpush1.msra.mxu0 %v1025
        %1280 = vmatprep.subr.mxu0 0.0
        %1281 = vmatpush1.msra.mxu0 %v1026
        %1282 = vmatprep.subr.mxu0 0.0
        %1283 = vmatpush1.msra.mxu0 0.0
        %1284 = vmatprep.subr.mxu0 0.0
        %1285 = vmatpush1.msra.mxu0 0.0
        %1286 = vmatprep.subr.mxu0 0.0
        %1287 = vmatpush1.msra.mxu0 0.0
        %1288 = vmatprep.subr.mxu0 0.0
        %1289 = vmatpush1.msra.mxu0 0.0
        %1290 = vmatprep.subr.mxu0 0.0
        %1291 = vmatpush1.msra.mxu0 0.0
        %1292 = vmatprep.subr.mxu0 0.0
        %1293 = vmatpush1.msra.mxu0 0.0
        %1294 = vmatprep.subr.mxu0 0.0
        %1295 = vmatpush1.msra.mxu0 0.0
        %1296 = vmatprep.subr.mxu0 0.0
        %1297 = vmatpush1.msra.mxu0 0.0
        %1298 = vmatprep.subr.mxu0 0.0
        %1299 = vmatpush1.msra.mxu0 0.0
        %1300 = vmatprep.subr.mxu0 0.0
        %1301 = vmatpush1.msra.mxu0 0.0
        %1302 = vmatprep.subr.mxu0 0.0
        %1303 = vmatpush1.msra.mxu0 0.0
        %1304 = vmatprep.subr.mxu0 0.0
        %1305 = vmatpush1.msra.mxu0 0.0
        %1306 = vmatprep.subr.mxu0 0.0
        %1307 = vmatpush1.msra.mxu0 0.0
        %1308 = vmatprep.subr.mxu0 0.0
        %1309 = vmatpush1.msra.mxu0 0.0
        %1310 = vmatprep.subr.mxu0 0.0
        %1311 = vmatpush1.msra.mxu0 0.0
        %1312 = vmatprep.subr.mxu0 0.0
        %1313 = vmatpush1.msra.mxu0 0.0
        %1314 = vmatprep.subr.mxu0 0.0
        %1315 = vmatpush1.msra.mxu0 0.0
        %1316 = vmatprep.subr.mxu0 0.0
        %1317 = vmatpush1.msra.mxu0 0.0
        %1318 = vmatprep.subr.mxu0 0.0
        %1319 = vmatpush1.msra.mxu0 0.0
        %1320 = vmatprep.subr.mxu0 0.0
        %1321 = vmatpush1.msra.mxu0 0.0
        %1322 = vmatprep.subr.mxu0 0.0
        %1323 = vmatpush1.msra.mxu0 0.0
        %1324 = vmatprep.subr.mxu0 0.0
        %1325 = vmatpush1.msra.mxu0 0.0
        %1326 = vmatprep.subr.mxu0 0.0
        %1327 = vmatpush1.msra.mxu0 0.0
        %1328 = vmatprep.subr.mxu0 0.0
        %1329 = vmatpush1.msra.mxu0 0.0
        %1330 = vmatprep.subr.mxu0 0.0
        %1331 = vmatpush1.msra.mxu0 0.0
        %1332 = vmatprep.subr.mxu0 0.0
        %1333 = vmatpush1.msra.mxu0 0.0
        %1334 = vmatprep.subr.mxu0 0.0
        %1335 = vmatpush1.msra.mxu0 0.0
        %1336 = vmatprep.subr.mxu0 0.0
        %1337 = vmatpush1.msra.mxu0 0.0
        %1338 = vmatprep.mubr.f32.mxu0 0.0
        %1339 = vmatmul.mubr.f32.gmra.mrb[0].mxu0 %v1044
        %v1340 = vpop.f32.mrb[0].mxu0
        %v1341 = vadd.f32 0.0, %v1340
        %v1342 = vpop.f32.mrb[0].mxu0
        %1343 = vmatprep.mubr.f32.mxu0 0.0
        %1344 = vmatmul.mubr.f32.gmra.mrb[0].mxu0 %v1047
        %v1345 = vpop.f32.mrb[0].mxu0
        %v1346 = vadd.f32 0.0, %v1345
        %v1347 = vpop.f32.mrb[0].mxu0
        %1348 = vdwg.mxu0
        %1349 = vmatprep.subr.mxu0 0.0
        %1350 = vmatpush1.msra.mxu0 %v1027
        %1351 = vmatprep.subr.mxu0 0.0
        %1352 = vmatpush1.msra.mxu0 %v1028
        %1353 = vmatprep.subr.mxu0 0.0
        %1354 = vmatpush1.msra.mxu0 %v1029
        %1355 = vmatprep.subr.mxu0 0.0
        %1356 = vmatpush1.msra.mxu0 %v1030
        %1357 = vmatprep.subr.mxu0 0.0
        %1358 = vmatpush1.msra.mxu0 0.0
        %1359 = vmatprep.subr.mxu0 0.0
        %1360 = vmatpush1.msra.mxu0 0.0
        %1361 = vmatprep.subr.mxu0 0.0
        %1362 = vmatpush1.msra.mxu0 0.0
        %1363 = vmatprep.subr.mxu0 0.0
        %1364 = vmatpush1.msra.mxu0 0.0
        %1365 = vmatprep.subr.mxu0 0.0
        %1366 = vmatpush1.msra.mxu0 0.0
        %1367 = vmatprep.subr.mxu0 0.0
        %1368 = vmatpush1.msra.mxu0 0.0
        %1369 = vmatprep.subr.mxu0 0.0
        %1370 = vmatpush1.msra.mxu0 0.0
        %1371 = vmatprep.subr.mxu0 0.0
        %1372 = vmatpush1.msra.mxu0 0.0
        %1373 = vmatprep.subr.mxu0 0.0
        %1374 = vmatpush1.msra.mxu0 0.0
        %1375 = vmatprep.subr.mxu0 0.0
        %1376 = vmatpush1.msra.mxu0 0.0
        %1377 = vmatprep.subr.mxu0 0.0
        %1378 = vmatpush1.msra.mxu0 0.0
        %1379 = vmatprep.subr.mxu0 0.0
        %1380 = vmatpush1.msra.mxu0 0.0
        %1381 = vmatprep.subr.mxu0 0.0
        %1382 = vmatpush1.msra.mxu0 0.0
        %1383 = vmatprep.subr.mxu0 0.0
        %1384 = vmatpush1.msra.mxu0 0.0
        %1385 = vmatprep.subr.mxu0 0.0
        %1386 = vmatpush1.msra.mxu0 0.0
        %1387 = vmatprep.subr.mxu0 0.0
        %1388 = vmatpush1.msra.mxu0 0.0
        %1389 = vmatprep.subr.mxu0 0.0
        %1390 = vmatpush1.msra.mxu0 0.0
        %1391 = vmatprep.subr.mxu0 0.0
        %1392 = vmatpush1.msra.mxu0 0.0
        %1393 = vmatprep.subr.mxu0 0.0
        %1394 = vmatpush1.msra.mxu0 0.0
        %1395 = vmatprep.subr.mxu0 0.0
        %1396 = vmatpush1.msra.mxu0 0.0
        %1397 = vmatprep.subr.mxu0 0.0
        %1398 = vmatpush1.msra.mxu0 0.0
        %1399 = vmatprep.subr.mxu0 0.0
        %1400 = vmatpush1.msra.mxu0 0.0
        %1401 = vmatprep.subr.mxu0 0.0
        %1402 = vmatpush1.msra.mxu0 0.0
        %1403 = vmatprep.subr.mxu0 0.0
        %1404 = vmatpush1.msra.mxu0 0.0
        %1405 = vmatprep.subr.mxu0 0.0
        %1406 = vmatpush1.msra.mxu0 0.0
        %1407 = vmatprep.subr.mxu0 0.0
        %1408 = vmatpush1.msra.mxu0 0.0
        %1409 = vmatprep.subr.mxu0 0.0
        %1410 = vmatpush1.msra.mxu0 0.0
        %1411 = vmatprep.subr.mxu0 0.0
        %1412 = vmatpush1.msra.mxu0 0.0
        %1413 = vmatprep.mubr.f32.mxu0 0.0
        %1414 = vmatmul.mubr.f32.gmra.mrb[0].mxu0 %v1044
        %v1415 = vpop.f32.mrb[0].mxu0
        %v1416 = vadd.f32 0.0, %v1415
        %v1417 = vpop.f32.mrb[0].mxu0
        %1418 = vmatprep.mubr.f32.mxu0 0.0
        %1419 = vmatmul.mubr.f32.gmra.mrb[0].mxu0 %v1047
        %v1420 = vpop.f32.mrb[0].mxu0
        %v1421 = vadd.f32 0.0, %v1420
        %v1422 = vpop.f32.mrb[0].mxu0
        %1423 = vdwg.mxu0
        %1424 = vmatprep.subr.mxu0 0.0
        %1425 = vmatpush1.msra.mxu0 %v1031
        %1426 = vmatprep.subr.mxu0 0.0
        %1427 = vmatpush1.msra.mxu0 %v1032
        %1428 = vmatprep.subr.mxu0 0.0
        %1429 = vmatpush1.msra.mxu0 %v1033
        %1430 = vmatprep.subr.mxu0 0.0
        %1431 = vmatpush1.msra.mxu0 %v1034
        %1432 = vmatprep.subr.mxu0 0.0
        %1433 = vmatpush1.msra.mxu0 0.0
        %1434 = vmatprep.subr.mxu0 0.0
        %1435 = vmatpush1.msra.mxu0 0.0
        %1436 = vmatprep.subr.mxu0 0.0
        %1437 = vmatpush1.msra.mxu0 0.0
        %1438 = vmatprep.subr.mxu0 0.0
        %1439 = vmatpush1.msra.mxu0 0.0
        %1440 = vmatprep.subr.mxu0 0.0
        %1441 = vmatpush1.msra.mxu0 0.0
        %1442 = vmatprep.subr.mxu0 0.0
        %1443 = vmatpush1.msra.mxu0 0.0
        %1444 = vmatprep.subr.mxu0 0.0
        %1445 = vmatpush1.msra.mxu0 0.0
        %1446 = vmatprep.subr.mxu0 0.0
        %1447 = vmatpush1.msra.mxu0 0.0
        %1448 = vmatprep.subr.mxu0 0.0
        %1449 = vmatpush1.msra.mxu0 0.0
        %1450 = vmatprep.subr.mxu0 0.0
        %1451 = vmatpush1.msra.mxu0 0.0
        %1452 = vmatprep.subr.mxu0 0.0
        %1453 = vmatpush1.msra.mxu0 0.0
        %1454 = vmatprep.subr.mxu0 0.0
        %1455 = vmatpush1.msra.mxu0 0.0
        %1456 = vmatprep.subr.mxu0 0.0
        %1457 = vmatpush1.msra.mxu0 0.0
        %1458 = vmatprep.subr.mxu0 0.0
        %1459 = vmatpush1.msra.mxu0 0.0
        %1460 = vmatprep.subr.mxu0 0.0
        %1461 = vmatpush1.msra.mxu0 0.0
        %1462 = vmatprep.subr.mxu0 0.0
        %1463 = vmatpush1.msra.mxu0 0.0
        %1464 = vmatprep.subr.mxu0 0.0
        %1465 = vmatpush1.msra.mxu0 0.0
        %1466 = vmatprep.subr.mxu0 0.0
        %1467 = vmatpush1.msra.mxu0 0.0
        %1468 = vmatprep.subr.mxu0 0.0
        %1469 = vmatpush1.msra.mxu0 0.0
        %1470 = vmatprep.subr.mxu0 0.0
        %1471 = vmatpush1.msra.mxu0 0.0
        %1472 = vmatprep.subr.mxu0 0.0
        %1473 = vmatpush1.msra.mxu0 0.0
        %1474 = vmatprep.subr.mxu0 0.0
        %1475 = vmatpush1.msra.mxu0 0.0
        %1476 = vmatprep.subr.mxu0 0.0
        %1477 = vmatpush1.msra.mxu0 0.0
        %1478 = vmatprep.subr.mxu0 0.0
        %1479 = vmatpush1.msra.mxu0 0.0
        %1480 = vmatprep.subr.mxu0 0.0
        %1481 = vmatpush1.msra.mxu0 0.0
        %1482 = vmatprep.subr.mxu0 0.0
        %1483 = vmatpush1.msra.mxu0 0.0
        %1484 = vmatprep.subr.mxu0 0.0
        %1485 = vmatpush1.msra.mxu0 0.0
        %1486 = vmatprep.subr.mxu0 0.0
        %1487 = vmatpush1.msra.mxu0 0.0
        %1488 = vmatprep.mubr.f32.mxu0 0.0
        %1489 = vmatmul.mubr.f32.gmra.mrb[0].mxu0 %v1044
        %v1490 = vpop.f32.mrb[0].mxu0
        %v1491 = vadd.f32 0.0, %v1490
        %v1492 = vpop.f32.mrb[0].mxu0
        %1493 = vmatprep.mubr.f32.mxu0 0.0
        %1494 = vmatmul.mubr.f32.gmra.mrb[0].mxu0 %v1047
        %v1495 = vpop.f32.mrb[0].mxu0
        %v1496 = vadd.f32 0.0, %v1495
        %v1497 = vpop.f32.mrb[0].mxu0
        %1498 = vdwg.mxu0
        %1499 = vmatprep.subr.mxu0 0.0
        %1500 = vmatpush1.msra.mxu0 %v1035
        %1501 = vmatprep.subr.mxu0 0.0
        %1502 = vmatpush1.msra.mxu0 %v1036
        %1503 = vmatprep.subr.mxu0 0.0
        %1504 = vmatpush1.msra.mxu0 %v1037
        %1505 = vmatprep.subr.mxu0 0.0
        %1506 = vmatpush1.msra.mxu0 %v1038
        %1507 = vmatprep.subr.mxu0 0.0
        %1508 = vmatpush1.msra.mxu0 0.0
        %1509 = vmatprep.subr.mxu0 0.0
        %1510 = vmatpush1.msra.mxu0 0.0
        %1511 = vmatprep.subr.mxu0 0.0
        %1512 = vmatpush1.msra.mxu0 0.0
        %1513 = vmatprep.subr.mxu0 0.0
        %1514 = vmatpush1.msra.mxu0 0.0
        %1515 = vmatprep.subr.mxu0 0.0
        %1516 = vmatpush1.msra.mxu0 0.0
        %1517 = vmatprep.subr.mxu0 0.0
        %1518 = vmatpush1.msra.mxu0 0.0
        %1519 = vmatprep.subr.mxu0 0.0
        %1520 = vmatpush1.msra.mxu0 0.0
        %1521 = vmatprep.subr.mxu0 0.0
        %1522 = vmatpush1.msra.mxu0 0.0
        %1523 = vmatprep.subr.mxu0 0.0
        %1524 = vmatpush1.msra.mxu0 0.0
        %1525 = vmatprep.subr.mxu0 0.0
        %1526 = vmatpush1.msra.mxu0 0.0
        %1527 = vmatprep.subr.mxu0 0.0
        %1528 = vmatpush1.msra.mxu0 0.0
        %1529 = vmatprep.subr.mxu0 0.0
        %1530 = vmatpush1.msra.mxu0 0.0
        %1531 = vmatprep.subr.mxu0 0.0
        %1532 = vmatpush1.msra.mxu0 0.0
        %1533 = vmatprep.subr.mxu0 0.0
        %1534 = vmatpush1.msra.mxu0 0.0
        %1535 = vmatprep.subr.mxu0 0.0
        %1536 = vmatpush1.msra.mxu0 0.0
        %1537 = vmatprep.subr.mxu0 0.0
        %1538 = vmatpush1.msra.mxu0 0.0
        %1539 = vmatprep.subr.mxu0 0.0
        %1540 = vmatpush1.msra.mxu0 0.0
        %1541 = vmatprep.subr.mxu0 0.0
        %1542 = vmatpush1.msra.mxu0 0.0
        %1543 = vmatprep.subr.mxu0 0.0
        %1544 = vmatpush1.msra.mxu0 0.0
        %1545 = vmatprep.subr.mxu0 0.0
        %1546 = vmatpush1.msra.mxu0 0.0
        %1547 = vmatprep.subr.mxu0 0.0
        %1548 = vmatpush1.msra.mxu0 0.0
        %1549 = vmatprep.subr.mxu0 0.0
        %1550 = vmatpush1.msra.mxu0 0.0
        %1551 = vmatprep.subr.mxu0 0.0
        %1552 = vmatpush1.msra.mxu0 0.0
        %1553 = vmatprep.subr.mxu0 0.0
        %1554 = vmatpush1.msra.mxu0 0.0
        %1555 = vmatprep.subr.mxu0 0.0
        %1556 = vmatpush1.msra.mxu0 0.0
        %1557 = vmatprep.subr.mxu0 0.0
        %1558 = vmatpush1.msra.mxu0 0.0
        %1559 = vmatprep.subr.mxu0 0.0
        %1560 = vmatpush1.msra.mxu0 0.0
        %1561 = vmatprep.subr.mxu0 0.0
        %1562 = vmatpush1.msra.mxu0 0.0
        %1563 = vmatprep.mubr.f32.mxu0 0.0
        %1564 = vmatmul.mubr.f32.gmra.mrb[0].mxu0 %v1044
        %v1565 = vpop.f32.mrb[0].mxu0
        %v1566 = vadd.f32 0.0, %v1565
        %v1567 = vpop.f32.mrb[0].mxu0
        %1568 = vmatprep.mubr.f32.mxu0 0.0
        %1569 = vmatmul.mubr.f32.gmra.mrb[0].mxu0 %v1047
        %v1570 = vpop.f32.mrb[0].mxu0
        %v1571 = vadd.f32 0.0, %v1570
        %v1572 = vpop.f32.mrb[0].mxu0
        %1573 = vdwg.mxu0
        %1574 = vmatprep.subr.mxu0 0.0
        %1575 = vmatpush1.msra.mxu0 %v1039
        %1576 = vmatprep.subr.mxu0 0.0
        %1577 = vmatpush1.msra.mxu0 %v1040
        %1578 = vmatprep.subr.mxu0 0.0
        %1579 = vmatpush1.msra.mxu0 %v1041
        %1580 = vmatprep.subr.mxu0 0.0
        %1581 = vmatpush1.msra.mxu0 %v1042
        %1582 = vmatprep.subr.mxu0 0.0
        %1583 = vmatpush1.msra.mxu0 0.0
        %1584 = vmatprep.subr.mxu0 0.0
        %1585 = vmatpush1.msra.mxu0 0.0
        %1586 = vmatprep.subr.mxu0 0.0
        %1587 = vmatpush1.msra.mxu0 0.0
        %1588 = vmatprep.subr.mxu0 0.0
        %1589 = vmatpush1.msra.mxu0 0.0
        %1590 = vmatprep.subr.mxu0 0.0
        %1591 = vmatpush1.msra.mxu0 0.0
        %1592 = vmatprep.subr.mxu0 0.0
        %1593 = vmatpush1.msra.mxu0 0.0
        %1594 = vmatprep.subr.mxu0 0.0
        %1595 = vmatpush1.msra.mxu0 0.0
        %1596 = vmatprep.subr.mxu0 0.0
        %1597 = vmatpush1.msra.mxu0 0.0
        %1598 = vmatprep.subr.mxu0 0.0
        %1599 = vmatpush1.msra.mxu0 0.0
        %1600 = vmatprep.subr.mxu0 0.0
        %1601 = vmatpush1.msra.mxu0 0.0
        %1602 = vmatprep.subr.mxu0 0.0
        %1603 = vmatpush1.msra.mxu0 0.0
        %1604 = vmatprep.subr.mxu0 0.0
        %1605 = vmatpush1.msra.mxu0 0.0
        %1606 = vmatprep.subr.mxu0 0.0
        %1607 = vmatpush1.msra.mxu0 0.0
        %1608 = vmatprep.subr.mxu0 0.0
        %1609 = vmatpush1.msra.mxu0 0.0
        %1610 = vmatprep.subr.mxu0 0.0
        %1611 = vmatpush1.msra.mxu0 0.0
        %1612 = vmatprep.subr.mxu0 0.0
        %1613 = vmatpush1.msra.mxu0 0.0
        %1614 = vmatprep.subr.mxu0 0.0
        %1615 = vmatpush1.msra.mxu0 0.0
        %1616 = vmatprep.subr.mxu0 0.0
        %1617 = vmatpush1.msra.mxu0 0.0
        %1618 = vmatprep.subr.mxu0 0.0
        %1619 = vmatpush1.msra.mxu0 0.0
        %1620 = vmatprep.subr.mxu0 0.0
        %1621 = vmatpush1.msra.mxu0 0.0
        %1622 = vmatprep.subr.mxu0 0.0
        %1623 = vmatpush1.msra.mxu0 0.0
        %1624 = vmatprep.subr.mxu0 0.0
        %1625 = vmatpush1.msra.mxu0 0.0
        %1626 = vmatprep.subr.mxu0 0.0
        %1627 = vmatpush1.msra.mxu0 0.0
        %1628 = vmatprep.subr.mxu0 0.0
        %1629 = vmatpush1.msra.mxu0 0.0
        %1630 = vmatprep.subr.mxu0 0.0
        %1631 = vmatpush1.msra.mxu0 0.0
        %1632 = vmatprep.subr.mxu0 0.0
        %1633 = vmatpush1.msra.mxu0 0.0
        %1634 = vmatprep.subr.mxu0 0.0
        %1635 = vmatpush1.msra.mxu0 0.0
        %1636 = vmatprep.subr.mxu0 0.0
        %1637 = vmatpush1.msra.mxu0 0.0
        %1638 = vmatprep.mubr.f32.mxu0 0.0
        %1639 = vmatmul.mubr.f32.gmra.mrb[0].mxu0 %v1044
        %v1640 = vpop.f32.mrb[0].mxu0
        %v1641 = vadd.f32 0.0, %v1640
        %v1642 = vpop.f32.mrb[0].mxu0
        %1643 = vmatprep.mubr.f32.mxu0 0.0
        %1644 = vmatmul.mubr.f32.gmra.mrb[0].mxu0 %v1047
        %v1645 = vpop.f32.mrb[0].mxu0
        %v1646 = vadd.f32 0.0, %v1645
        %v1647 = vpop.f32.mrb[0].mxu0
        %1648 = vdwg.mxu0
        %v1649 = vld [vmem:[%s6] sm:$0xff]
        %v1650 = vld [vmem:[%s6 + $0x8] sm:$0xff]
        %v1651 = vld [vmem:[%s6 + $0x10] sm:$0xff]
        %v1652 = vld [vmem:[%s6 + $0x18] sm:$0xff]
        %v1653 = vld [vmem:[%s6 + $0x20] sm:$0xff]
        %v1654 = vld [vmem:[%s6 + $0x28] sm:$0xff]
        %v1655 = vld [vmem:[%s6 + $0x30] sm:$0xff]
        %v1656 = vld [vmem:[%s6 + $0x38] sm:$0xff]
        %v1657 = vld [vmem:[%s6 + $0x40] sm:$0xff]
        %v1658 = vld [vmem:[%s6 + $0x48] sm:$0xff]
        %v1659 = vld [vmem:[%s6 + $0x50] sm:$0xff]
        %v1660 = vld [vmem:[%s6 + $0x58] sm:$0xff]
        %v1661 = vld [vmem:[%s6 + $0x60] sm:$0xff]
        %v1662 = vld [vmem:[%s6 + $0x68] sm:$0xff]
        %v1663 = vld [vmem:[%s6 + $0x70] sm:$0xff]
        %v1664 = vld [vmem:[%s6 + $0x78] sm:$0xff]
        %v1665 = vld [vmem:[%s6 + $0x80] sm:$0xff]
        %v1666 = vld [vmem:[%s6 + $0x88] sm:$0xff]
        %v1667 = vld [vmem:[%s6 + $0x90] sm:$0xff]
        %v1668 = vld [vmem:[%s6 + $0x98] sm:$0xff]
        %v1669 = vld [vmem:[%s6 + $0xa0] sm:$0xff]
        %v1670 = vld [vmem:[%s6 + $0xa8] sm:$0xff]
        %v1671 = vld [vmem:[%s6 + $0xb0] sm:$0xff]
        %v1672 = vld [vmem:[%s6 + $0xb8] sm:$0xff]
        %v1673 = vld [vmem:[%s6 + $0xc0] sm:$0xff]
        %v1674 = vld [vmem:[%s6 + $0xc8] sm:$0xff]
        %v1675 = vld [vmem:[%s6 + $0xd0] sm:$0xff]
        %v1676 = vld [vmem:[%s6 + $0xd8] sm:$0xff]
        %v1677 = vld [vmem:[%s6 + $0xe0] sm:$0xff]
        %v1678 = vld [vmem:[%s6 + $0xe8] sm:$0xff]
        %v1679 = vld [vmem:[%s6 + $0xf0] sm:$0xff]
        %v1680 = vld [vmem:[%s6 + $0xf8] sm:$0xff]
        %v1682 = vsel %vm447, %v410, 0
        %v1685 = vsel %vm447, %v411, 0
        %1687 = vmatprep.subr.mxu0 0.0
        %1688 = vmatpush1.msra.mxu0 %v1649
        %1689 = vmatprep.subr.mxu0 0.0
        %1690 = vmatpush1.msra.mxu0 %v1650
        %1691 = vmatprep.subr.mxu0 0.0
        %1692 = vmatpush1.msra.mxu0 %v1651
        %1693 = vmatprep.subr.mxu0 0.0
        %1694 = vmatpush1.msra.mxu0 %v1652
        %1695 = vmatprep.subr.mxu0 0.0
        %1696 = vmatpush1.msra.mxu0 0.0
        %1697 = vmatprep.subr.mxu0 0.0
        %1698 = vmatpush1.msra.mxu0 0.0
        %1699 = vmatprep.subr.mxu0 0.0
        %1700 = vmatpush1.msra.mxu0 0.0
        %1701 = vmatprep.subr.mxu0 0.0
        %1702 = vmatpush1.msra.mxu0 0.0
        %1703 = vmatprep.subr.mxu0 0.0
        %1704 = vmatpush1.msra.mxu0 0.0
        %1705 = vmatprep.subr.mxu0 0.0
        %1706 = vmatpush1.msra.mxu0 0.0
        %1707 = vmatprep.subr.mxu0 0.0
        %1708 = vmatpush1.msra.mxu0 0.0
        %1709 = vmatprep.subr.mxu0 0.0
        %1710 = vmatpush1.msra.mxu0 0.0
        %1711 = vmatprep.subr.mxu0 0.0
        %1712 = vmatpush1.msra.mxu0 0.0
        %1713 = vmatprep.subr.mxu0 0.0
        %1714 = vmatpush1.msra.mxu0 0.0
        %1715 = vmatprep.subr.mxu0 0.0
        %1716 = vmatpush1.msra.mxu0 0.0
        %1717 = vmatprep.subr.mxu0 0.0
        %1718 = vmatpush1.msra.mxu0 0.0
        %1719 = vmatprep.subr.mxu0 0.0
        %1720 = vmatpush1.msra.mxu0 0.0
        %1721 = vmatprep.subr.mxu0 0.0
        %1722 = vmatpush1.msra.mxu0 0.0
        %1723 = vmatprep.subr.mxu0 0.0
        %1724 = vmatpush1.msra.mxu0 0.0
        %1725 = vmatprep.subr.mxu0 0.0
        %1726 = vmatpush1.msra.mxu0 0.0
        %1727 = vmatprep.subr.mxu0 0.0
        %1728 = vmatpush1.msra.mxu0 0.0
        %1729 = vmatprep.subr.mxu0 0.0
        %1730 = vmatpush1.msra.mxu0 0.0
        %1731 = vmatprep.subr.mxu0 0.0
        %1732 = vmatpush1.msra.mxu0 0.0
        %1733 = vmatprep.subr.mxu0 0.0
        %1734 = vmatpush1.msra.mxu0 0.0
        %1735 = vmatprep.subr.mxu0 0.0
        %1736 = vmatpush1.msra.mxu0 0.0
        %1737 = vmatprep.subr.mxu0 0.0
        %1738 = vmatpush1.msra.mxu0 0.0
        %1739 = vmatprep.subr.mxu0 0.0
        %1740 = vmatpush1.msra.mxu0 0.0
        %1741 = vmatprep.subr.mxu0 0.0
        %1742 = vmatpush1.msra.mxu0 0.0
        %1743 = vmatprep.subr.mxu0 0.0
        %1744 = vmatpush1.msra.mxu0 0.0
        %1745 = vmatprep.subr.mxu0 0.0
        %1746 = vmatpush1.msra.mxu0 0.0
        %1747 = vmatprep.subr.mxu0 0.0
        %1748 = vmatpush1.msra.mxu0 0.0
        %1749 = vmatprep.subr.mxu0 0.0
        %1750 = vmatpush1.msra.mxu0 0.0
        %1751 = vmatprep.mubr.f32.mxu0 0.0
        %1752 = vmatmul.mubr.f32.gmra.mrb[0].mxu0 %v1682
        %v1753 = vpop.f32.mrb[0].mxu0
        %v1754 = vadd.f32 0.0, %v1753
        %v1755 = vpop.f32.mrb[0].mxu0
        %1756 = vmatprep.mubr.f32.mxu0 0.0
        %1757 = vmatmul.mubr.f32.gmra.mrb[0].mxu0 %v1685
        %v1758 = vpop.f32.mrb[0].mxu0
        %v1759 = vadd.f32 0.0, %v1758
        %v1760 = vpop.f32.mrb[0].mxu0
        %1761 = vdwg.mxu0
        %1762 = vmatprep.subr.mxu0 0.0
        %1763 = vmatpush1.msra.mxu0 %v1653
        %1764 = vmatprep.subr.mxu0 0.0
        %1765 = vmatpush1.msra.mxu0 %v1654
        %1766 = vmatprep.subr.mxu0 0.0
        %1767 = vmatpush1.msra.mxu0 %v1655
        %1768 = vmatprep.subr.mxu0 0.0
        %1769 = vmatpush1.msra.mxu0 %v1656
        %1770 = vmatprep.subr.mxu0 0.0
        %1771 = vmatpush1.msra.mxu0 0.0
        %1772 = vmatprep.subr.mxu0 0.0
        %1773 = vmatpush1.msra.mxu0 0.0
        %1774 = vmatprep.subr.mxu0 0.0
        %1775 = vmatpush1.msra.mxu0 0.0
        %1776 = vmatprep.subr.mxu0 0.0
        %1777 = vmatpush1.msra.mxu0 0.0
        %1778 = vmatprep.subr.mxu0 0.0
        %1779 = vmatpush1.msra.mxu0 0.0
        %1780 = vmatprep.subr.mxu0 0.0
        %1781 = vmatpush1.msra.mxu0 0.0
        %1782 = vmatprep.subr.mxu0 0.0
        %1783 = vmatpush1.msra.mxu0 0.0
        %1784 = vmatprep.subr.mxu0 0.0
        %1785 = vmatpush1.msra.mxu0 0.0
        %1786 = vmatprep.subr.mxu0 0.0
        %1787 = vmatpush1.msra.mxu0 0.0
        %1788 = vmatprep.subr.mxu0 0.0
        %1789 = vmatpush1.msra.mxu0 0.0
        %1790 = vmatprep.subr.mxu0 0.0
        %1791 = vmatpush1.msra.mxu0 0.0
        %1792 = vmatprep.subr.mxu0 0.0
        %1793 = vmatpush1.msra.mxu0 0.0
        %1794 = vmatprep.subr.mxu0 0.0
        %1795 = vmatpush1.msra.mxu0 0.0
        %1796 = vmatprep.subr.mxu0 0.0
        %1797 = vmatpush1.msra.mxu0 0.0
        %1798 = vmatprep.subr.mxu0 0.0
        %1799 = vmatpush1.msra.mxu0 0.0
        %1800 = vmatprep.subr.mxu0 0.0
        %1801 = vmatpush1.msra.mxu0 0.0
        %1802 = vmatprep.subr.mxu0 0.0
        %1803 = vmatpush1.msra.mxu0 0.0
        %1804 = vmatprep.subr.mxu0 0.0
        %1805 = vmatpush1.msra.mxu0 0.0
        %1806 = vmatprep.subr.mxu0 0.0
        %1807 = vmatpush1.msra.mxu0 0.0
        %1808 = vmatprep.subr.mxu0 0.0
        %1809 = vmatpush1.msra.mxu0 0.0
        %1810 = vmatprep.subr.mxu0 0.0
        %1811 = vmatpush1.msra.mxu0 0.0
        %1812 = vmatprep.subr.mxu0 0.0
        %1813 = vmatpush1.msra.mxu0 0.0
        %1814 = vmatprep.subr.mxu0 0.0
        %1815 = vmatpush1.msra.mxu0 0.0
        %1816 = vmatprep.subr.mxu0 0.0
        %1817 = vmatpush1.msra.mxu0 0.0
        %1818 = vmatprep.subr.mxu0 0.0
        %1819 = vmatpush1.msra.mxu0 0.0
        %1820 = vmatprep.subr.mxu0 0.0
        %1821 = vmatpush1.msra.mxu0 0.0
        %1822 = vmatprep.subr.mxu0 0.0
        %1823 = vmatpush1.msra.mxu0 0.0
        %1824 = vmatprep.subr.mxu0 0.0
        %1825 = vmatpush1.msra.mxu0 0.0
        %1826 = vmatprep.mubr.f32.mxu0 0.0
        %1827 = vmatmul.mubr.f32.gmra.mrb[0].mxu0 %v1682
        %v1828 = vpop.f32.mrb[0].mxu0
        %v1829 = vadd.f32 0.0, %v1828
        %v1830 = vpop.f32.mrb[0].mxu0
        %1831 = vmatprep.mubr.f32.mxu0 0.0
        %1832 = vmatmul.mubr.f32.gmra.mrb[0].mxu0 %v1685
        %v1833 = vpop.f32.mrb[0].mxu0
        %v1834 = vadd.f32 0.0, %v1833
        %v1835 = vpop.f32.mrb[0].mxu0
        %1836 = vdwg.mxu0
        %1837 = vmatprep.subr.mxu0 0.0
        %1838 = vmatpush1.msra.mxu0 %v1657
        %1839 = vmatprep.subr.mxu0 0.0
        %1840 = vmatpush1.msra.mxu0 %v1658
        %1841 = vmatprep.subr.mxu0 0.0
        %1842 = vmatpush1.msra.mxu0 %v1659
        %1843 = vmatprep.subr.mxu0 0.0
        %1844 = vmatpush1.msra.mxu0 %v1660
        %1845 = vmatprep.subr.mxu0 0.0
        %1846 = vmatpush1.msra.mxu0 0.0
        %1847 = vmatprep.subr.mxu0 0.0
        %1848 = vmatpush1.msra.mxu0 0.0
        %1849 = vmatprep.subr.mxu0 0.0
        %1850 = vmatpush1.msra.mxu0 0.0
        %1851 = vmatprep.subr.mxu0 0.0
        %1852 = vmatpush1.msra.mxu0 0.0
        %1853 = vmatprep.subr.mxu0 0.0
        %1854 = vmatpush1.msra.mxu0 0.0
        %1855 = vmatprep.subr.mxu0 0.0
        %1856 = vmatpush1.msra.mxu0 0.0
        %1857 = vmatprep.subr.mxu0 0.0
        %1858 = vmatpush1.msra.mxu0 0.0
        %1859 = vmatprep.subr.mxu0 0.0
        %1860 = vmatpush1.msra.mxu0 0.0
        %1861 = vmatprep.subr.mxu0 0.0
        %1862 = vmatpush1.msra.mxu0 0.0
        %1863 = vmatprep.subr.mxu0 0.0
        %1864 = vmatpush1.msra.mxu0 0.0
        %1865 = vmatprep.subr.mxu0 0.0
        %1866 = vmatpush1.msra.mxu0 0.0
        %1867 = vmatprep.subr.mxu0 0.0
        %1868 = vmatpush1.msra.mxu0 0.0
        %1869 = vmatprep.subr.mxu0 0.0
        %1870 = vmatpush1.msra.mxu0 0.0
        %1871 = vmatprep.subr.mxu0 0.0
        %1872 = vmatpush1.msra.mxu0 0.0
        %1873 = vmatprep.subr.mxu0 0.0
        %1874 = vmatpush1.msra.mxu0 0.0
        %1875 = vmatprep.subr.mxu0 0.0
        %1876 = vmatpush1.msra.mxu0 0.0
        %1877 = vmatprep.subr.mxu0 0.0
        %1878 = vmatpush1.msra.mxu0 0.0
        %1879 = vmatprep.subr.mxu0 0.0
        %1880 = vmatpush1.msra.mxu0 0.0
        %1881 = vmatprep.subr.mxu0 0.0
        %1882 = vmatpush1.msra.mxu0 0.0
        %1883 = vmatprep.subr.mxu0 0.0
        %1884 = vmatpush1.msra.mxu0 0.0
        %1885 = vmatprep.subr.mxu0 0.0
        %1886 = vmatpush1.msra.mxu0 0.0
        %1887 = vmatprep.subr.mxu0 0.0
        %1888 = vmatpush1.msra.mxu0 0.0
        %1889 = vmatprep.subr.mxu0 0.0
        %1890 = vmatpush1.msra.mxu0 0.0
        %1891 = vmatprep.subr.mxu0 0.0
        %1892 = vmatpush1.msra.mxu0 0.0
        %1893 = vmatprep.subr.mxu0 0.0
        %1894 = vmatpush1.msra.mxu0 0.0
        %1895 = vmatprep.subr.mxu0 0.0
        %1896 = vmatpush1.msra.mxu0 0.0
        %1897 = vmatprep.subr.mxu0 0.0
        %1898 = vmatpush1.msra.mxu0 0.0
        %1899 = vmatprep.subr.mxu0 0.0
        %1900 = vmatpush1.msra.mxu0 0.0
        %1901 = vmatprep.mubr.f32.mxu0 0.0
        %1902 = vmatmul.mubr.f32.gmra.mrb[0].mxu0 %v1682
        %v1903 = vpop.f32.mrb[0].mxu0
        %v1904 = vadd.f32 0.0, %v1903
        %v1905 = vpop.f32.mrb[0].mxu0
        %1906 = vmatprep.mubr.f32.mxu0 0.0
        %1907 = vmatmul.mubr.f32.gmra.mrb[0].mxu0 %v1685
        %v1908 = vpop.f32.mrb[0].mxu0
        %v1909 = vadd.f32 0.0, %v1908
        %v1910 = vpop.f32.mrb[0].mxu0
        %1911 = vdwg.mxu0
        %1912 = vmatprep.subr.mxu0 0.0
        %1913 = vmatpush1.msra.mxu0 %v1661
        %1914 = vmatprep.subr.mxu0 0.0
        %1915 = vmatpush1.msra.mxu0 %v1662
        %1916 = vmatprep.subr.mxu0 0.0
        %1917 = vmatpush1.msra.mxu0 %v1663
        %1918 = vmatprep.subr.mxu0 0.0
        %1919 = vmatpush1.msra.mxu0 %v1664
        %1920 = vmatprep.subr.mxu0 0.0
        %1921 = vmatpush1.msra.mxu0 0.0
        %1922 = vmatprep.subr.mxu0 0.0
        %1923 = vmatpush1.msra.mxu0 0.0
        %1924 = vmatprep.subr.mxu0 0.0
        %1925 = vmatpush1.msra.mxu0 0.0
        %1926 = vmatprep.subr.mxu0 0.0
        %1927 = vmatpush1.msra.mxu0 0.0
        %1928 = vmatprep.subr.mxu0 0.0
        %1929 = vmatpush1.msra.mxu0 0.0
        %1930 = vmatprep.subr.mxu0 0.0
        %1931 = vmatpush1.msra.mxu0 0.0
        %1932 = vmatprep.subr.mxu0 0.0
        %1933 = vmatpush1.msra.mxu0 0.0
        %1934 = vmatprep.subr.mxu0 0.0
        %1935 = vmatpush1.msra.mxu0 0.0
        %1936 = vmatprep.subr.mxu0 0.0
        %1937 = vmatpush1.msra.mxu0 0.0
        %1938 = vmatprep.subr.mxu0 0.0
        %1939 = vmatpush1.msra.mxu0 0.0
        %1940 = vmatprep.subr.mxu0 0.0
        %1941 = vmatpush1.msra.mxu0 0.0
        %1942 = vmatprep.subr.mxu0 0.0
        %1943 = vmatpush1.msra.mxu0 0.0
        %1944 = vmatprep.subr.mxu0 0.0
        %1945 = vmatpush1.msra.mxu0 0.0
        %1946 = vmatprep.subr.mxu0 0.0
        %1947 = vmatpush1.msra.mxu0 0.0
        %1948 = vmatprep.subr.mxu0 0.0
        %1949 = vmatpush1.msra.mxu0 0.0
        %1950 = vmatprep.subr.mxu0 0.0
        %1951 = vmatpush1.msra.mxu0 0.0
        %1952 = vmatprep.subr.mxu0 0.0
        %1953 = vmatpush1.msra.mxu0 0.0
        %1954 = vmatprep.subr.mxu0 0.0
        %1955 = vmatpush1.msra.mxu0 0.0
        %1956 = vmatprep.subr.mxu0 0.0
        %1957 = vmatpush1.msra.mxu0 0.0
        %1958 = vmatprep.subr.mxu0 0.0
        %1959 = vmatpush1.msra.mxu0 0.0
        %1960 = vmatprep.subr.mxu0 0.0
        %1961 = vmatpush1.msra.mxu0 0.0
        %1962 = vmatprep.subr.mxu0 0.0
        %1963 = vmatpush1.msra.mxu0 0.0
        %1964 = vmatprep.subr.mxu0 0.0
        %1965 = vmatpush1.msra.mxu0 0.0
        %1966 = vmatprep.subr.mxu0 0.0
        %1967 = vmatpush1.msra.mxu0 0.0
        %1968 = vmatprep.subr.mxu0 0.0
        %1969 = vmatpush1.msra.mxu0 0.0
        %1970 = vmatprep.subr.mxu0 0.0
        %1971 = vmatpush1.msra.mxu0 0.0
        %1972 = vmatprep.subr.mxu0 0.0
        %1973 = vmatpush1.msra.mxu0 0.0
        %1974 = vmatprep.subr.mxu0 0.0
        %1975 = vmatpush1.msra.mxu0 0.0
        %1976 = vmatprep.mubr.f32.mxu0 0.0
        %1977 = vmatmul.mubr.f32.gmra.mrb[0].mxu0 %v1682
        %v1978 = vpop.f32.mrb[0].mxu0
        %v1979 = vadd.f32 0.0, %v1978
        %v1980 = vpop.f32.mrb[0].mxu0
        %1981 = vmatprep.mubr.f32.mxu0 0.0
        %1982 = vmatmul.mubr.f32.gmra.mrb[0].mxu0 %v1685
        %v1983 = vpop.f32.mrb[0].mxu0
        %v1984 = vadd.f32 0.0, %v1983
        %v1985 = vpop.f32.mrb[0].mxu0
        %1986 = vdwg.mxu0
        %1987 = vmatprep.subr.mxu0 0.0
        %1988 = vmatpush1.msra.mxu0 %v1665
        %1989 = vmatprep.subr.mxu0 0.0
        %1990 = vmatpush1.msra.mxu0 %v1666
        %1991 = vmatprep.subr.mxu0 0.0
        %1992 = vmatpush1.msra.mxu0 %v1667
        %1993 = vmatprep.subr.mxu0 0.0
        %1994 = vmatpush1.msra.mxu0 %v1668
        %1995 = vmatprep.subr.mxu0 0.0
        %1996 = vmatpush1.msra.mxu0 0.0
        %1997 = vmatprep.subr.mxu0 0.0
        %1998 = vmatpush1.msra.mxu0 0.0
        %1999 = vmatprep.subr.mxu0 0.0
        %2000 = vmatpush1.msra.mxu0 0.0
        %2001 = vmatprep.subr.mxu0 0.0
        %2002 = vmatpush1.msra.mxu0 0.0
        %2003 = vmatprep.subr.mxu0 0.0
        %2004 = vmatpush1.msra.mxu0 0.0
        %2005 = vmatprep.subr.mxu0 0.0
        %2006 = vmatpush1.msra.mxu0 0.0
        %2007 = vmatprep.subr.mxu0 0.0
        %2008 = vmatpush1.msra.mxu0 0.0
        %2009 = vmatprep.subr.mxu0 0.0
        %2010 = vmatpush1.msra.mxu0 0.0
        %2011 = vmatprep.subr.mxu0 0.0
        %2012 = vmatpush1.msra.mxu0 0.0
        %2013 = vmatprep.subr.mxu0 0.0
        %2014 = vmatpush1.msra.mxu0 0.0
        %2015 = vmatprep.subr.mxu0 0.0
        %2016 = vmatpush1.msra.mxu0 0.0
        %2017 = vmatprep.subr.mxu0 0.0
        %2018 = vmatpush1.msra.mxu0 0.0
        %2019 = vmatprep.subr.mxu0 0.0
        %2020 = vmatpush1.msra.mxu0 0.0
        %2021 = vmatprep.subr.mxu0 0.0
        %2022 = vmatpush1.msra.mxu0 0.0
        %2023 = vmatprep.subr.mxu0 0.0
        %2024 = vmatpush1.msra.mxu0 0.0
        %2025 = vmatprep.subr.mxu0 0.0
        %2026 = vmatpush1.msra.mxu0 0.0
        %2027 = vmatprep.subr.mxu0 0.0
        %2028 = vmatpush1.msra.mxu0 0.0
        %2029 = vmatprep.subr.mxu0 0.0
        %2030 = vmatpush1.msra.mxu0 0.0
        %2031 = vmatprep.subr.mxu0 0.0
        %2032 = vmatpush1.msra.mxu0 0.0
        %2033 = vmatprep.subr.mxu0 0.0
        %2034 = vmatpush1.msra.mxu0 0.0
        %2035 = vmatprep.subr.mxu0 0.0
        %2036 = vmatpush1.msra.mxu0 0.0
        %2037 = vmatprep.subr.mxu0 0.0
        %2038 = vmatpush1.msra.mxu0 0.0
        %2039 = vmatprep.subr.mxu0 0.0
        %2040 = vmatpush1.msra.mxu0 0.0
        %2041 = vmatprep.subr.mxu0 0.0
        %2042 = vmatpush1.msra.mxu0 0.0
        %2043 = vmatprep.subr.mxu0 0.0
        %2044 = vmatpush1.msra.mxu0 0.0
        %2045 = vmatprep.subr.mxu0 0.0
        %2046 = vmatpush1.msra.mxu0 0.0
        %2047 = vmatprep.subr.mxu0 0.0
        %2048 = vmatpush1.msra.mxu0 0.0
        %2049 = vmatprep.subr.mxu0 0.0
        %2050 = vmatpush1.msra.mxu0 0.0
        %2051 = vmatprep.mubr.f32.mxu0 0.0
        %2052 = vmatmul.mubr.f32.gmra.mrb[0].mxu0 %v1682
        %v2053 = vpop.f32.mrb[0].mxu0
        %v2054 = vadd.f32 0.0, %v2053
        %v2055 = vpop.f32.mrb[0].mxu0
        %2056 = vmatprep.mubr.f32.mxu0 0.0
        %2057 = vmatmul.mubr.f32.gmra.mrb[0].mxu0 %v1685
        %v2058 = vpop.f32.mrb[0].mxu0
        %v2059 = vadd.f32 0.0, %v2058
        %v2060 = vpop.f32.mrb[0].mxu0
        %2061 = vdwg.mxu0
        %2062 = vmatprep.subr.mxu0 0.0
        %2063 = vmatpush1.msra.mxu0 %v1669
        %2064 = vmatprep.subr.mxu0 0.0
        %2065 = vmatpush1.msra.mxu0 %v1670
        %2066 = vmatprep.subr.mxu0 0.0
        %2067 = vmatpush1.msra.mxu0 %v1671
        %2068 = vmatprep.subr.mxu0 0.0
        %2069 = vmatpush1.msra.mxu0 %v1672
        %2070 = vmatprep.subr.mxu0 0.0
        %2071 = vmatpush1.msra.mxu0 0.0
        %2072 = vmatprep.subr.mxu0 0.0
        %2073 = vmatpush1.msra.mxu0 0.0
        %2074 = vmatprep.subr.mxu0 0.0
        %2075 = vmatpush1.msra.mxu0 0.0
        %2076 = vmatprep.subr.mxu0 0.0
        %2077 = vmatpush1.msra.mxu0 0.0
        %2078 = vmatprep.subr.mxu0 0.0
        %2079 = vmatpush1.msra.mxu0 0.0
        %2080 = vmatprep.subr.mxu0 0.0
        %2081 = vmatpush1.msra.mxu0 0.0
        %2082 = vmatprep.subr.mxu0 0.0
        %2083 = vmatpush1.msra.mxu0 0.0
        %2084 = vmatprep.subr.mxu0 0.0
        %2085 = vmatpush1.msra.mxu0 0.0
        %2086 = vmatprep.subr.mxu0 0.0
        %2087 = vmatpush1.msra.mxu0 0.0
        %2088 = vmatprep.subr.mxu0 0.0
        %2089 = vmatpush1.msra.mxu0 0.0
        %2090 = vmatprep.subr.mxu0 0.0
        %2091 = vmatpush1.msra.mxu0 0.0
        %2092 = vmatprep.subr.mxu0 0.0
        %2093 = vmatpush1.msra.mxu0 0.0
        %2094 = vmatprep.subr.mxu0 0.0
        %2095 = vmatpush1.msra.mxu0 0.0
        %2096 = vmatprep.subr.mxu0 0.0
        %2097 = vmatpush1.msra.mxu0 0.0
        %2098 = vmatprep.subr.mxu0 0.0
        %2099 = vmatpush1.msra.mxu0 0.0
        %2100 = vmatprep.subr.mxu0 0.0
        %2101 = vmatpush1.msra.mxu0 0.0
        %2102 = vmatprep.subr.mxu0 0.0
        %2103 = vmatpush1.msra.mxu0 0.0
        %2104 = vmatprep.subr.mxu0 0.0
        %2105 = vmatpush1.msra.mxu0 0.0
        %2106 = vmatprep.subr.mxu0 0.0
        %2107 = vmatpush1.msra.mxu0 0.0
        %2108 = vmatprep.subr.mxu0 0.0
        %2109 = vmatpush1.msra.mxu0 0.0
        %2110 = vmatprep.subr.mxu0 0.0
        %2111 = vmatpush1.msra.mxu0 0.0
        %2112 = vmatprep.subr.mxu0 0.0
        %2113 = vmatpush1.msra.mxu0 0.0
        %2114 = vmatprep.subr.mxu0 0.0
        %2115 = vmatpush1.msra.mxu0 0.0
        %2116 = vmatprep.subr.mxu0 0.0
        %2117 = vmatpush1.msra.mxu0 0.0
        %2118 = vmatprep.subr.mxu0 0.0
        %2119 = vmatpush1.msra.mxu0 0.0
        %2120 = vmatprep.subr.mxu0 0.0
        %2121 = vmatpush1.msra.mxu0 0.0
        %2122 = vmatprep.subr.mxu0 0.0
        %2123 = vmatpush1.msra.mxu0 0.0
        %2124 = vmatprep.subr.mxu0 0.0
        %2125 = vmatpush1.msra.mxu0 0.0
        %2126 = vmatprep.mubr.f32.mxu0 0.0
        %2127 = vmatmul.mubr.f32.gmra.mrb[0].mxu0 %v1682
        %v2128 = vpop.f32.mrb[0].mxu0
        %v2129 = vadd.f32 0.0, %v2128
        %v2130 = vpop.f32.mrb[0].mxu0
        %2131 = vmatprep.mubr.f32.mxu0 0.0
        %2132 = vmatmul.mubr.f32.gmra.mrb[0].mxu0 %v1685
        %v2133 = vpop.f32.mrb[0].mxu0
        %v2134 = vadd.f32 0.0, %v2133
        %v2135 = vpop.f32.mrb[0].mxu0
        %2136 = vdwg.mxu0
        %2137 = vmatprep.subr.mxu0 0.0
        %2138 = vmatpush1.msra.mxu0 %v1673
        %2139 = vmatprep.subr.mxu0 0.0
        %2140 = vmatpush1.msra.mxu0 %v1674
        %2141 = vmatprep.subr.mxu0 0.0
        %2142 = vmatpush1.msra.mxu0 %v1675
        %2143 = vmatprep.subr.mxu0 0.0
        %2144 = vmatpush1.msra.mxu0 %v1676
        %2145 = vmatprep.subr.mxu0 0.0
        %2146 = vmatpush1.msra.mxu0 0.0
        %2147 = vmatprep.subr.mxu0 0.0
        %2148 = vmatpush1.msra.mxu0 0.0
        %2149 = vmatprep.subr.mxu0 0.0
        %2150 = vmatpush1.msra.mxu0 0.0
        %2151 = vmatprep.subr.mxu0 0.0
        %2152 = vmatpush1.msra.mxu0 0.0
        %2153 = vmatprep.subr.mxu0 0.0
        %2154 = vmatpush1.msra.mxu0 0.0
        %2155 = vmatprep.subr.mxu0 0.0
        %2156 = vmatpush1.msra.mxu0 0.0
        %2157 = vmatprep.subr.mxu0 0.0
        %2158 = vmatpush1.msra.mxu0 0.0
        %2159 = vmatprep.subr.mxu0 0.0
        %2160 = vmatpush1.msra.mxu0 0.0
        %2161 = vmatprep.subr.mxu0 0.0
        %2162 = vmatpush1.msra.mxu0 0.0
        %2163 = vmatprep.subr.mxu0 0.0
        %2164 = vmatpush1.msra.mxu0 0.0
        %2165 = vmatprep.subr.mxu0 0.0
        %2166 = vmatpush1.msra.mxu0 0.0
        %2167 = vmatprep.subr.mxu0 0.0
        %2168 = vmatpush1.msra.mxu0 0.0
        %2169 = vmatprep.subr.mxu0 0.0
        %2170 = vmatpush1.msra.mxu0 0.0
        %2171 = vmatprep.subr.mxu0 0.0
        %2172 = vmatpush1.msra.mxu0 0.0
        %2173 = vmatprep.subr.mxu0 0.0
        %2174 = vmatpush1.msra.mxu0 0.0
        %2175 = vmatprep.subr.mxu0 0.0
        %2176 = vmatpush1.msra.mxu0 0.0
        %2177 = vmatprep.subr.mxu0 0.0
        %2178 = vmatpush1.msra.mxu0 0.0
        %2179 = vmatprep.subr.mxu0 0.0
        %2180 = vmatpush1.msra.mxu0 0.0
        %2181 = vmatprep.subr.mxu0 0.0
        %2182 = vmatpush1.msra.mxu0 0.0
        %2183 = vmatprep.subr.mxu0 0.0
        %2184 = vmatpush1.msra.mxu0 0.0
        %2185 = vmatprep.subr.mxu0 0.0
        %2186 = vmatpush1.msra.mxu0 0.0
        %2187 = vmatprep.subr.mxu0 0.0
        %2188 = vmatpush1.msra.mxu0 0.0
        %2189 = vmatprep.subr.mxu0 0.0
        %2190 = vmatpush1.msra.mxu0 0.0
        %2191 = vmatprep.subr.mxu0 0.0
        %2192 = vmatpush1.msra.mxu0 0.0
        %2193 = vmatprep.subr.mxu0 0.0
        %2194 = vmatpush1.msra.mxu0 0.0
        %2195 = vmatprep.subr.mxu0 0.0
        %2196 = vmatpush1.msra.mxu0 0.0
        %2197 = vmatprep.subr.mxu0 0.0
        %2198 = vmatpush1.msra.mxu0 0.0
        %2199 = vmatprep.subr.mxu0 0.0
        %2200 = vmatpush1.msra.mxu0 0.0
        %2201 = vmatprep.mubr.f32.mxu0 0.0
        %2202 = vmatmul.mubr.f32.gmra.mrb[0].mxu0 %v1682
        %v2203 = vpop.f32.mrb[0].mxu0
        %v2204 = vadd.f32 0.0, %v2203
        %v2205 = vpop.f32.mrb[0].mxu0
        %2206 = vmatprep.mubr.f32.mxu0 0.0
        %2207 = vmatmul.mubr.f32.gmra.mrb[0].mxu0 %v1685
        %v2208 = vpop.f32.mrb[0].mxu0
        %v2209 = vadd.f32 0.0, %v2208
        %v2210 = vpop.f32.mrb[0].mxu0
        %2211 = vdwg.mxu0
        %2212 = vmatprep.subr.mxu0 0.0
        %2213 = vmatpush1.msra.mxu0 %v1677
        %2214 = vmatprep.subr.mxu0 0.0
        %2215 = vmatpush1.msra.mxu0 %v1678
        %2216 = vmatprep.subr.mxu0 0.0
        %2217 = vmatpush1.msra.mxu0 %v1679
        %2218 = vmatprep.subr.mxu0 0.0
        %2219 = vmatpush1.msra.mxu0 %v1680
        %2220 = vmatprep.subr.mxu0 0.0
        %2221 = vmatpush1.msra.mxu0 0.0
        %2222 = vmatprep.subr.mxu0 0.0
        %2223 = vmatpush1.msra.mxu0 0.0
        %2224 = vmatprep.subr.mxu0 0.0
        %2225 = vmatpush1.msra.mxu0 0.0
        %2226 = vmatprep.subr.mxu0 0.0
        %2227 = vmatpush1.msra.mxu0 0.0
        %2228 = vmatprep.subr.mxu0 0.0
        %2229 = vmatpush1.msra.mxu0 0.0
        %2230 = vmatprep.subr.mxu0 0.0
        %2231 = vmatpush1.msra.mxu0 0.0
        %2232 = vmatprep.subr.mxu0 0.0
        %2233 = vmatpush1.msra.mxu0 0.0
        %2234 = vmatprep.subr.mxu0 0.0
        %2235 = vmatpush1.msra.mxu0 0.0
        %2236 = vmatprep.subr.mxu0 0.0
        %2237 = vmatpush1.msra.mxu0 0.0
        %2238 = vmatprep.subr.mxu0 0.0
        %2239 = vmatpush1.msra.mxu0 0.0
        %2240 = vmatprep.subr.mxu0 0.0
        %2241 = vmatpush1.msra.mxu0 0.0
        %2242 = vmatprep.subr.mxu0 0.0
        %2243 = vmatpush1.msra.mxu0 0.0
        %2244 = vmatprep.subr.mxu0 0.0
        %2245 = vmatpush1.msra.mxu0 0.0
        %2246 = vmatprep.subr.mxu0 0.0
        %2247 = vmatpush1.msra.mxu0 0.0
        %2248 = vmatprep.subr.mxu0 0.0
        %2249 = vmatpush1.msra.mxu0 0.0
        %2250 = vmatprep.subr.mxu0 0.0
        %2251 = vmatpush1.msra.mxu0 0.0
        %2252 = vmatprep.subr.mxu0 0.0
        %2253 = vmatpush1.msra.mxu0 0.0
        %2254 = vmatprep.subr.mxu0 0.0
        %2255 = vmatpush1.msra.mxu0 0.0
        %2256 = vmatprep.subr.mxu0 0.0
        %2257 = vmatpush1.msra.mxu0 0.0
        %2258 = vmatprep.subr.mxu0 0.0
        %2259 = vmatpush1.msra.mxu0 0.0
        %2260 = vmatprep.subr.mxu0 0.0
        %2261 = vmatpush1.msra.mxu0 0.0
        %2262 = vmatprep.subr.mxu0 0.0
        %2263 = vmatpush1.msra.mxu0 0.0
        %2264 = vmatprep.subr.mxu0 0.0
        %2265 = vmatpush1.msra.mxu0 0.0
        %2266 = vmatprep.subr.mxu0 0.0
        %2267 = vmatpush1.msra.mxu0 0.0
        %2268 = vmatprep.subr.mxu0 0.0
        %2269 = vmatpush1.msra.mxu0 0.0
        %2270 = vmatprep.subr.mxu0 0.0
        %2271 = vmatpush1.msra.mxu0 0.0
        %2272 = vmatprep.subr.mxu0 0.0
        %2273 = vmatpush1.msra.mxu0 0.0
        %2274 = vmatprep.subr.mxu0 0.0
        %2275 = vmatpush1.msra.mxu0 0.0
        %2276 = vmatprep.mubr.f32.mxu0 0.0
        %2277 = vmatmul.mubr.f32.gmra.mrb[0].mxu0 %v1682
        %v2278 = vpop.f32.mrb[0].mxu0
        %v2279 = vadd.f32 0.0, %v2278
        %v2280 = vpop.f32.mrb[0].mxu0
        %2281 = vmatprep.mubr.f32.mxu0 0.0
        %2282 = vmatmul.mubr.f32.gmra.mrb[0].mxu0 %v1685
        %v2283 = vpop.f32.mrb[0].mxu0
        %v2284 = vadd.f32 0.0, %v2283
        %v2285 = vpop.f32.mrb[0].mxu0
        %2286 = vdwg.mxu0
        %v2288 = vlaneseq
        %v2289 = vshrl.u32 %v2288, 7
        %v2290 = vsub.s32 0, %v2289
        %v2291 = vrot.slane %v414, %v2290
        %vm2293 = vcmask 31744
        %v2295 = vsel %vm2293, %v518, 0
        %v2298 = vsel %vm2293, %v1116, 0
        %v2301 = vsel %vm2293, %v1121, 0
        %2303 = vmatprep.subr.mxu0 0.0
        %2304 = vmatpush1.xpose.msra.mxu0 %v2298
        %2305 = vmatprep.subr.mxu0 0.0
        %2306 = vmatpush1.xpose.msra.mxu0 %v2301
        %2307 = vmatprep.subr.mxu0 0.0
        %2308 = vmatpush1.xpose.msra.mxu0 0.0
        %2309 = vmatprep.subr.mxu0 0.0
        %2310 = vmatpush1.xpose.msra.mxu0 0.0
        %2311 = vmatprep.subr.mxu0 0.0
        %2312 = vmatpush1.xpose.msra.mxu0 0.0
        %2313 = vmatprep.subr.mxu0 0.0
        %2314 = vmatpush1.xpose.msra.mxu0 0.0
        %2315 = vmatprep.subr.mxu0 0.0
        %2316 = vmatpush1.xpose.msra.mxu0 0.0
        %2317 = vmatprep.subr.mxu0 0.0
        %2318 = vmatpush1.xpose.msra.mxu0 0.0
        %2319 = vmatprep.subr.mxu0 0.0
        %2320 = vmatpush1.xpose.msra.mxu0 0.0
        %2321 = vmatprep.subr.mxu0 0.0
        %2322 = vmatpush1.xpose.msra.mxu0 0.0
        %2323 = vmatprep.subr.mxu0 0.0
        %2324 = vmatpush1.xpose.msra.mxu0 0.0
        %2325 = vmatprep.subr.mxu0 0.0
        %2326 = vmatpush1.xpose.msra.mxu0 0.0
        %2327 = vmatprep.subr.mxu0 0.0
        %2328 = vmatpush1.xpose.msra.mxu0 0.0
        %2329 = vmatprep.subr.mxu0 0.0
        %2330 = vmatpush1.xpose.msra.mxu0 0.0
        %2331 = vmatprep.subr.mxu0 0.0
        %2332 = vmatpush1.xpose.msra.mxu0 0.0
        %2333 = vmatprep.subr.mxu0 0.0
        %2334 = vmatpush1.xpose.msra.mxu0 0.0
        %2335 = vmatprep.subr.mxu0 0.0
        %2336 = vmatpush1.xpose.msra.mxu0 0.0
        %2337 = vmatprep.subr.mxu0 0.0
        %2338 = vmatpush1.xpose.msra.mxu0 0.0
        %2339 = vmatprep.subr.mxu0 0.0
        %2340 = vmatpush1.xpose.msra.mxu0 0.0
        %2341 = vmatprep.subr.mxu0 0.0
        %2342 = vmatpush1.xpose.msra.mxu0 0.0
        %2343 = vmatprep.subr.mxu0 0.0
        %2344 = vmatpush1.xpose.msra.mxu0 0.0
        %2345 = vmatprep.subr.mxu0 0.0
        %2346 = vmatpush1.xpose.msra.mxu0 0.0
        %2347 = vmatprep.subr.mxu0 0.0
        %2348 = vmatpush1.xpose.msra.mxu0 0.0
        %2349 = vmatprep.subr.mxu0 0.0
        %2350 = vmatpush1.xpose.msra.mxu0 0.0
        %2351 = vmatprep.subr.mxu0 0.0
        %2352 = vmatpush1.xpose.msra.mxu0 0.0
        %2353 = vmatprep.subr.mxu0 0.0
        %2354 = vmatpush1.xpose.msra.mxu0 0.0
        %2355 = vmatprep.subr.mxu0 0.0
        %2356 = vmatpush1.xpose.msra.mxu0 0.0
        %2357 = vmatprep.subr.mxu0 0.0
        %2358 = vmatpush1.xpose.msra.mxu0 0.0
        %2359 = vmatprep.subr.mxu0 0.0
        %2360 = vmatpush1.xpose.msra.mxu0 0.0
        %2361 = vmatprep.subr.mxu0 0.0
        %2362 = vmatpush1.xpose.msra.mxu0 0.0
        %2363 = vmatprep.subr.mxu0 0.0
        %2364 = vmatpush1.xpose.msra.mxu0 0.0
        %2365 = vmatprep.subr.mxu0 0.0
        %2366 = vmatpush1.xpose.msra.mxu0 0.0
        %2367 = vmatprep.mubr.f32.mxu0 0.0
        %2368 = vmatmul.mubr.f32.gmra.mrb[0].mxu0 %v2295
        %v2369 = vpop.f32.mrb[0].mxu0
        %v2370 = vadd.f32 %v2291, %v2369
        %v2371 = vpop.f32.mrb[0].mxu0
        %2372 = vdwg.mxu0
        %v2374 = vsel %vm2293, %v588, 0
        %v2377 = vsel %vm2293, %v1191, 0
        %v2380 = vsel %vm2293, %v1196, 0
        %2382 = vmatprep.subr.mxu0 0.0
        %2383 = vmatpush1.xpose.msra.mxu0 %v2377
        %2384 = vmatprep.subr.mxu0 0.0
        %2385 = vmatpush1.xpose.msra.mxu0 %v2380
        %2386 = vmatprep.subr.mxu0 0.0
        %2387 = vmatpush1.xpose.msra.mxu0 0.0
        %2388 = vmatprep.subr.mxu0 0.0
        %2389 = vmatpush1.xpose.msra.mxu0 0.0
        %2390 = vmatprep.subr.mxu0 0.0
        %2391 = vmatpush1.xpose.msra.mxu0 0.0
        %2392 = vmatprep.subr.mxu0 0.0
        %2393 = vmatpush1.xpose.msra.mxu0 0.0
        %2394 = vmatprep.subr.mxu0 0.0
        %2395 = vmatpush1.xpose.msra.mxu0 0.0
        %2396 = vmatprep.subr.mxu0 0.0
        %2397 = vmatpush1.xpose.msra.mxu0 0.0
        %2398 = vmatprep.subr.mxu0 0.0
        %2399 = vmatpush1.xpose.msra.mxu0 0.0
        %2400 = vmatprep.subr.mxu0 0.0
        %2401 = vmatpush1.xpose.msra.mxu0 0.0
        %2402 = vmatprep.subr.mxu0 0.0
        %2403 = vmatpush1.xpose.msra.mxu0 0.0
        %2404 = vmatprep.subr.mxu0 0.0
        %2405 = vmatpush1.xpose.msra.mxu0 0.0
        %2406 = vmatprep.subr.mxu0 0.0
        %2407 = vmatpush1.xpose.msra.mxu0 0.0
        %2408 = vmatprep.subr.mxu0 0.0
        %2409 = vmatpush1.xpose.msra.mxu0 0.0
        %2410 = vmatprep.subr.mxu0 0.0
        %2411 = vmatpush1.xpose.msra.mxu0 0.0
        %2412 = vmatprep.subr.mxu0 0.0
        %2413 = vmatpush1.xpose.msra.mxu0 0.0
        %2414 = vmatprep.subr.mxu0 0.0
        %2415 = vmatpush1.xpose.msra.mxu0 0.0
        %2416 = vmatprep.subr.mxu0 0.0
        %2417 = vmatpush1.xpose.msra.mxu0 0.0
        %2418 = vmatprep.subr.mxu0 0.0
        %2419 = vmatpush1.xpose.msra.mxu0 0.0
        %2420 = vmatprep.subr.mxu0 0.0
        %2421 = vmatpush1.xpose.msra.mxu0 0.0
        %2422 = vmatprep.subr.mxu0 0.0
        %2423 = vmatpush1.xpose.msra.mxu0 0.0
        %2424 = vmatprep.subr.mxu0 0.0
        %2425 = vmatpush1.xpose.msra.mxu0 0.0
        %2426 = vmatprep.subr.mxu0 0.0
        %2427 = vmatpush1.xpose.msra.mxu0 0.0
        %2428 = vmatprep.subr.mxu0 0.0
        %2429 = vmatpush1.xpose.msra.mxu0 0.0
        %2430 = vmatprep.subr.mxu0 0.0
        %2431 = vmatpush1.xpose.msra.mxu0 0.0
        %2432 = vmatprep.subr.mxu0 0.0
        %2433 = vmatpush1.xpose.msra.mxu0 0.0
        %2434 = vmatprep.subr.mxu0 0.0
        %2435 = vmatpush1.xpose.msra.mxu0 0.0
        %2436 = vmatprep.subr.mxu0 0.0
        %2437 = vmatpush1.xpose.msra.mxu0 0.0
        %2438 = vmatprep.subr.mxu0 0.0
        %2439 = vmatpush1.xpose.msra.mxu0 0.0
        %2440 = vmatprep.subr.mxu0 0.0
        %2441 = vmatpush1.xpose.msra.mxu0 0.0
        %2442 = vmatprep.subr.mxu0 0.0
        %2443 = vmatpush1.xpose.msra.mxu0 0.0
        %2444 = vmatprep.subr.mxu0 0.0
        %2445 = vmatpush1.xpose.msra.mxu0 0.0
        %2446 = vmatprep.mubr.f32.mxu0 0.0
        %2447 = vmatmul.mubr.f32.gmra.mrb[0].mxu0 %v2374
        %v2448 = vpop.f32.mrb[0].mxu0
        %v2449 = vadd.f32 %v2291, %v2448
        %v2450 = vpop.f32.mrb[0].mxu0
        %2451 = vdwg.mxu0
        %v2453 = vsel %vm2293, %v658, 0
        %v2456 = vsel %vm2293, %v1266, 0
        %v2459 = vsel %vm2293, %v1271, 0
        %2461 = vmatprep.subr.mxu0 0.0
        %2462 = vmatpush1.xpose.msra.mxu0 %v2456
        %2463 = vmatprep.subr.mxu0 0.0
        %2464 = vmatpush1.xpose.msra.mxu0 %v2459
        %2465 = vmatprep.subr.mxu0 0.0
        %2466 = vmatpush1.xpose.msra.mxu0 0.0
        %2467 = vmatprep.subr.mxu0 0.0
        %2468 = vmatpush1.xpose.msra.mxu0 0.0
        %2469 = vmatprep.subr.mxu0 0.0
        %2470 = vmatpush1.xpose.msra.mxu0 0.0
        %2471 = vmatprep.subr.mxu0 0.0
        %2472 = vmatpush1.xpose.msra.mxu0 0.0
        %2473 = vmatprep.subr.mxu0 0.0
        %2474 = vmatpush1.xpose.msra.mxu0 0.0
        %2475 = vmatprep.subr.mxu0 0.0
        %2476 = vmatpush1.xpose.msra.mxu0 0.0
        %2477 = vmatprep.subr.mxu0 0.0
        %2478 = vmatpush1.xpose.msra.mxu0 0.0
        %2479 = vmatprep.subr.mxu0 0.0
        %2480 = vmatpush1.xpose.msra.mxu0 0.0
        %2481 = vmatprep.subr.mxu0 0.0
        %2482 = vmatpush1.xpose.msra.mxu0 0.0
        %2483 = vmatprep.subr.mxu0 0.0
        %2484 = vmatpush1.xpose.msra.mxu0 0.0
        %2485 = vmatprep.subr.mxu0 0.0
        %2486 = vmatpush1.xpose.msra.mxu0 0.0
        %2487 = vmatprep.subr.mxu0 0.0
        %2488 = vmatpush1.xpose.msra.mxu0 0.0
        %2489 = vmatprep.subr.mxu0 0.0
        %2490 = vmatpush1.xpose.msra.mxu0 0.0
        %2491 = vmatprep.subr.mxu0 0.0
        %2492 = vmatpush1.xpose.msra.mxu0 0.0
        %2493 = vmatprep.subr.mxu0 0.0
        %2494 = vmatpush1.xpose.msra.mxu0 0.0
        %2495 = vmatprep.subr.mxu0 0.0
        %2496 = vmatpush1.xpose.msra.mxu0 0.0
        %2497 = vmatprep.subr.mxu0 0.0
        %2498 = vmatpush1.xpose.msra.mxu0 0.0
        %2499 = vmatprep.subr.mxu0 0.0
        %2500 = vmatpush1.xpose.msra.mxu0 0.0
        %2501 = vmatprep.subr.mxu0 0.0
        %2502 = vmatpush1.xpose.msra.mxu0 0.0
        %2503 = vmatprep.subr.mxu0 0.0
        %2504 = vmatpush1.xpose.msra.mxu0 0.0
        %2505 = vmatprep.subr.mxu0 0.0
        %2506 = vmatpush1.xpose.msra.mxu0 0.0
        %2507 = vmatprep.subr.mxu0 0.0
        %2508 = vmatpush1.xpose.msra.mxu0 0.0
        %2509 = vmatprep.subr.mxu0 0.0
        %2510 = vmatpush1.xpose.msra.mxu0 0.0
        %2511 = vmatprep.subr.mxu0 0.0
        %2512 = vmatpush1.xpose.msra.mxu0 0.0
        %2513 = vmatprep.subr.mxu0 0.0
        %2514 = vmatpush1.xpose.msra.mxu0 0.0
        %2515 = vmatprep.subr.mxu0 0.0
        %2516 = vmatpush1.xpose.msra.mxu0 0.0
        %2517 = vmatprep.subr.mxu0 0.0
        %2518 = vmatpush1.xpose.msra.mxu0 0.0
        %2519 = vmatprep.subr.mxu0 0.0
        %2520 = vmatpush1.xpose.msra.mxu0 0.0
        %2521 = vmatprep.subr.mxu0 0.0
        %2522 = vmatpush1.xpose.msra.mxu0 0.0
        %2523 = vmatprep.subr.mxu0 0.0
        %2524 = vmatpush1.xpose.msra.mxu0 0.0
        %2525 = vmatprep.mubr.f32.mxu0 0.0
        %2526 = vmatmul.mubr.f32.gmra.mrb[0].mxu0 %v2453
        %v2527 = vpop.f32.mrb[0].mxu0
        %v2528 = vadd.f32 %v2291, %v2527
        %v2529 = vpop.f32.mrb[0].mxu0
        %2530 = vdwg.mxu0
        %v2532 = vsel %vm2293, %v728, 0
        %v2535 = vsel %vm2293, %v1341, 0
        %v2538 = vsel %vm2293, %v1346, 0
        %2540 = vmatprep.subr.mxu0 0.0
        %2541 = vmatpush1.xpose.msra.mxu0 %v2535
        %2542 = vmatprep.subr.mxu0 0.0
        %2543 = vmatpush1.xpose.msra.mxu0 %v2538
        %2544 = vmatprep.subr.mxu0 0.0
        %2545 = vmatpush1.xpose.msra.mxu0 0.0
        %2546 = vmatprep.subr.mxu0 0.0
        %2547 = vmatpush1.xpose.msra.mxu0 0.0
        %2548 = vmatprep.subr.mxu0 0.0
        %2549 = vmatpush1.xpose.msra.mxu0 0.0
        %2550 = vmatprep.subr.mxu0 0.0
        %2551 = vmatpush1.xpose.msra.mxu0 0.0
        %2552 = vmatprep.subr.mxu0 0.0
        %2553 = vmatpush1.xpose.msra.mxu0 0.0
        %2554 = vmatprep.subr.mxu0 0.0
        %2555 = vmatpush1.xpose.msra.mxu0 0.0
        %2556 = vmatprep.subr.mxu0 0.0
        %2557 = vmatpush1.xpose.msra.mxu0 0.0
        %2558 = vmatprep.subr.mxu0 0.0
        %2559 = vmatpush1.xpose.msra.mxu0 0.0
        %2560 = vmatprep.subr.mxu0 0.0
        %2561 = vmatpush1.xpose.msra.mxu0 0.0
        %2562 = vmatprep.subr.mxu0 0.0
        %2563 = vmatpush1.xpose.msra.mxu0 0.0
        %2564 = vmatprep.subr.mxu0 0.0
        %2565 = vmatpush1.xpose.msra.mxu0 0.0
        %2566 = vmatprep.subr.mxu0 0.0
        %2567 = vmatpush1.xpose.msra.mxu0 0.0
        %2568 = vmatprep.subr.mxu0 0.0
        %2569 = vmatpush1.xpose.msra.mxu0 0.0
        %2570 = vmatprep.subr.mxu0 0.0
        %2571 = vmatpush1.xpose.msra.mxu0 0.0
        %2572 = vmatprep.subr.mxu0 0.0
        %2573 = vmatpush1.xpose.msra.mxu0 0.0
        %2574 = vmatprep.subr.mxu0 0.0
        %2575 = vmatpush1.xpose.msra.mxu0 0.0
        %2576 = vmatprep.subr.mxu0 0.0
        %2577 = vmatpush1.xpose.msra.mxu0 0.0
        %2578 = vmatprep.subr.mxu0 0.0
        %2579 = vmatpush1.xpose.msra.mxu0 0.0
        %2580 = vmatprep.subr.mxu0 0.0
        %2581 = vmatpush1.xpose.msra.mxu0 0.0
        %2582 = vmatprep.subr.mxu0 0.0
        %2583 = vmatpush1.xpose.msra.mxu0 0.0
        %2584 = vmatprep.subr.mxu0 0.0
        %2585 = vmatpush1.xpose.msra.mxu0 0.0
        %2586 = vmatprep.subr.mxu0 0.0
        %2587 = vmatpush1.xpose.msra.mxu0 0.0
        %2588 = vmatprep.subr.mxu0 0.0
        %2589 = vmatpush1.xpose.msra.mxu0 0.0
        %2590 = vmatprep.subr.mxu0 0.0
        %2591 = vmatpush1.xpose.msra.mxu0 0.0
        %2592 = vmatprep.subr.mxu0 0.0
        %2593 = vmatpush1.xpose.msra.mxu0 0.0
        %2594 = vmatprep.subr.mxu0 0.0
        %2595 = vmatpush1.xpose.msra.mxu0 0.0
        %2596 = vmatprep.subr.mxu0 0.0
        %2597 = vmatpush1.xpose.msra.mxu0 0.0
        %2598 = vmatprep.subr.mxu0 0.0
        %2599 = vmatpush1.xpose.msra.mxu0 0.0
        %2600 = vmatprep.subr.mxu0 0.0
        %2601 = vmatpush1.xpose.msra.mxu0 0.0
        %2602 = vmatprep.subr.mxu0 0.0
        %2603 = vmatpush1.xpose.msra.mxu0 0.0
        %2604 = vmatprep.mubr.f32.mxu0 0.0
        %2605 = vmatmul.mubr.f32.gmra.mrb[0].mxu0 %v2532
        %v2606 = vpop.f32.mrb[0].mxu0
        %v2607 = vadd.f32 %v2291, %v2606
        %v2608 = vpop.f32.mrb[0].mxu0
        %2609 = vdwg.mxu0
        %v2611 = vsel %vm2293, %v798, 0
        %v2614 = vsel %vm2293, %v1416, 0
        %v2617 = vsel %vm2293, %v1421, 0
        %2619 = vmatprep.subr.mxu0 0.0
        %2620 = vmatpush1.xpose.msra.mxu0 %v2614
        %2621 = vmatprep.subr.mxu0 0.0
        %2622 = vmatpush1.xpose.msra.mxu0 %v2617
        %2623 = vmatprep.subr.mxu0 0.0
        %2624 = vmatpush1.xpose.msra.mxu0 0.0
        %2625 = vmatprep.subr.mxu0 0.0
        %2626 = vmatpush1.xpose.msra.mxu0 0.0
        %2627 = vmatprep.subr.mxu0 0.0
        %2628 = vmatpush1.xpose.msra.mxu0 0.0
        %2629 = vmatprep.subr.mxu0 0.0
        %2630 = vmatpush1.xpose.msra.mxu0 0.0
        %2631 = vmatprep.subr.mxu0 0.0
        %2632 = vmatpush1.xpose.msra.mxu0 0.0
        %2633 = vmatprep.subr.mxu0 0.0
        %2634 = vmatpush1.xpose.msra.mxu0 0.0
        %2635 = vmatprep.subr.mxu0 0.0
        %2636 = vmatpush1.xpose.msra.mxu0 0.0
        %2637 = vmatprep.subr.mxu0 0.0
        %2638 = vmatpush1.xpose.msra.mxu0 0.0
        %2639 = vmatprep.subr.mxu0 0.0
        %2640 = vmatpush1.xpose.msra.mxu0 0.0
        %2641 = vmatprep.subr.mxu0 0.0
        %2642 = vmatpush1.xpose.msra.mxu0 0.0
        %2643 = vmatprep.subr.mxu0 0.0
        %2644 = vmatpush1.xpose.msra.mxu0 0.0
        %2645 = vmatprep.subr.mxu0 0.0
        %2646 = vmatpush1.xpose.msra.mxu0 0.0
        %2647 = vmatprep.subr.mxu0 0.0
        %2648 = vmatpush1.xpose.msra.mxu0 0.0
        %2649 = vmatprep.subr.mxu0 0.0
        %2650 = vmatpush1.xpose.msra.mxu0 0.0
        %2651 = vmatprep.subr.mxu0 0.0
        %2652 = vmatpush1.xpose.msra.mxu0 0.0
        %2653 = vmatprep.subr.mxu0 0.0
        %2654 = vmatpush1.xpose.msra.mxu0 0.0
        %2655 = vmatprep.subr.mxu0 0.0
        %2656 = vmatpush1.xpose.msra.mxu0 0.0
        %2657 = vmatprep.subr.mxu0 0.0
        %2658 = vmatpush1.xpose.msra.mxu0 0.0
        %2659 = vmatprep.subr.mxu0 0.0
        %2660 = vmatpush1.xpose.msra.mxu0 0.0
        %2661 = vmatprep.subr.mxu0 0.0
        %2662 = vmatpush1.xpose.msra.mxu0 0.0
        %2663 = vmatprep.subr.mxu0 0.0
        %2664 = vmatpush1.xpose.msra.mxu0 0.0
        %2665 = vmatprep.subr.mxu0 0.0
        %2666 = vmatpush1.xpose.msra.mxu0 0.0
        %2667 = vmatprep.subr.mxu0 0.0
        %2668 = vmatpush1.xpose.msra.mxu0 0.0
        %2669 = vmatprep.subr.mxu0 0.0
        %2670 = vmatpush1.xpose.msra.mxu0 0.0
        %2671 = vmatprep.subr.mxu0 0.0
        %2672 = vmatpush1.xpose.msra.mxu0 0.0
        %2673 = vmatprep.subr.mxu0 0.0
        %2674 = vmatpush1.xpose.msra.mxu0 0.0
        %2675 = vmatprep.subr.mxu0 0.0
        %2676 = vmatpush1.xpose.msra.mxu0 0.0
        %2677 = vmatprep.subr.mxu0 0.0
        %2678 = vmatpush1.xpose.msra.mxu0 0.0
        %2679 = vmatprep.subr.mxu0 0.0
        %2680 = vmatpush1.xpose.msra.mxu0 0.0
        %2681 = vmatprep.subr.mxu0 0.0
        %2682 = vmatpush1.xpose.msra.mxu0 0.0
        %2683 = vmatprep.mubr.f32.mxu0 0.0
        %2684 = vmatmul.mubr.f32.gmra.mrb[0].mxu0 %v2611
        %v2685 = vpop.f32.mrb[0].mxu0
        %v2686 = vadd.f32 %v2291, %v2685
        %v2687 = vpop.f32.mrb[0].mxu0
        %2688 = vdwg.mxu0
        %v2690 = vsel %vm2293, %v868, 0
        %v2693 = vsel %vm2293, %v1491, 0
        %v2696 = vsel %vm2293, %v1496, 0
        %2698 = vmatprep.subr.mxu0 0.0
        %2699 = vmatpush1.xpose.msra.mxu0 %v2693
        %2700 = vmatprep.subr.mxu0 0.0
        %2701 = vmatpush1.xpose.msra.mxu0 %v2696
        %2702 = vmatprep.subr.mxu0 0.0
        %2703 = vmatpush1.xpose.msra.mxu0 0.0
        %2704 = vmatprep.subr.mxu0 0.0
        %2705 = vmatpush1.xpose.msra.mxu0 0.0
        %2706 = vmatprep.subr.mxu0 0.0
        %2707 = vmatpush1.xpose.msra.mxu0 0.0
        %2708 = vmatprep.subr.mxu0 0.0
        %2709 = vmatpush1.xpose.msra.mxu0 0.0
        %2710 = vmatprep.subr.mxu0 0.0
        %2711 = vmatpush1.xpose.msra.mxu0 0.0
        %2712 = vmatprep.subr.mxu0 0.0
        %2713 = vmatpush1.xpose.msra.mxu0 0.0
        %2714 = vmatprep.subr.mxu0 0.0
        %2715 = vmatpush1.xpose.msra.mxu0 0.0
        %2716 = vmatprep.subr.mxu0 0.0
        %2717 = vmatpush1.xpose.msra.mxu0 0.0
        %2718 = vmatprep.subr.mxu0 0.0
        %2719 = vmatpush1.xpose.msra.mxu0 0.0
        %2720 = vmatprep.subr.mxu0 0.0
        %2721 = vmatpush1.xpose.msra.mxu0 0.0
        %2722 = vmatprep.subr.mxu0 0.0
        %2723 = vmatpush1.xpose.msra.mxu0 0.0
        %2724 = vmatprep.subr.mxu0 0.0
        %2725 = vmatpush1.xpose.msra.mxu0 0.0
        %2726 = vmatprep.subr.mxu0 0.0
        %2727 = vmatpush1.xpose.msra.mxu0 0.0
        %2728 = vmatprep.subr.mxu0 0.0
        %2729 = vmatpush1.xpose.msra.mxu0 0.0
        %2730 = vmatprep.subr.mxu0 0.0
        %2731 = vmatpush1.xpose.msra.mxu0 0.0
        %2732 = vmatprep.subr.mxu0 0.0
        %2733 = vmatpush1.xpose.msra.mxu0 0.0
        %2734 = vmatprep.subr.mxu0 0.0
        %2735 = vmatpush1.xpose.msra.mxu0 0.0
        %2736 = vmatprep.subr.mxu0 0.0
        %2737 = vmatpush1.xpose.msra.mxu0 0.0
        %2738 = vmatprep.subr.mxu0 0.0
        %2739 = vmatpush1.xpose.msra.mxu0 0.0
        %2740 = vmatprep.subr.mxu0 0.0
        %2741 = vmatpush1.xpose.msra.mxu0 0.0
        %2742 = vmatprep.subr.mxu0 0.0
        %2743 = vmatpush1.xpose.msra.mxu0 0.0
        %2744 = vmatprep.subr.mxu0 0.0
        %2745 = vmatpush1.xpose.msra.mxu0 0.0
        %2746 = vmatprep.subr.mxu0 0.0
        %2747 = vmatpush1.xpose.msra.mxu0 0.0
        %2748 = vmatprep.subr.mxu0 0.0
        %2749 = vmatpush1.xpose.msra.mxu0 0.0
        %2750 = vmatprep.subr.mxu0 0.0
        %2751 = vmatpush1.xpose.msra.mxu0 0.0
        %2752 = vmatprep.subr.mxu0 0.0
        %2753 = vmatpush1.xpose.msra.mxu0 0.0
        %2754 = vmatprep.subr.mxu0 0.0
        %2755 = vmatpush1.xpose.msra.mxu0 0.0
        %2756 = vmatprep.subr.mxu0 0.0
        %2757 = vmatpush1.xpose.msra.mxu0 0.0
        %2758 = vmatprep.subr.mxu0 0.0
        %2759 = vmatpush1.xpose.msra.mxu0 0.0
        %2760 = vmatprep.subr.mxu0 0.0
        %2761 = vmatpush1.xpose.msra.mxu0 0.0
        %2762 = vmatprep.mubr.f32.mxu0 0.0
        %2763 = vmatmul.mubr.f32.gmra.mrb[0].mxu0 %v2690
        %v2764 = vpop.f32.mrb[0].mxu0
        %v2765 = vadd.f32 %v2291, %v2764
        %v2766 = vpop.f32.mrb[0].mxu0
        %2767 = vdwg.mxu0
        %v2769 = vsel %vm2293, %v938, 0
        %v2772 = vsel %vm2293, %v1566, 0
        %v2775 = vsel %vm2293, %v1571, 0
        %2777 = vmatprep.subr.mxu0 0.0
        %2778 = vmatpush1.xpose.msra.mxu0 %v2772
        %2779 = vmatprep.subr.mxu0 0.0
        %2780 = vmatpush1.xpose.msra.mxu0 %v2775
        %2781 = vmatprep.subr.mxu0 0.0
        %2782 = vmatpush1.xpose.msra.mxu0 0.0
        %2783 = vmatprep.subr.mxu0 0.0
        %2784 = vmatpush1.xpose.msra.mxu0 0.0
        %2785 = vmatprep.subr.mxu0 0.0
        %2786 = vmatpush1.xpose.msra.mxu0 0.0
        %2787 = vmatprep.subr.mxu0 0.0
        %2788 = vmatpush1.xpose.msra.mxu0 0.0
        %2789 = vmatprep.subr.mxu0 0.0
        %2790 = vmatpush1.xpose.msra.mxu0 0.0
        %2791 = vmatprep.subr.mxu0 0.0
        %2792 = vmatpush1.xpose.msra.mxu0 0.0
        %2793 = vmatprep.subr.mxu0 0.0
        %2794 = vmatpush1.xpose.msra.mxu0 0.0
        %2795 = vmatprep.subr.mxu0 0.0
        %2796 = vmatpush1.xpose.msra.mxu0 0.0
        %2797 = vmatprep.subr.mxu0 0.0
        %2798 = vmatpush1.xpose.msra.mxu0 0.0
        %2799 = vmatprep.subr.mxu0 0.0
        %2800 = vmatpush1.xpose.msra.mxu0 0.0
        %2801 = vmatprep.subr.mxu0 0.0
        %2802 = vmatpush1.xpose.msra.mxu0 0.0
        %2803 = vmatprep.subr.mxu0 0.0
        %2804 = vmatpush1.xpose.msra.mxu0 0.0
        %2805 = vmatprep.subr.mxu0 0.0
        %2806 = vmatpush1.xpose.msra.mxu0 0.0
        %2807 = vmatprep.subr.mxu0 0.0
        %2808 = vmatpush1.xpose.msra.mxu0 0.0
        %2809 = vmatprep.subr.mxu0 0.0
        %2810 = vmatpush1.xpose.msra.mxu0 0.0
        %2811 = vmatprep.subr.mxu0 0.0
        %2812 = vmatpush1.xpose.msra.mxu0 0.0
        %2813 = vmatprep.subr.mxu0 0.0
        %2814 = vmatpush1.xpose.msra.mxu0 0.0
        %2815 = vmatprep.subr.mxu0 0.0
        %2816 = vmatpush1.xpose.msra.mxu0 0.0
        %2817 = vmatprep.subr.mxu0 0.0
        %2818 = vmatpush1.xpose.msra.mxu0 0.0
        %2819 = vmatprep.subr.mxu0 0.0
        %2820 = vmatpush1.xpose.msra.mxu0 0.0
        %2821 = vmatprep.subr.mxu0 0.0
        %2822 = vmatpush1.xpose.msra.mxu0 0.0
        %2823 = vmatprep.subr.mxu0 0.0
        %2824 = vmatpush1.xpose.msra.mxu0 0.0
        %2825 = vmatprep.subr.mxu0 0.0
        %2826 = vmatpush1.xpose.msra.mxu0 0.0
        %2827 = vmatprep.subr.mxu0 0.0
        %2828 = vmatpush1.xpose.msra.mxu0 0.0
        %2829 = vmatprep.subr.mxu0 0.0
        %2830 = vmatpush1.xpose.msra.mxu0 0.0
        %2831 = vmatprep.subr.mxu0 0.0
        %2832 = vmatpush1.xpose.msra.mxu0 0.0
        %2833 = vmatprep.subr.mxu0 0.0
        %2834 = vmatpush1.xpose.msra.mxu0 0.0
        %2835 = vmatprep.subr.mxu0 0.0
        %2836 = vmatpush1.xpose.msra.mxu0 0.0
        %2837 = vmatprep.subr.mxu0 0.0
        %2838 = vmatpush1.xpose.msra.mxu0 0.0
        %2839 = vmatprep.subr.mxu0 0.0
        %2840 = vmatpush1.xpose.msra.mxu0 0.0
        %2841 = vmatprep.mubr.f32.mxu0 0.0
        %2842 = vmatmul.mubr.f32.gmra.mrb[0].mxu0 %v2769
        %v2843 = vpop.f32.mrb[0].mxu0
        %v2844 = vadd.f32 %v2291, %v2843
        %v2845 = vpop.f32.mrb[0].mxu0
        %2846 = vdwg.mxu0
        %v2848 = vsel %vm2293, %v1008, 0
        %v2851 = vsel %vm2293, %v1641, 0
        %v2854 = vsel %vm2293, %v1646, 0
        %2856 = vmatprep.subr.mxu0 0.0
        %2857 = vmatpush1.xpose.msra.mxu0 %v2851
        %2858 = vmatprep.subr.mxu0 0.0
        %2859 = vmatpush1.xpose.msra.mxu0 %v2854
        %2860 = vmatprep.subr.mxu0 0.0
        %2861 = vmatpush1.xpose.msra.mxu0 0.0
        %2862 = vmatprep.subr.mxu0 0.0
        %2863 = vmatpush1.xpose.msra.mxu0 0.0
        %2864 = vmatprep.subr.mxu0 0.0
        %2865 = vmatpush1.xpose.msra.mxu0 0.0
        %2866 = vmatprep.subr.mxu0 0.0
        %2867 = vmatpush1.xpose.msra.mxu0 0.0
        %2868 = vmatprep.subr.mxu0 0.0
        %2869 = vmatpush1.xpose.msra.mxu0 0.0
        %2870 = vmatprep.subr.mxu0 0.0
        %2871 = vmatpush1.xpose.msra.mxu0 0.0
        %2872 = vmatprep.subr.mxu0 0.0
        %2873 = vmatpush1.xpose.msra.mxu0 0.0
        %2874 = vmatprep.subr.mxu0 0.0
        %2875 = vmatpush1.xpose.msra.mxu0 0.0
        %2876 = vmatprep.subr.mxu0 0.0
        %2877 = vmatpush1.xpose.msra.mxu0 0.0
        %2878 = vmatprep.subr.mxu0 0.0
        %2879 = vmatpush1.xpose.msra.mxu0 0.0
        %2880 = vmatprep.subr.mxu0 0.0
        %2881 = vmatpush1.xpose.msra.mxu0 0.0
        %2882 = vmatprep.subr.mxu0 0.0
        %2883 = vmatpush1.xpose.msra.mxu0 0.0
        %2884 = vmatprep.subr.mxu0 0.0
        %2885 = vmatpush1.xpose.msra.mxu0 0.0
        %2886 = vmatprep.subr.mxu0 0.0
        %2887 = vmatpush1.xpose.msra.mxu0 0.0
        %2888 = vmatprep.subr.mxu0 0.0
        %2889 = vmatpush1.xpose.msra.mxu0 0.0
        %2890 = vmatprep.subr.mxu0 0.0
        %2891 = vmatpush1.xpose.msra.mxu0 0.0
        %2892 = vmatprep.subr.mxu0 0.0
        %2893 = vmatpush1.xpose.msra.mxu0 0.0
        %2894 = vmatprep.subr.mxu0 0.0
        %2895 = vmatpush1.xpose.msra.mxu0 0.0
        %2896 = vmatprep.subr.mxu0 0.0
        %2897 = vmatpush1.xpose.msra.mxu0 0.0
        %2898 = vmatprep.subr.mxu0 0.0
        %2899 = vmatpush1.xpose.msra.mxu0 0.0
        %2900 = vmatprep.subr.mxu0 0.0
        %2901 = vmatpush1.xpose.msra.mxu0 0.0
        %2902 = vmatprep.subr.mxu0 0.0
        %2903 = vmatpush1.xpose.msra.mxu0 0.0
        %2904 = vmatprep.subr.mxu0 0.0
        %2905 = vmatpush1.xpose.msra.mxu0 0.0
        %2906 = vmatprep.subr.mxu0 0.0
        %2907 = vmatpush1.xpose.msra.mxu0 0.0
        %2908 = vmatprep.subr.mxu0 0.0
        %2909 = vmatpush1.xpose.msra.mxu0 0.0
        %2910 = vmatprep.subr.mxu0 0.0
        %2911 = vmatpush1.xpose.msra.mxu0 0.0
        %2912 = vmatprep.subr.mxu0 0.0
        %2913 = vmatpush1.xpose.msra.mxu0 0.0
        %2914 = vmatprep.subr.mxu0 0.0
        %2915 = vmatpush1.xpose.msra.mxu0 0.0
        %2916 = vmatprep.subr.mxu0 0.0
        %2917 = vmatpush1.xpose.msra.mxu0 0.0
        %2918 = vmatprep.subr.mxu0 0.0
        %2919 = vmatpush1.xpose.msra.mxu0 0.0
        %2920 = vmatprep.mubr.f32.mxu0 0.0
        %2921 = vmatmul.mubr.f32.gmra.mrb[0].mxu0 %v2848
        %v2922 = vpop.f32.mrb[0].mxu0
        %v2923 = vadd.f32 %v2291, %v2922
        %v2924 = vpop.f32.mrb[0].mxu0
        %2925 = vdwg.mxu0
        %vm2926 = vcmask 130048
        %v2927 = vsel %vm2926, %v2370, -inf
        %2928 = vmax.xlane.f32.xlu0 %v2927
        %v2929 = vpop.xlane.xlu0 %2928
        %v2930 = vsel %vm2926, %v2449, -inf
        %2931 = vmax.xlane.f32.xlu0 %v2930
        %v2932 = vpop.xlane.xlu0 %2931
        %v2933 = vsel %vm2926, %v2528, -inf
        %2934 = vmax.xlane.f32.xlu0 %v2933
        %v2935 = vpop.xlane.xlu0 %2934
        %v2936 = vsel %vm2926, %v2607, -inf
        %2937 = vmax.xlane.f32.xlu0 %v2936
        %v2938 = vpop.xlane.xlu0 %2937
        %v2939 = vsel %vm2926, %v2686, -inf
        %2940 = vmax.xlane.f32.xlu0 %v2939
        %v2941 = vpop.xlane.xlu0 %2940
        %v2942 = vsel %vm2926, %v2765, -inf
        %2943 = vmax.xlane.f32.xlu0 %v2942
        %v2944 = vpop.xlane.xlu0 %2943
        %v2945 = vsel %vm2926, %v2844, -inf
        %2946 = vmax.xlane.f32.xlu0 %v2945
        %v2947 = vpop.xlane.xlu0 %2946
        %v2948 = vsel %vm2926, %v2923, -inf
        %2949 = vmax.xlane.f32.xlu0 %v2948
        %v2950 = vpop.xlane.xlu0 %2949
        %v2951 = vsub.f32 %v2370, %v2929
        %v2952 = vsub.f32 %v2449, %v2932
        %v2953 = vsub.f32 %v2528, %v2935
        %v2954 = vsub.f32 %v2607, %v2938
        %v2955 = vsub.f32 %v2686, %v2941
        %v2956 = vsub.f32 %v2765, %v2944
        %v2957 = vsub.f32 %v2844, %v2947
        %v2958 = vsub.f32 %v2923, %v2950
        %v2959 = vmul.f32 %v2951, 1.442695
        %v2960 = vpow.pop %v2959
        %v2961 = vmul.f32 %v2952, 1.442695
        %v2962 = vpow.pop %v2961
        %v2963 = vmul.f32 %v2953, 1.442695
        %v2964 = vpow.pop %v2963
        %v2965 = vmul.f32 %v2954, 1.442695
        %v2966 = vpow.pop %v2965
        %v2967 = vmul.f32 %v2955, 1.442695
        %v2968 = vpow.pop %v2967
        %v2969 = vmul.f32 %v2956, 1.442695
        %v2970 = vpow.pop %v2969
        %v2971 = vmul.f32 %v2957, 1.442695
        %v2972 = vpow.pop %v2971
        %v2973 = vmul.f32 %v2958, 1.442695
        %v2974 = vpow.pop %v2973
        %v2975 = vsel %vm2926, %v2960, 0.0
        %2976 = vadd.xlane.f32.xlu0 %v2975
        %v2977 = vpop.xlane.xlu0 %2976
        %v2978 = vsel %vm2926, %v2962, 0.0
        %2979 = vadd.xlane.f32.xlu0 %v2978
        %v2980 = vpop.xlane.xlu0 %2979
        %v2981 = vsel %vm2926, %v2964, 0.0
        %2982 = vadd.xlane.f32.xlu0 %v2981
        %v2983 = vpop.xlane.xlu0 %2982
        %v2984 = vsel %vm2926, %v2966, 0.0
        %2985 = vadd.xlane.f32.xlu0 %v2984
        %v2986 = vpop.xlane.xlu0 %2985
        %v2987 = vsel %vm2926, %v2968, 0.0
        %2988 = vadd.xlane.f32.xlu0 %v2987
        %v2989 = vpop.xlane.xlu0 %2988
        %v2990 = vsel %vm2926, %v2970, 0.0
        %2991 = vadd.xlane.f32.xlu0 %v2990
        %v2992 = vpop.xlane.xlu0 %2991
        %v2993 = vsel %vm2926, %v2972, 0.0
        %2994 = vadd.xlane.f32.xlu0 %v2993
        %v2995 = vpop.xlane.xlu0 %2994
        %v2996 = vsel %vm2926, %v2974, 0.0
        %2997 = vadd.xlane.f32.xlu0 %v2996
        %v2998 = vpop.xlane.xlu0 %2997
        %v3000 = vsel %vm2926, %v2960, 0
        %3002 = vmatprep.subr.mxu0 0.0
        %3003 = vmatpush1.msra.mxu0 %v1754
        %3004 = vmatprep.subr.mxu0 0.0
        %3005 = vmatpush1.msra.mxu0 %v1759
        %3006 = vmatprep.subr.mxu0 0.0
        %3007 = vmatpush1.msra.mxu0 0.0
        %3008 = vmatprep.subr.mxu0 0.0
        %3009 = vmatpush1.msra.mxu0 0.0
        %3010 = vmatprep.subr.mxu0 0.0
        %3011 = vmatpush1.msra.mxu0 0.0
        %3012 = vmatprep.subr.mxu0 0.0
        %3013 = vmatpush1.msra.mxu0 0.0
        %3014 = vmatprep.subr.mxu0 0.0
        %3015 = vmatpush1.msra.mxu0 0.0
        %3016 = vmatprep.subr.mxu0 0.0
        %3017 = vmatpush1.msra.mxu0 0.0
        %3018 = vmatprep.subr.mxu0 0.0
        %3019 = vmatpush1.msra.mxu0 0.0
        %3020 = vmatprep.subr.mxu0 0.0
        %3021 = vmatpush1.msra.mxu0 0.0
        %3022 = vmatprep.subr.mxu0 0.0
        %3023 = vmatpush1.msra.mxu0 0.0
        %3024 = vmatprep.subr.mxu0 0.0
        %3025 = vmatpush1.msra.mxu0 0.0
        %3026 = vmatprep.subr.mxu0 0.0
        %3027 = vmatpush1.msra.mxu0 0.0
        %3028 = vmatprep.subr.mxu0 0.0
        %3029 = vmatpush1.msra.mxu0 0.0
        %3030 = vmatprep.subr.mxu0 0.0
        %3031 = vmatpush1.msra.mxu0 0.0
        %3032 = vmatprep.subr.mxu0 0.0
        %3033 = vmatpush1.msra.mxu0 0.0
        %3034 = vmatprep.subr.mxu0 0.0
        %3035 = vmatpush1.msra.mxu0 0.0
        %3036 = vmatprep.subr.mxu0 0.0
        %3037 = vmatpush1.msra.mxu0 0.0
        %3038 = vmatprep.subr.mxu0 0.0
        %3039 = vmatpush1.msra.mxu0 0.0
        %3040 = vmatprep.subr.mxu0 0.0
        %3041 = vmatpush1.msra.mxu0 0.0
        %3042 = vmatprep.subr.mxu0 0.0
        %3043 = vmatpush1.msra.mxu0 0.0
        %3044 = vmatprep.subr.mxu0 0.0
        %3045 = vmatpush1.msra.mxu0 0.0
        %3046 = vmatprep.subr.mxu0 0.0
        %3047 = vmatpush1.msra.mxu0 0.0
        %3048 = vmatprep.subr.mxu0 0.0
        %3049 = vmatpush1.msra.mxu0 0.0
        %3050 = vmatprep.subr.mxu0 0.0
        %3051 = vmatpush1.msra.mxu0 0.0
        %3052 = vmatprep.subr.mxu0 0.0
        %3053 = vmatpush1.msra.mxu0 0.0
        %3054 = vmatprep.subr.mxu0 0.0
        %3055 = vmatpush1.msra.mxu0 0.0
        %3056 = vmatprep.subr.mxu0 0.0
        %3057 = vmatpush1.msra.mxu0 0.0
        %3058 = vmatprep.subr.mxu0 0.0
        %3059 = vmatpush1.msra.mxu0 0.0
        %3060 = vmatprep.subr.mxu0 0.0
        %3061 = vmatpush1.msra.mxu0 0.0
        %3062 = vmatprep.subr.mxu0 0.0
        %3063 = vmatpush1.msra.mxu0 0.0
        %3064 = vmatprep.subr.mxu0 0.0
        %3065 = vmatpush1.msra.mxu0 0.0
        %3066 = vmatprep.mubr.f32.mxu0 0.0
        %3067 = vmatmul.mubr.f32.gmra.mrb[0].mxu0 %v3000
        %v3068 = vpop.f32.mrb[0].mxu0
        %v3069 = vadd.f32 0.0, %v3068
        %v3070 = vpop.f32.mrb[0].mxu0
        %3071 = vdwg.mxu0
        %v3073 = vsel %vm2926, %v2962, 0
        %3075 = vmatprep.subr.mxu0 0.0
        %3076 = vmatpush1.msra.mxu0 %v1829
        %3077 = vmatprep.subr.mxu0 0.0
        %3078 = vmatpush1.msra.mxu0 %v1834
        %3079 = vmatprep.subr.mxu0 0.0
        %3080 = vmatpush1.msra.mxu0 0.0
        %3081 = vmatprep.subr.mxu0 0.0
        %3082 = vmatpush1.msra.mxu0 0.0
        %3083 = vmatprep.subr.mxu0 0.0
        %3084 = vmatpush1.msra.mxu0 0.0
        %3085 = vmatprep.subr.mxu0 0.0
        %3086 = vmatpush1.msra.mxu0 0.0
        %3087 = vmatprep.subr.mxu0 0.0
        %3088 = vmatpush1.msra.mxu0 0.0
        %3089 = vmatprep.subr.mxu0 0.0
        %3090 = vmatpush1.msra.mxu0 0.0
        %3091 = vmatprep.subr.mxu0 0.0
        %3092 = vmatpush1.msra.mxu0 0.0
        %3093 = vmatprep.subr.mxu0 0.0
        %3094 = vmatpush1.msra.mxu0 0.0
        %3095 = vmatprep.subr.mxu0 0.0
        %3096 = vmatpush1.msra.mxu0 0.0
        %3097 = vmatprep.subr.mxu0 0.0
        %3098 = vmatpush1.msra.mxu0 0.0
        %3099 = vmatprep.subr.mxu0 0.0
        %3100 = vmatpush1.msra.mxu0 0.0
        %3101 = vmatprep.subr.mxu0 0.0
        %3102 = vmatpush1.msra.mxu0 0.0
        %3103 = vmatprep.subr.mxu0 0.0
        %3104 = vmatpush1.msra.mxu0 0.0
        %3105 = vmatprep.subr.mxu0 0.0
        %3106 = vmatpush1.msra.mxu0 0.0
        %3107 = vmatprep.subr.mxu0 0.0
        %3108 = vmatpush1.msra.mxu0 0.0
        %3109 = vmatprep.subr.mxu0 0.0
        %3110 = vmatpush1.msra.mxu0 0.0
        %3111 = vmatprep.subr.mxu0 0.0
        %3112 = vmatpush1.msra.mxu0 0.0
        %3113 = vmatprep.subr.mxu0 0.0
        %3114 = vmatpush1.msra.mxu0 0.0
        %3115 = vmatprep.subr.mxu0 0.0
        %3116 = vmatpush1.msra.mxu0 0.0
        %3117 = vmatprep.subr.mxu0 0.0
        %3118 = vmatpush1.msra.mxu0 0.0
        %3119 = vmatprep.subr.mxu0 0.0
        %3120 = vmatpush1.msra.mxu0 0.0
        %3121 = vmatprep.subr.mxu0 0.0
        %3122 = vmatpush1.msra.mxu0 0.0
        %3123 = vmatprep.subr.mxu0 0.0
        %3124 = vmatpush1.msra.mxu0 0.0
        %3125 = vmatprep.subr.mxu0 0.0
        %3126 = vmatpush1.msra.mxu0 0.0
        %3127 = vmatprep.subr.mxu0 0.0
        %3128 = vmatpush1.msra.mxu0 0.0
        %3129 = vmatprep.subr.mxu0 0.0
        %3130 = vmatpush1.msra.mxu0 0.0
        %3131 = vmatprep.subr.mxu0 0.0
        %3132 = vmatpush1.msra.mxu0 0.0
        %3133 = vmatprep.subr.mxu0 0.0
        %3134 = vmatpush1.msra.mxu0 0.0
        %3135 = vmatprep.subr.mxu0 0.0
        %3136 = vmatpush1.msra.mxu0 0.0
        %3137 = vmatprep.subr.mxu0 0.0
        %3138 = vmatpush1.msra.mxu0 0.0
        %3139 = vmatprep.mubr.f32.mxu0 0.0
        %3140 = vmatmul.mubr.f32.gmra.mrb[0].mxu0 %v3073
        %v3141 = vpop.f32.mrb[0].mxu0
        %v3142 = vadd.f32 0.0, %v3141
        %v3143 = vpop.f32.mrb[0].mxu0
        %3144 = vdwg.mxu0
        %v3146 = vsel %vm2926, %v2964, 0
        %3148 = vmatprep.subr.mxu0 0.0
        %3149 = vmatpush1.msra.mxu0 %v1904
        %3150 = vmatprep.subr.mxu0 0.0
        %3151 = vmatpush1.msra.mxu0 %v1909
        %3152 = vmatprep.subr.mxu0 0.0
        %3153 = vmatpush1.msra.mxu0 0.0
        %3154 = vmatprep.subr.mxu0 0.0
        %3155 = vmatpush1.msra.mxu0 0.0
        %3156 = vmatprep.subr.mxu0 0.0
        %3157 = vmatpush1.msra.mxu0 0.0
        %3158 = vmatprep.subr.mxu0 0.0
        %3159 = vmatpush1.msra.mxu0 0.0
        %3160 = vmatprep.subr.mxu0 0.0
        %3161 = vmatpush1.msra.mxu0 0.0
        %3162 = vmatprep.subr.mxu0 0.0
        %3163 = vmatpush1.msra.mxu0 0.0
        %3164 = vmatprep.subr.mxu0 0.0
        %3165 = vmatpush1.msra.mxu0 0.0
        %3166 = vmatprep.subr.mxu0 0.0
        %3167 = vmatpush1.msra.mxu0 0.0
        %3168 = vmatprep.subr.mxu0 0.0
        %3169 = vmatpush1.msra.mxu0 0.0
        %3170 = vmatprep.subr.mxu0 0.0
        %3171 = vmatpush1.msra.mxu0 0.0
        %3172 = vmatprep.subr.mxu0 0.0
        %3173 = vmatpush1.msra.mxu0 0.0
        %3174 = vmatprep.subr.mxu0 0.0
        %3175 = vmatpush1.msra.mxu0 0.0
        %3176 = vmatprep.subr.mxu0 0.0
        %3177 = vmatpush1.msra.mxu0 0.0
        %3178 = vmatprep.subr.mxu0 0.0
        %3179 = vmatpush1.msra.mxu0 0.0
        %3180 = vmatprep.subr.mxu0 0.0
        %3181 = vmatpush1.msra.mxu0 0.0
        %3182 = vmatprep.subr.mxu0 0.0
        %3183 = vmatpush1.msra.mxu0 0.0
        %3184 = vmatprep.subr.mxu0 0.0
        %3185 = vmatpush1.msra.mxu0 0.0
        %3186 = vmatprep.subr.mxu0 0.0
        %3187 = vmatpush1.msra.mxu0 0.0
        %3188 = vmatprep.subr.mxu0 0.0
        %3189 = vmatpush1.msra.mxu0 0.0
        %3190 = vmatprep.subr.mxu0 0.0
        %3191 = vmatpush1.msra.mxu0 0.0
        %3192 = vmatprep.subr.mxu0 0.0
        %3193 = vmatpush1.msra.mxu0 0.0
        %3194 = vmatprep.subr.mxu0 0.0
        %3195 = vmatpush1.msra.mxu0 0.0
        %3196 = vmatprep.subr.mxu0 0.0
        %3197 = vmatpush1.msra.mxu0 0.0
        %3198 = vmatprep.subr.mxu0 0.0
        %3199 = vmatpush1.msra.mxu0 0.0
        %3200 = vmatprep.subr.mxu0 0.0
        %3201 = vmatpush1.msra.mxu0 0.0
        %3202 = vmatprep.subr.mxu0 0.0
        %3203 = vmatpush1.msra.mxu0 0.0
        %3204 = vmatprep.subr.mxu0 0.0
        %3205 = vmatpush1.msra.mxu0 0.0
        %3206 = vmatprep.subr.mxu0 0.0
        %3207 = vmatpush1.msra.mxu0 0.0
        %3208 = vmatprep.subr.mxu0 0.0
        %3209 = vmatpush1.msra.mxu0 0.0
        %3210 = vmatprep.subr.mxu0 0.0
        %3211 = vmatpush1.msra.mxu0 0.0
        %3212 = vmatprep.mubr.f32.mxu0 0.0
        %3213 = vmatmul.mubr.f32.gmra.mrb[0].mxu0 %v3146
        %v3214 = vpop.f32.mrb[0].mxu0
        %v3215 = vadd.f32 0.0, %v3214
        %v3216 = vpop.f32.mrb[0].mxu0
        %3217 = vdwg.mxu0
        %v3219 = vsel %vm2926, %v2966, 0
        %3221 = vmatprep.subr.mxu0 0.0
        %3222 = vmatpush1.msra.mxu0 %v1979
        %3223 = vmatprep.subr.mxu0 0.0
        %3224 = vmatpush1.msra.mxu0 %v1984
        %3225 = vmatprep.subr.mxu0 0.0
        %3226 = vmatpush1.msra.mxu0 0.0
        %3227 = vmatprep.subr.mxu0 0.0
        %3228 = vmatpush1.msra.mxu0 0.0
        %3229 = vmatprep.subr.mxu0 0.0
        %3230 = vmatpush1.msra.mxu0 0.0
        %3231 = vmatprep.subr.mxu0 0.0
        %3232 = vmatpush1.msra.mxu0 0.0
        %3233 = vmatprep.subr.mxu0 0.0
        %3234 = vmatpush1.msra.mxu0 0.0
        %3235 = vmatprep.subr.mxu0 0.0
        %3236 = vmatpush1.msra.mxu0 0.0
        %3237 = vmatprep.subr.mxu0 0.0
        %3238 = vmatpush1.msra.mxu0 0.0
        %3239 = vmatprep.subr.mxu0 0.0
        %3240 = vmatpush1.msra.mxu0 0.0
        %3241 = vmatprep.subr.mxu0 0.0
        %3242 = vmatpush1.msra.mxu0 0.0
        %3243 = vmatprep.subr.mxu0 0.0
        %3244 = vmatpush1.msra.mxu0 0.0
        %3245 = vmatprep.subr.mxu0 0.0
        %3246 = vmatpush1.msra.mxu0 0.0
        %3247 = vmatprep.subr.mxu0 0.0
        %3248 = vmatpush1.msra.mxu0 0.0
        %3249 = vmatprep.subr.mxu0 0.0
        %3250 = vmatpush1.msra.mxu0 0.0
        %3251 = vmatprep.subr.mxu0 0.0
        %3252 = vmatpush1.msra.mxu0 0.0
        %3253 = vmatprep.subr.mxu0 0.0
        %3254 = vmatpush1.msra.mxu0 0.0
        %3255 = vmatprep.subr.mxu0 0.0
        %3256 = vmatpush1.msra.mxu0 0.0
        %3257 = vmatprep.subr.mxu0 0.0
        %3258 = vmatpush1.msra.mxu0 0.0
        %3259 = vmatprep.subr.mxu0 0.0
        %3260 = vmatpush1.msra.mxu0 0.0
        %3261 = vmatprep.subr.mxu0 0.0
        %3262 = vmatpush1.msra.mxu0 0.0
        %3263 = vmatprep.subr.mxu0 0.0
        %3264 = vmatpush1.msra.mxu0 0.0
        %3265 = vmatprep.subr.mxu0 0.0
        %3266 = vmatpush1.msra.mxu0 0.0
        %3267 = vmatprep.subr.mxu0 0.0
        %3268 = vmatpush1.msra.mxu0 0.0
        %3269 = vmatprep.subr.mxu0 0.0
        %3270 = vmatpush1.msra.mxu0 0.0
        %3271 = vmatprep.subr.mxu0 0.0
        %3272 = vmatpush1.msra.mxu0 0.0
        %3273 = vmatprep.subr.mxu0 0.0
        %3274 = vmatpush1.msra.mxu0 0.0
        %3275 = vmatprep.subr.mxu0 0.0
        %3276 = vmatpush1.msra.mxu0 0.0
        %3277 = vmatprep.subr.mxu0 0.0
        %3278 = vmatpush1.msra.mxu0 0.0
        %3279 = vmatprep.subr.mxu0 0.0
        %3280 = vmatpush1.msra.mxu0 0.0
        %3281 = vmatprep.subr.mxu0 0.0
        %3282 = vmatpush1.msra.mxu0 0.0
        %3283 = vmatprep.subr.mxu0 0.0
        %3284 = vmatpush1.msra.mxu0 0.0
        %3285 = vmatprep.mubr.f32.mxu0 0.0
        %3286 = vmatmul.mubr.f32.gmra.mrb[0].mxu0 %v3219
        %v3287 = vpop.f32.mrb[0].mxu0
        %v3288 = vadd.f32 0.0, %v3287
        %v3289 = vpop.f32.mrb[0].mxu0
        %3290 = vdwg.mxu0
        %v3292 = vsel %vm2926, %v2968, 0
        %3294 = vmatprep.subr.mxu0 0.0
        %3295 = vmatpush1.msra.mxu0 %v2054
        %3296 = vmatprep.subr.mxu0 0.0
        %3297 = vmatpush1.msra.mxu0 %v2059
        %3298 = vmatprep.subr.mxu0 0.0
        %3299 = vmatpush1.msra.mxu0 0.0
        %3300 = vmatprep.subr.mxu0 0.0
        %3301 = vmatpush1.msra.mxu0 0.0
        %3302 = vmatprep.subr.mxu0 0.0
        %3303 = vmatpush1.msra.mxu0 0.0
        %3304 = vmatprep.subr.mxu0 0.0
        %3305 = vmatpush1.msra.mxu0 0.0
        %3306 = vmatprep.subr.mxu0 0.0
        %3307 = vmatpush1.msra.mxu0 0.0
        %3308 = vmatprep.subr.mxu0 0.0
        %3309 = vmatpush1.msra.mxu0 0.0
        %3310 = vmatprep.subr.mxu0 0.0
        %3311 = vmatpush1.msra.mxu0 0.0
        %3312 = vmatprep.subr.mxu0 0.0
        %3313 = vmatpush1.msra.mxu0 0.0
        %3314 = vmatprep.subr.mxu0 0.0
        %3315 = vmatpush1.msra.mxu0 0.0
        %3316 = vmatprep.subr.mxu0 0.0
        %3317 = vmatpush1.msra.mxu0 0.0
        %3318 = vmatprep.subr.mxu0 0.0
        %3319 = vmatpush1.msra.mxu0 0.0
        %3320 = vmatprep.subr.mxu0 0.0
        %3321 = vmatpush1.msra.mxu0 0.0
        %3322 = vmatprep.subr.mxu0 0.0
        %3323 = vmatpush1.msra.mxu0 0.0
        %3324 = vmatprep.subr.mxu0 0.0
        %3325 = vmatpush1.msra.mxu0 0.0
        %3326 = vmatprep.subr.mxu0 0.0
        %3327 = vmatpush1.msra.mxu0 0.0
        %3328 = vmatprep.subr.mxu0 0.0
        %3329 = vmatpush1.msra.mxu0 0.0
        %3330 = vmatprep.subr.mxu0 0.0
        %3331 = vmatpush1.msra.mxu0 0.0
        %3332 = vmatprep.subr.mxu0 0.0
        %3333 = vmatpush1.msra.mxu0 0.0
        %3334 = vmatprep.subr.mxu0 0.0
        %3335 = vmatpush1.msra.mxu0 0.0
        %3336 = vmatprep.subr.mxu0 0.0
        %3337 = vmatpush1.msra.mxu0 0.0
        %3338 = vmatprep.subr.mxu0 0.0
        %3339 = vmatpush1.msra.mxu0 0.0
        %3340 = vmatprep.subr.mxu0 0.0
        %3341 = vmatpush1.msra.mxu0 0.0
        %3342 = vmatprep.subr.mxu0 0.0
        %3343 = vmatpush1.msra.mxu0 0.0
        %3344 = vmatprep.subr.mxu0 0.0
        %3345 = vmatpush1.msra.mxu0 0.0
        %3346 = vmatprep.subr.mxu0 0.0
        %3347 = vmatpush1.msra.mxu0 0.0
        %3348 = vmatprep.subr.mxu0 0.0
        %3349 = vmatpush1.msra.mxu0 0.0
        %3350 = vmatprep.subr.mxu0 0.0
        %3351 = vmatpush1.msra.mxu0 0.0
        %3352 = vmatprep.subr.mxu0 0.0
        %3353 = vmatpush1.msra.mxu0 0.0
        %3354 = vmatprep.subr.mxu0 0.0
        %3355 = vmatpush1.msra.mxu0 0.0
        %3356 = vmatprep.subr.mxu0 0.0
        %3357 = vmatpush1.msra.mxu0 0.0
        %3358 = vmatprep.mubr.f32.mxu0 0.0
        %3359 = vmatmul.mubr.f32.gmra.mrb[0].mxu0 %v3292
        %v3360 = vpop.f32.mrb[0].mxu0
        %v3361 = vadd.f32 0.0, %v3360
        %v3362 = vpop.f32.mrb[0].mxu0
        %3363 = vdwg.mxu0
        %v3365 = vsel %vm2926, %v2970, 0
        %3367 = vmatprep.subr.mxu0 0.0
        %3368 = vmatpush1.msra.mxu0 %v2129
        %3369 = vmatprep.subr.mxu0 0.0
        %3370 = vmatpush1.msra.mxu0 %v2134
        %3371 = vmatprep.subr.mxu0 0.0
        %3372 = vmatpush1.msra.mxu0 0.0
        %3373 = vmatprep.subr.mxu0 0.0
        %3374 = vmatpush1.msra.mxu0 0.0
        %3375 = vmatprep.subr.mxu0 0.0
        %3376 = vmatpush1.msra.mxu0 0.0
        %3377 = vmatprep.subr.mxu0 0.0
        %3378 = vmatpush1.msra.mxu0 0.0
        %3379 = vmatprep.subr.mxu0 0.0
        %3380 = vmatpush1.msra.mxu0 0.0
        %3381 = vmatprep.subr.mxu0 0.0
        %3382 = vmatpush1.msra.mxu0 0.0
        %3383 = vmatprep.subr.mxu0 0.0
        %3384 = vmatpush1.msra.mxu0 0.0
        %3385 = vmatprep.subr.mxu0 0.0
        %3386 = vmatpush1.msra.mxu0 0.0
        %3387 = vmatprep.subr.mxu0 0.0
        %3388 = vmatpush1.msra.mxu0 0.0
        %3389 = vmatprep.subr.mxu0 0.0
        %3390 = vmatpush1.msra.mxu0 0.0
        %3391 = vmatprep.subr.mxu0 0.0
        %3392 = vmatpush1.msra.mxu0 0.0
        %3393 = vmatprep.subr.mxu0 0.0
        %3394 = vmatpush1.msra.mxu0 0.0
        %3395 = vmatprep.subr.mxu0 0.0
        %3396 = vmatpush1.msra.mxu0 0.0
        %3397 = vmatprep.subr.mxu0 0.0
        %3398 = vmatpush1.msra.mxu0 0.0
        %3399 = vmatprep.subr.mxu0 0.0
        %3400 = vmatpush1.msra.mxu0 0.0
        %3401 = vmatprep.subr.mxu0 0.0
        %3402 = vmatpush1.msra.mxu0 0.0
        %3403 = vmatprep.subr.mxu0 0.0
        %3404 = vmatpush1.msra.mxu0 0.0
        %3405 = vmatprep.subr.mxu0 0.0
        %3406 = vmatpush1.msra.mxu0 0.0
        %3407 = vmatprep.subr.mxu0 0.0
        %3408 = vmatpush1.msra.mxu0 0.0
        %3409 = vmatprep.subr.mxu0 0.0
        %3410 = vmatpush1.msra.mxu0 0.0
        %3411 = vmatprep.subr.mxu0 0.0
        %3412 = vmatpush1.msra.mxu0 0.0
        %3413 = vmatprep.subr.mxu0 0.0
        %3414 = vmatpush1.msra.mxu0 0.0
        %3415 = vmatprep.subr.mxu0 0.0
        %3416 = vmatpush1.msra.mxu0 0.0
        %3417 = vmatprep.subr.mxu0 0.0
        %3418 = vmatpush1.msra.mxu0 0.0
        %3419 = vmatprep.subr.mxu0 0.0
        %3420 = vmatpush1.msra.mxu0 0.0
        %3421 = vmatprep.subr.mxu0 0.0
        %3422 = vmatpush1.msra.mxu0 0.0
        %3423 = vmatprep.subr.mxu0 0.0
        %3424 = vmatpush1.msra.mxu0 0.0
        %3425 = vmatprep.subr.mxu0 0.0
        %3426 = vmatpush1.msra.mxu0 0.0
        %3427 = vmatprep.subr.mxu0 0.0
        %3428 = vmatpush1.msra.mxu0 0.0
        %3429 = vmatprep.subr.mxu0 0.0
        %3430 = vmatpush1.msra.mxu0 0.0
        %3431 = vmatprep.mubr.f32.mxu0 0.0
        %3432 = vmatmul.mubr.f32.gmra.mrb[0].mxu0 %v3365
        %v3433 = vpop.f32.mrb[0].mxu0
        %v3434 = vadd.f32 0.0, %v3433
        %v3435 = vpop.f32.mrb[0].mxu0
        %3436 = vdwg.mxu0
        %v3438 = vsel %vm2926, %v2972, 0
        %3440 = vmatprep.subr.mxu0 0.0
        %3441 = vmatpush1.msra.mxu0 %v2204
        %3442 = vmatprep.subr.mxu0 0.0
        %3443 = vmatpush1.msra.mxu0 %v2209
        %3444 = vmatprep.subr.mxu0 0.0
        %3445 = vmatpush1.msra.mxu0 0.0
        %3446 = vmatprep.subr.mxu0 0.0
        %3447 = vmatpush1.msra.mxu0 0.0
        %3448 = vmatprep.subr.mxu0 0.0
        %3449 = vmatpush1.msra.mxu0 0.0
        %3450 = vmatprep.subr.mxu0 0.0
        %3451 = vmatpush1.msra.mxu0 0.0
        %3452 = vmatprep.subr.mxu0 0.0
        %3453 = vmatpush1.msra.mxu0 0.0
        %3454 = vmatprep.subr.mxu0 0.0
        %3455 = vmatpush1.msra.mxu0 0.0
        %3456 = vmatprep.subr.mxu0 0.0
        %3457 = vmatpush1.msra.mxu0 0.0
        %3458 = vmatprep.subr.mxu0 0.0
        %3459 = vmatpush1.msra.mxu0 0.0
        %3460 = vmatprep.subr.mxu0 0.0
        %3461 = vmatpush1.msra.mxu0 0.0
        %3462 = vmatprep.subr.mxu0 0.0
        %3463 = vmatpush1.msra.mxu0 0.0
        %3464 = vmatprep.subr.mxu0 0.0
        %3465 = vmatpush1.msra.mxu0 0.0
        %3466 = vmatprep.subr.mxu0 0.0
        %3467 = vmatpush1.msra.mxu0 0.0
        %3468 = vmatprep.subr.mxu0 0.0
        %3469 = vmatpush1.msra.mxu0 0.0
        %3470 = vmatprep.subr.mxu0 0.0
        %3471 = vmatpush1.msra.mxu0 0.0
        %3472 = vmatprep.subr.mxu0 0.0
        %3473 = vmatpush1.msra.mxu0 0.0
        %3474 = vmatprep.subr.mxu0 0.0
        %3475 = vmatpush1.msra.mxu0 0.0
        %3476 = vmatprep.subr.mxu0 0.0
        %3477 = vmatpush1.msra.mxu0 0.0
        %3478 = vmatprep.subr.mxu0 0.0
        %3479 = vmatpush1.msra.mxu0 0.0
        %3480 = vmatprep.subr.mxu0 0.0
        %3481 = vmatpush1.msra.mxu0 0.0
        %3482 = vmatprep.subr.mxu0 0.0
        %3483 = vmatpush1.msra.mxu0 0.0
        %3484 = vmatprep.subr.mxu0 0.0
        %3485 = vmatpush1.msra.mxu0 0.0
        %3486 = vmatprep.subr.mxu0 0.0
        %3487 = vmatpush1.msra.mxu0 0.0
        %3488 = vmatprep.subr.mxu0 0.0
        %3489 = vmatpush1.msra.mxu0 0.0
        %3490 = vmatprep.subr.mxu0 0.0
        %3491 = vmatpush1.msra.mxu0 0.0
        %3492 = vmatprep.subr.mxu0 0.0
        %3493 = vmatpush1.msra.mxu0 0.0
        %3494 = vmatprep.subr.mxu0 0.0
        %3495 = vmatpush1.msra.mxu0 0.0
        %3496 = vmatprep.subr.mxu0 0.0
        %3497 = vmatpush1.msra.mxu0 0.0
        %3498 = vmatprep.subr.mxu0 0.0
        %3499 = vmatpush1.msra.mxu0 0.0
        %3500 = vmatprep.subr.mxu0 0.0
        %3501 = vmatpush1.msra.mxu0 0.0
        %3502 = vmatprep.subr.mxu0 0.0
        %3503 = vmatpush1.msra.mxu0 0.0
        %3504 = vmatprep.mubr.f32.mxu0 0.0
        %3505 = vmatmul.mubr.f32.gmra.mrb[0].mxu0 %v3438
        %v3506 = vpop.f32.mrb[0].mxu0
        %v3507 = vadd.f32 0.0, %v3506
        %v3508 = vpop.f32.mrb[0].mxu0
        %3509 = vdwg.mxu0
        %v3511 = vsel %vm2926, %v2974, 0
        %3513 = vmatprep.subr.mxu0 0.0
        %3514 = vmatpush1.msra.mxu0 %v2279
        %3515 = vmatprep.subr.mxu0 0.0
        %3516 = vmatpush1.msra.mxu0 %v2284
        %3517 = vmatprep.subr.mxu0 0.0
        %3518 = vmatpush1.msra.mxu0 0.0
        %3519 = vmatprep.subr.mxu0 0.0
        %3520 = vmatpush1.msra.mxu0 0.0
        %3521 = vmatprep.subr.mxu0 0.0
        %3522 = vmatpush1.msra.mxu0 0.0
        %3523 = vmatprep.subr.mxu0 0.0
        %3524 = vmatpush1.msra.mxu0 0.0
        %3525 = vmatprep.subr.mxu0 0.0
        %3526 = vmatpush1.msra.mxu0 0.0
        %3527 = vmatprep.subr.mxu0 0.0
        %3528 = vmatpush1.msra.mxu0 0.0
        %3529 = vmatprep.subr.mxu0 0.0
        %3530 = vmatpush1.msra.mxu0 0.0
        %3531 = vmatprep.subr.mxu0 0.0
        %3532 = vmatpush1.msra.mxu0 0.0
        %3533 = vmatprep.subr.mxu0 0.0
        %3534 = vmatpush1.msra.mxu0 0.0
        %3535 = vmatprep.subr.mxu0 0.0
        %3536 = vmatpush1.msra.mxu0 0.0
        %3537 = vmatprep.subr.mxu0 0.0
        %3538 = vmatpush1.msra.mxu0 0.0
        %3539 = vmatprep.subr.mxu0 0.0
        %3540 = vmatpush1.msra.mxu0 0.0
        %3541 = vmatprep.subr.mxu0 0.0
        %3542 = vmatpush1.msra.mxu0 0.0
        %3543 = vmatprep.subr.mxu0 0.0
        %3544 = vmatpush1.msra.mxu0 0.0
        %3545 = vmatprep.subr.mxu0 0.0
        %3546 = vmatpush1.msra.mxu0 0.0
        %3547 = vmatprep.subr.mxu0 0.0
        %3548 = vmatpush1.msra.mxu0 0.0
        %3549 = vmatprep.subr.mxu0 0.0
        %3550 = vmatpush1.msra.mxu0 0.0
        %3551 = vmatprep.subr.mxu0 0.0
        %3552 = vmatpush1.msra.mxu0 0.0
        %3553 = vmatprep.subr.mxu0 0.0
        %3554 = vmatpush1.msra.mxu0 0.0
        %3555 = vmatprep.subr.mxu0 0.0
        %3556 = vmatpush1.msra.mxu0 0.0
        %3557 = vmatprep.subr.mxu0 0.0
        %3558 = vmatpush1.msra.mxu0 0.0
        %3559 = vmatprep.subr.mxu0 0.0
        %3560 = vmatpush1.msra.mxu0 0.0
        %3561 = vmatprep.subr.mxu0 0.0
        %3562 = vmatpush1.msra.mxu0 0.0
        %3563 = vmatprep.subr.mxu0 0.0
        %3564 = vmatpush1.msra.mxu0 0.0
        %3565 = vmatprep.subr.mxu0 0.0
        %3566 = vmatpush1.msra.mxu0 0.0
        %3567 = vmatprep.subr.mxu0 0.0
        %3568 = vmatpush1.msra.mxu0 0.0
        %3569 = vmatprep.subr.mxu0 0.0
        %3570 = vmatpush1.msra.mxu0 0.0
        %3571 = vmatprep.subr.mxu0 0.0
        %3572 = vmatpush1.msra.mxu0 0.0
        %3573 = vmatprep.subr.mxu0 0.0
        %3574 = vmatpush1.msra.mxu0 0.0
        %3575 = vmatprep.subr.mxu0 0.0
        %3576 = vmatpush1.msra.mxu0 0.0
        %3577 = vmatprep.mubr.f32.mxu0 0.0
        %3578 = vmatmul.mubr.f32.gmra.mrb[0].mxu0 %v3511
        %v3579 = vpop.f32.mrb[0].mxu0
        %v3580 = vadd.f32 0.0, %v3579
        %v3581 = vpop.f32.mrb[0].mxu0
        %3582 = vdwg.mxu0
        %v3583 = vrcp.pop %v2977
        %v3584 = vrcp.pop %v2980
        %v3585 = vrcp.pop %v2983
        %v3586 = vrcp.pop %v2986
        %v3587 = vrcp.pop %v2989
        %v3588 = vrcp.pop %v2992
        %v3589 = vrcp.pop %v2995
        %v3590 = vrcp.pop %v2998
        %v3591 = vmul.f32 %v3069, %v3583
        %v3592 = vmul.f32 %v3142, %v3584
        %v3593 = vmul.f32 %v3215, %v3585
        %v3594 = vmul.f32 %v3288, %v3586
        %v3595 = vmul.f32 %v3361, %v3587
        %v3596 = vmul.f32 %v3434, %v3588
        %v3597 = vmul.f32 %v3507, %v3589
        %v3598 = vmul.f32 %v3580, %v3590
        %v3599 = vld [vmem:[%s7] sm:$0xf]
        %v3600 = vld [vmem:[%s7 + $0x4] sm:$0xf]
        %v3601 = vld [vmem:[%s7 + $0x8] sm:$0xf]
        %v3602 = vld [vmem:[%s7 + $0xc] sm:$0xf]
        %v3603 = vld [vmem:[%s7 + $0x10] sm:$0xf]
        %v3604 = vld [vmem:[%s7 + $0x14] sm:$0xf]
        %v3605 = vld [vmem:[%s7 + $0x18] sm:$0xf]
        %v3606 = vld [vmem:[%s7 + $0x1c] sm:$0xf]
        %v3608 = vsel %vm2293, %v3591, 0
        %vm3610 = vcmask 1043456
        %v3612 = vsel %vm3610, %v3599, 0
        %3614 = vmatprep.subr.mxu0 0.0
        %3615 = vmatpush1.msra.mxu0 %v3612
        %3616 = vmatprep.subr.mxu0 0.0
        %3617 = vmatpush1.msra.mxu0 0.0
        %3618 = vmatprep.subr.mxu0 0.0
        %3619 = vmatpush1.msra.mxu0 0.0
        %3620 = vmatprep.subr.mxu0 0.0
        %3621 = vmatpush1.msra.mxu0 0.0
        %3622 = vmatprep.subr.mxu0 0.0
        %3623 = vmatpush1.msra.mxu0 0.0
        %3624 = vmatprep.subr.mxu0 0.0
        %3625 = vmatpush1.msra.mxu0 0.0
        %3626 = vmatprep.subr.mxu0 0.0
        %3627 = vmatpush1.msra.mxu0 0.0
        %3628 = vmatprep.subr.mxu0 0.0
        %3629 = vmatpush1.msra.mxu0 0.0
        %3630 = vmatprep.subr.mxu0 0.0
        %3631 = vmatpush1.msra.mxu0 0.0
        %3632 = vmatprep.subr.mxu0 0.0
        %3633 = vmatpush1.msra.mxu0 0.0
        %3634 = vmatprep.subr.mxu0 0.0
        %3635 = vmatpush1.msra.mxu0 0.0
        %3636 = vmatprep.subr.mxu0 0.0
        %3637 = vmatpush1.msra.mxu0 0.0
        %3638 = vmatprep.subr.mxu0 0.0
        %3639 = vmatpush1.msra.mxu0 0.0
        %3640 = vmatprep.subr.mxu0 0.0
        %3641 = vmatpush1.msra.mxu0 0.0
        %3642 = vmatprep.subr.mxu0 0.0
        %3643 = vmatpush1.msra.mxu0 0.0
        %3644 = vmatprep.subr.mxu0 0.0
        %3645 = vmatpush1.msra.mxu0 0.0
        %3646 = vmatprep.subr.mxu0 0.0
        %3647 = vmatpush1.msra.mxu0 0.0
        %3648 = vmatprep.subr.mxu0 0.0
        %3649 = vmatpush1.msra.mxu0 0.0
        %3650 = vmatprep.subr.mxu0 0.0
        %3651 = vmatpush1.msra.mxu0 0.0
        %3652 = vmatprep.subr.mxu0 0.0
        %3653 = vmatpush1.msra.mxu0 0.0
        %3654 = vmatprep.subr.mxu0 0.0
        %3655 = vmatpush1.msra.mxu0 0.0
        %3656 = vmatprep.subr.mxu0 0.0
        %3657 = vmatpush1.msra.mxu0 0.0
        %3658 = vmatprep.subr.mxu0 0.0
        %3659 = vmatpush1.msra.mxu0 0.0
        %3660 = vmatprep.subr.mxu0 0.0
        %3661 = vmatpush1.msra.mxu0 0.0
        %3662 = vmatprep.subr.mxu0 0.0
        %3663 = vmatpush1.msra.mxu0 0.0
        %3664 = vmatprep.subr.mxu0 0.0
        %3665 = vmatpush1.msra.mxu0 0.0
        %3666 = vmatprep.subr.mxu0 0.0
        %3667 = vmatpush1.msra.mxu0 0.0
        %3668 = vmatprep.subr.mxu0 0.0
        %3669 = vmatpush1.msra.mxu0 0.0
        %3670 = vmatprep.subr.mxu0 0.0
        %3671 = vmatpush1.msra.mxu0 0.0
        %3672 = vmatprep.subr.mxu0 0.0
        %3673 = vmatpush1.msra.mxu0 0.0
        %3674 = vmatprep.subr.mxu0 0.0
        %3675 = vmatpush1.msra.mxu0 0.0
        %3676 = vmatprep.subr.mxu0 0.0
        %3677 = vmatpush1.msra.mxu0 0.0
        %3678 = vmatprep.mubr.f32.mxu0 0.0
        %3679 = vmatmul.mubr.f32.gmra.mrb[0].mxu0 %v3608
        %v3680 = vpop.f32.mrb[0].mxu0
        %v3681 = vadd.f32 0.0, %v3680
        %v3682 = vpop.f32.mrb[0].mxu0
        %3683 = vdwg.mxu0
        %v3685 = vsel %vm2293, %v3592, 0
        %v3688 = vsel %vm3610, %v3600, 0
        %3690 = vmatprep.subr.mxu0 0.0
        %3691 = vmatpush1.msra.mxu0 %v3688
        %3692 = vmatprep.subr.mxu0 0.0
        %3693 = vmatpush1.msra.mxu0 0.0
        %3694 = vmatprep.subr.mxu0 0.0
        %3695 = vmatpush1.msra.mxu0 0.0
        %3696 = vmatprep.subr.mxu0 0.0
        %3697 = vmatpush1.msra.mxu0 0.0
        %3698 = vmatprep.subr.mxu0 0.0
        %3699 = vmatpush1.msra.mxu0 0.0
        %3700 = vmatprep.subr.mxu0 0.0
        %3701 = vmatpush1.msra.mxu0 0.0
        %3702 = vmatprep.subr.mxu0 0.0
        %3703 = vmatpush1.msra.mxu0 0.0
        %3704 = vmatprep.subr.mxu0 0.0
        %3705 = vmatpush1.msra.mxu0 0.0
        %3706 = vmatprep.subr.mxu0 0.0
        %3707 = vmatpush1.msra.mxu0 0.0
        %3708 = vmatprep.subr.mxu0 0.0
        %3709 = vmatpush1.msra.mxu0 0.0
        %3710 = vmatprep.subr.mxu0 0.0
        %3711 = vmatpush1.msra.mxu0 0.0
        %3712 = vmatprep.subr.mxu0 0.0
        %3713 = vmatpush1.msra.mxu0 0.0
        %3714 = vmatprep.subr.mxu0 0.0
        %3715 = vmatpush1.msra.mxu0 0.0
        %3716 = vmatprep.subr.mxu0 0.0
        %3717 = vmatpush1.msra.mxu0 0.0
        %3718 = vmatprep.subr.mxu0 0.0
        %3719 = vmatpush1.msra.mxu0 0.0
        %3720 = vmatprep.subr.mxu0 0.0
        %3721 = vmatpush1.msra.mxu0 0.0
        %3722 = vmatprep.subr.mxu0 0.0
        %3723 = vmatpush1.msra.mxu0 0.0
        %3724 = vmatprep.subr.mxu0 0.0
        %3725 = vmatpush1.msra.mxu0 0.0
        %3726 = vmatprep.subr.mxu0 0.0
        %3727 = vmatpush1.msra.mxu0 0.0
        %3728 = vmatprep.subr.mxu0 0.0
        %3729 = vmatpush1.msra.mxu0 0.0
        %3730 = vmatprep.subr.mxu0 0.0
        %3731 = vmatpush1.msra.mxu0 0.0
        %3732 = vmatprep.subr.mxu0 0.0
        %3733 = vmatpush1.msra.mxu0 0.0
        %3734 = vmatprep.subr.mxu0 0.0
        %3735 = vmatpush1.msra.mxu0 0.0
        %3736 = vmatprep.subr.mxu0 0.0
        %3737 = vmatpush1.msra.mxu0 0.0
        %3738 = vmatprep.subr.mxu0 0.0
        %3739 = vmatpush1.msra.mxu0 0.0
        %3740 = vmatprep.subr.mxu0 0.0
        %3741 = vmatpush1.msra.mxu0 0.0
        %3742 = vmatprep.subr.mxu0 0.0
        %3743 = vmatpush1.msra.mxu0 0.0
        %3744 = vmatprep.subr.mxu0 0.0
        %3745 = vmatpush1.msra.mxu0 0.0
        %3746 = vmatprep.subr.mxu0 0.0
        %3747 = vmatpush1.msra.mxu0 0.0
        %3748 = vmatprep.subr.mxu0 0.0
        %3749 = vmatpush1.msra.mxu0 0.0
        %3750 = vmatprep.subr.mxu0 0.0
        %3751 = vmatpush1.msra.mxu0 0.0
        %3752 = vmatprep.subr.mxu0 0.0
        %3753 = vmatpush1.msra.mxu0 0.0
        %3754 = vmatprep.mubr.f32.mxu0 0.0
        %3755 = vmatmul.mubr.f32.gmra.mrb[0].mxu0 %v3685
        %v3756 = vpop.f32.mrb[0].mxu0
        %v3757 = vadd.f32 0.0, %v3756
        %v3758 = vpop.f32.mrb[0].mxu0
        %3759 = vdwg.mxu0
        %v3761 = vsel %vm2293, %v3593, 0
        %v3764 = vsel %vm3610, %v3601, 0
        %3766 = vmatprep.subr.mxu0 0.0
        %3767 = vmatpush1.msra.mxu0 %v3764
        %3768 = vmatprep.subr.mxu0 0.0
        %3769 = vmatpush1.msra.mxu0 0.0
        %3770 = vmatprep.subr.mxu0 0.0
        %3771 = vmatpush1.msra.mxu0 0.0
        %3772 = vmatprep.subr.mxu0 0.0
        %3773 = vmatpush1.msra.mxu0 0.0
        %3774 = vmatprep.subr.mxu0 0.0
        %3775 = vmatpush1.msra.mxu0 0.0
        %3776 = vmatprep.subr.mxu0 0.0
        %3777 = vmatpush1.msra.mxu0 0.0
        %3778 = vmatprep.subr.mxu0 0.0
        %3779 = vmatpush1.msra.mxu0 0.0
        %3780 = vmatprep.subr.mxu0 0.0
        %3781 = vmatpush1.msra.mxu0 0.0
        %3782 = vmatprep.subr.mxu0 0.0
        %3783 = vmatpush1.msra.mxu0 0.0
        %3784 = vmatprep.subr.mxu0 0.0
        %3785 = vmatpush1.msra.mxu0 0.0
        %3786 = vmatprep.subr.mxu0 0.0
        %3787 = vmatpush1.msra.mxu0 0.0
        %3788 = vmatprep.subr.mxu0 0.0
        %3789 = vmatpush1.msra.mxu0 0.0
        %3790 = vmatprep.subr.mxu0 0.0
        %3791 = vmatpush1.msra.mxu0 0.0
        %3792 = vmatprep.subr.mxu0 0.0
        %3793 = vmatpush1.msra.mxu0 0.0
        %3794 = vmatprep.subr.mxu0 0.0
        %3795 = vmatpush1.msra.mxu0 0.0
        %3796 = vmatprep.subr.mxu0 0.0
        %3797 = vmatpush1.msra.mxu0 0.0
        %3798 = vmatprep.subr.mxu0 0.0
        %3799 = vmatpush1.msra.mxu0 0.0
        %3800 = vmatprep.subr.mxu0 0.0
        %3801 = vmatpush1.msra.mxu0 0.0
        %3802 = vmatprep.subr.mxu0 0.0
        %3803 = vmatpush1.msra.mxu0 0.0
        %3804 = vmatprep.subr.mxu0 0.0
        %3805 = vmatpush1.msra.mxu0 0.0
        %3806 = vmatprep.subr.mxu0 0.0
        %3807 = vmatpush1.msra.mxu0 0.0
        %3808 = vmatprep.subr.mxu0 0.0
        %3809 = vmatpush1.msra.mxu0 0.0
        %3810 = vmatprep.subr.mxu0 0.0
        %3811 = vmatpush1.msra.mxu0 0.0
        %3812 = vmatprep.subr.mxu0 0.0
        %3813 = vmatpush1.msra.mxu0 0.0
        %3814 = vmatprep.subr.mxu0 0.0
        %3815 = vmatpush1.msra.mxu0 0.0
        %3816 = vmatprep.subr.mxu0 0.0
        %3817 = vmatpush1.msra.mxu0 0.0
        %3818 = vmatprep.subr.mxu0 0.0
        %3819 = vmatpush1.msra.mxu0 0.0
        %3820 = vmatprep.subr.mxu0 0.0
        %3821 = vmatpush1.msra.mxu0 0.0
        %3822 = vmatprep.subr.mxu0 0.0
        %3823 = vmatpush1.msra.mxu0 0.0
        %3824 = vmatprep.subr.mxu0 0.0
        %3825 = vmatpush1.msra.mxu0 0.0
        %3826 = vmatprep.subr.mxu0 0.0
        %3827 = vmatpush1.msra.mxu0 0.0
        %3828 = vmatprep.subr.mxu0 0.0
        %3829 = vmatpush1.msra.mxu0 0.0
        %3830 = vmatprep.mubr.f32.mxu0 0.0
        %3831 = vmatmul.mubr.f32.gmra.mrb[0].mxu0 %v3761
        %v3832 = vpop.f32.mrb[0].mxu0
        %v3833 = vadd.f32 0.0, %v3832
        %v3834 = vpop.f32.mrb[0].mxu0
        %3835 = vdwg.mxu0
        %v3837 = vsel %vm2293, %v3594, 0
        %v3840 = vsel %vm3610, %v3602, 0
        %3842 = vmatprep.subr.mxu0 0.0
        %3843 = vmatpush1.msra.mxu0 %v3840
        %3844 = vmatprep.subr.mxu0 0.0
        %3845 = vmatpush1.msra.mxu0 0.0
        %3846 = vmatprep.subr.mxu0 0.0
        %3847 = vmatpush1.msra.mxu0 0.0
        %3848 = vmatprep.subr.mxu0 0.0
        %3849 = vmatpush1.msra.mxu0 0.0
        %3850 = vmatprep.subr.mxu0 0.0
        %3851 = vmatpush1.msra.mxu0 0.0
        %3852 = vmatprep.subr.mxu0 0.0
        %3853 = vmatpush1.msra.mxu0 0.0
        %3854 = vmatprep.subr.mxu0 0.0
        %3855 = vmatpush1.msra.mxu0 0.0
        %3856 = vmatprep.subr.mxu0 0.0
        %3857 = vmatpush1.msra.mxu0 0.0
        %3858 = vmatprep.subr.mxu0 0.0
        %3859 = vmatpush1.msra.mxu0 0.0
        %3860 = vmatprep.subr.mxu0 0.0
        %3861 = vmatpush1.msra.mxu0 0.0
        %3862 = vmatprep.subr.mxu0 0.0
        %3863 = vmatpush1.msra.mxu0 0.0
        %3864 = vmatprep.subr.mxu0 0.0
        %3865 = vmatpush1.msra.mxu0 0.0
        %3866 = vmatprep.subr.mxu0 0.0
        %3867 = vmatpush1.msra.mxu0 0.0
        %3868 = vmatprep.subr.mxu0 0.0
        %3869 = vmatpush1.msra.mxu0 0.0
        %3870 = vmatprep.subr.mxu0 0.0
        %3871 = vmatpush1.msra.mxu0 0.0
        %3872 = vmatprep.subr.mxu0 0.0
        %3873 = vmatpush1.msra.mxu0 0.0
        %3874 = vmatprep.subr.mxu0 0.0
        %3875 = vmatpush1.msra.mxu0 0.0
        %3876 = vmatprep.subr.mxu0 0.0
        %3877 = vmatpush1.msra.mxu0 0.0
        %3878 = vmatprep.subr.mxu0 0.0
        %3879 = vmatpush1.msra.mxu0 0.0
        %3880 = vmatprep.subr.mxu0 0.0
        %3881 = vmatpush1.msra.mxu0 0.0
        %3882 = vmatprep.subr.mxu0 0.0
        %3883 = vmatpush1.msra.mxu0 0.0
        %3884 = vmatprep.subr.mxu0 0.0
        %3885 = vmatpush1.msra.mxu0 0.0
        %3886 = vmatprep.subr.mxu0 0.0
        %3887 = vmatpush1.msra.mxu0 0.0
        %3888 = vmatprep.subr.mxu0 0.0
        %3889 = vmatpush1.msra.mxu0 0.0
        %3890 = vmatprep.subr.mxu0 0.0
        %3891 = vmatpush1.msra.mxu0 0.0
        %3892 = vmatprep.subr.mxu0 0.0
        %3893 = vmatpush1.msra.mxu0 0.0
        %3894 = vmatprep.subr.mxu0 0.0
        %3895 = vmatpush1.msra.mxu0 0.0
        %3896 = vmatprep.subr.mxu0 0.0
        %3897 = vmatpush1.msra.mxu0 0.0
        %3898 = vmatprep.subr.mxu0 0.0
        %3899 = vmatpush1.msra.mxu0 0.0
        %3900 = vmatprep.subr.mxu0 0.0
        %3901 = vmatpush1.msra.mxu0 0.0
        %3902 = vmatprep.subr.mxu0 0.0
        %3903 = vmatpush1.msra.mxu0 0.0
        %3904 = vmatprep.subr.mxu0 0.0
        %3905 = vmatpush1.msra.mxu0 0.0
        %3906 = vmatprep.mubr.f32.mxu0 0.0
        %3907 = vmatmul.mubr.f32.gmra.mrb[0].mxu0 %v3837
        %v3908 = vpop.f32.mrb[0].mxu0
        %v3909 = vadd.f32 0.0, %v3908
        %v3910 = vpop.f32.mrb[0].mxu0
        %3911 = vdwg.mxu0
        %v3913 = vsel %vm2293, %v3595, 0
        %v3916 = vsel %vm3610, %v3603, 0
        %3918 = vmatprep.subr.mxu0 0.0
        %3919 = vmatpush1.msra.mxu0 %v3916
        %3920 = vmatprep.subr.mxu0 0.0
        %3921 = vmatpush1.msra.mxu0 0.0
        %3922 = vmatprep.subr.mxu0 0.0
        %3923 = vmatpush1.msra.mxu0 0.0
        %3924 = vmatprep.subr.mxu0 0.0
        %3925 = vmatpush1.msra.mxu0 0.0
        %3926 = vmatprep.subr.mxu0 0.0
        %3927 = vmatpush1.msra.mxu0 0.0
        %3928 = vmatprep.subr.mxu0 0.0
        %3929 = vmatpush1.msra.mxu0 0.0
        %3930 = vmatprep.subr.mxu0 0.0
        %3931 = vmatpush1.msra.mxu0 0.0
        %3932 = vmatprep.subr.mxu0 0.0
        %3933 = vmatpush1.msra.mxu0 0.0
        %3934 = vmatprep.subr.mxu0 0.0
        %3935 = vmatpush1.msra.mxu0 0.0
        %3936 = vmatprep.subr.mxu0 0.0
        %3937 = vmatpush1.msra.mxu0 0.0
        %3938 = vmatprep.subr.mxu0 0.0
        %3939 = vmatpush1.msra.mxu0 0.0
        %3940 = vmatprep.subr.mxu0 0.0
        %3941 = vmatpush1.msra.mxu0 0.0
        %3942 = vmatprep.subr.mxu0 0.0
        %3943 = vmatpush1.msra.mxu0 0.0
        %3944 = vmatprep.subr.mxu0 0.0
        %3945 = vmatpush1.msra.mxu0 0.0
        %3946 = vmatprep.subr.mxu0 0.0
        %3947 = vmatpush1.msra.mxu0 0.0
        %3948 = vmatprep.subr.mxu0 0.0
        %3949 = vmatpush1.msra.mxu0 0.0
        %3950 = vmatprep.subr.mxu0 0.0
        %3951 = vmatpush1.msra.mxu0 0.0
        %3952 = vmatprep.subr.mxu0 0.0
        %3953 = vmatpush1.msra.mxu0 0.0
        %3954 = vmatprep.subr.mxu0 0.0
        %3955 = vmatpush1.msra.mxu0 0.0
        %3956 = vmatprep.subr.mxu0 0.0
        %3957 = vmatpush1.msra.mxu0 0.0
        %3958 = vmatprep.subr.mxu0 0.0
        %3959 = vmatpush1.msra.mxu0 0.0
        %3960 = vmatprep.subr.mxu0 0.0
        %3961 = vmatpush1.msra.mxu0 0.0
        %3962 = vmatprep.subr.mxu0 0.0
        %3963 = vmatpush1.msra.mxu0 0.0
        %3964 = vmatprep.subr.mxu0 0.0
        %3965 = vmatpush1.msra.mxu0 0.0
        %3966 = vmatprep.subr.mxu0 0.0
        %3967 = vmatpush1.msra.mxu0 0.0
        %3968 = vmatprep.subr.mxu0 0.0
        %3969 = vmatpush1.msra.mxu0 0.0
        %3970 = vmatprep.subr.mxu0 0.0
        %3971 = vmatpush1.msra.mxu0 0.0
        %3972 = vmatprep.subr.mxu0 0.0
        %3973 = vmatpush1.msra.mxu0 0.0
        %3974 = vmatprep.subr.mxu0 0.0
        %3975 = vmatpush1.msra.mxu0 0.0
        %3976 = vmatprep.subr.mxu0 0.0
        %3977 = vmatpush1.msra.mxu0 0.0
        %3978 = vmatprep.subr.mxu0 0.0
        %3979 = vmatpush1.msra.mxu0 0.0
        %3980 = vmatprep.subr.mxu0 0.0
        %3981 = vmatpush1.msra.mxu0 0.0
        %3982 = vmatprep.mubr.f32.mxu0 0.0
        %3983 = vmatmul.mubr.f32.gmra.mrb[0].mxu0 %v3913
        %v3984 = vpop.f32.mrb[0].mxu0
        %v3985 = vadd.f32 0.0, %v3984
        %v3986 = vpop.f32.mrb[0].mxu0
        %3987 = vdwg.mxu0
        %v3989 = vsel %vm2293, %v3596, 0
        %v3992 = vsel %vm3610, %v3604, 0
        %3994 = vmatprep.subr.mxu0 0.0
        %3995 = vmatpush1.msra.mxu0 %v3992
        %3996 = vmatprep.subr.mxu0 0.0
        %3997 = vmatpush1.msra.mxu0 0.0
        %3998 = vmatprep.subr.mxu0 0.0
        %3999 = vmatpush1.msra.mxu0 0.0
        %4000 = vmatprep.subr.mxu0 0.0
        %4001 = vmatpush1.msra.mxu0 0.0
        %4002 = vmatprep.subr.mxu0 0.0
        %4003 = vmatpush1.msra.mxu0 0.0
        %4004 = vmatprep.subr.mxu0 0.0
        %4005 = vmatpush1.msra.mxu0 0.0
        %4006 = vmatprep.subr.mxu0 0.0
        %4007 = vmatpush1.msra.mxu0 0.0
        %4008 = vmatprep.subr.mxu0 0.0
        %4009 = vmatpush1.msra.mxu0 0.0
        %4010 = vmatprep.subr.mxu0 0.0
        %4011 = vmatpush1.msra.mxu0 0.0
        %4012 = vmatprep.subr.mxu0 0.0
        %4013 = vmatpush1.msra.mxu0 0.0
        %4014 = vmatprep.subr.mxu0 0.0
        %4015 = vmatpush1.msra.mxu0 0.0
        %4016 = vmatprep.subr.mxu0 0.0
        %4017 = vmatpush1.msra.mxu0 0.0
        %4018 = vmatprep.subr.mxu0 0.0
        %4019 = vmatpush1.msra.mxu0 0.0
        %4020 = vmatprep.subr.mxu0 0.0
        %4021 = vmatpush1.msra.mxu0 0.0
        %4022 = vmatprep.subr.mxu0 0.0
        %4023 = vmatpush1.msra.mxu0 0.0
        %4024 = vmatprep.subr.mxu0 0.0
        %4025 = vmatpush1.msra.mxu0 0.0
        %4026 = vmatprep.subr.mxu0 0.0
        %4027 = vmatpush1.msra.mxu0 0.0
        %4028 = vmatprep.subr.mxu0 0.0
        %4029 = vmatpush1.msra.mxu0 0.0
        %4030 = vmatprep.subr.mxu0 0.0
        %4031 = vmatpush1.msra.mxu0 0.0
        %4032 = vmatprep.subr.mxu0 0.0
        %4033 = vmatpush1.msra.mxu0 0.0
        %4034 = vmatprep.subr.mxu0 0.0
        %4035 = vmatpush1.msra.mxu0 0.0
        %4036 = vmatprep.subr.mxu0 0.0
        %4037 = vmatpush1.msra.mxu0 0.0
        %4038 = vmatprep.subr.mxu0 0.0
        %4039 = vmatpush1.msra.mxu0 0.0
        %4040 = vmatprep.subr.mxu0 0.0
        %4041 = vmatpush1.msra.mxu0 0.0
        %4042 = vmatprep.subr.mxu0 0.0
        %4043 = vmatpush1.msra.mxu0 0.0
        %4044 = vmatprep.subr.mxu0 0.0
        %4045 = vmatpush1.msra.mxu0 0.0
        %4046 = vmatprep.subr.mxu0 0.0
        %4047 = vmatpush1.msra.mxu0 0.0
        %4048 = vmatprep.subr.mxu0 0.0
        %4049 = vmatpush1.msra.mxu0 0.0
        %4050 = vmatprep.subr.mxu0 0.0
        %4051 = vmatpush1.msra.mxu0 0.0
        %4052 = vmatprep.subr.mxu0 0.0
        %4053 = vmatpush1.msra.mxu0 0.0
        %4054 = vmatprep.subr.mxu0 0.0
        %4055 = vmatpush1.msra.mxu0 0.0
        %4056 = vmatprep.subr.mxu0 0.0
        %4057 = vmatpush1.msra.mxu0 0.0
        %4058 = vmatprep.mubr.f32.mxu0 0.0
        %4059 = vmatmul.mubr.f32.gmra.mrb[0].mxu0 %v3989
        %v4060 = vpop.f32.mrb[0].mxu0
        %v4061 = vadd.f32 0.0, %v4060
        %v4062 = vpop.f32.mrb[0].mxu0
        %4063 = vdwg.mxu0
        %v4065 = vsel %vm2293, %v3597, 0
        %v4068 = vsel %vm3610, %v3605, 0
        %4070 = vmatprep.subr.mxu0 0.0
        %4071 = vmatpush1.msra.mxu0 %v4068
        %4072 = vmatprep.subr.mxu0 0.0
        %4073 = vmatpush1.msra.mxu0 0.0
        %4074 = vmatprep.subr.mxu0 0.0
        %4075 = vmatpush1.msra.mxu0 0.0
        %4076 = vmatprep.subr.mxu0 0.0
        %4077 = vmatpush1.msra.mxu0 0.0
        %4078 = vmatprep.subr.mxu0 0.0
        %4079 = vmatpush1.msra.mxu0 0.0
        %4080 = vmatprep.subr.mxu0 0.0
        %4081 = vmatpush1.msra.mxu0 0.0
        %4082 = vmatprep.subr.mxu0 0.0
        %4083 = vmatpush1.msra.mxu0 0.0
        %4084 = vmatprep.subr.mxu0 0.0
        %4085 = vmatpush1.msra.mxu0 0.0
        %4086 = vmatprep.subr.mxu0 0.0
        %4087 = vmatpush1.msra.mxu0 0.0
        %4088 = vmatprep.subr.mxu0 0.0
        %4089 = vmatpush1.msra.mxu0 0.0
        %4090 = vmatprep.subr.mxu0 0.0
        %4091 = vmatpush1.msra.mxu0 0.0
        %4092 = vmatprep.subr.mxu0 0.0
        %4093 = vmatpush1.msra.mxu0 0.0
        %4094 = vmatprep.subr.mxu0 0.0
        %4095 = vmatpush1.msra.mxu0 0.0
        %4096 = vmatprep.subr.mxu0 0.0
        %4097 = vmatpush1.msra.mxu0 0.0
        %4098 = vmatprep.subr.mxu0 0.0
        %4099 = vmatpush1.msra.mxu0 0.0
        %4100 = vmatprep.subr.mxu0 0.0
        %4101 = vmatpush1.msra.mxu0 0.0
        %4102 = vmatprep.subr.mxu0 0.0
        %4103 = vmatpush1.msra.mxu0 0.0
        %4104 = vmatprep.subr.mxu0 0.0
        %4105 = vmatpush1.msra.mxu0 0.0
        %4106 = vmatprep.subr.mxu0 0.0
        %4107 = vmatpush1.msra.mxu0 0.0
        %4108 = vmatprep.subr.mxu0 0.0
        %4109 = vmatpush1.msra.mxu0 0.0
        %4110 = vmatprep.subr.mxu0 0.0
        %4111 = vmatpush1.msra.mxu0 0.0
        %4112 = vmatprep.subr.mxu0 0.0
        %4113 = vmatpush1.msra.mxu0 0.0
        %4114 = vmatprep.subr.mxu0 0.0
        %4115 = vmatpush1.msra.mxu0 0.0
        %4116 = vmatprep.subr.mxu0 0.0
        %4117 = vmatpush1.msra.mxu0 0.0
        %4118 = vmatprep.subr.mxu0 0.0
        %4119 = vmatpush1.msra.mxu0 0.0
        %4120 = vmatprep.subr.mxu0 0.0
        %4121 = vmatpush1.msra.mxu0 0.0
        %4122 = vmatprep.subr.mxu0 0.0
        %4123 = vmatpush1.msra.mxu0 0.0
        %4124 = vmatprep.subr.mxu0 0.0
        %4125 = vmatpush1.msra.mxu0 0.0
        %4126 = vmatprep.subr.mxu0 0.0
        %4127 = vmatpush1.msra.mxu0 0.0
        %4128 = vmatprep.subr.mxu0 0.0
        %4129 = vmatpush1.msra.mxu0 0.0
        %4130 = vmatprep.subr.mxu0 0.0
        %4131 = vmatpush1.msra.mxu0 0.0
        %4132 = vmatprep.subr.mxu0 0.0
        %4133 = vmatpush1.msra.mxu0 0.0
        %4134 = vmatprep.mubr.f32.mxu0 0.0
        %4135 = vmatmul.mubr.f32.gmra.mrb[0].mxu0 %v4065
        %v4136 = vpop.f32.mrb[0].mxu0
        %v4137 = vadd.f32 0.0, %v4136
        %v4138 = vpop.f32.mrb[0].mxu0
        %4139 = vdwg.mxu0
        %v4141 = vsel %vm2293, %v3598, 0
        %v4144 = vsel %vm3610, %v3606, 0
        %4146 = vmatprep.subr.mxu0 0.0
        %4147 = vmatpush1.msra.mxu0 %v4144
        %4148 = vmatprep.subr.mxu0 0.0
        %4149 = vmatpush1.msra.mxu0 0.0
        %4150 = vmatprep.subr.mxu0 0.0
        %4151 = vmatpush1.msra.mxu0 0.0
        %4152 = vmatprep.subr.mxu0 0.0
        %4153 = vmatpush1.msra.mxu0 0.0
        %4154 = vmatprep.subr.mxu0 0.0
        %4155 = vmatpush1.msra.mxu0 0.0
        %4156 = vmatprep.subr.mxu0 0.0
        %4157 = vmatpush1.msra.mxu0 0.0
        %4158 = vmatprep.subr.mxu0 0.0
        %4159 = vmatpush1.msra.mxu0 0.0
        %4160 = vmatprep.subr.mxu0 0.0
        %4161 = vmatpush1.msra.mxu0 0.0
        %4162 = vmatprep.subr.mxu0 0.0
        %4163 = vmatpush1.msra.mxu0 0.0
        %4164 = vmatprep.subr.mxu0 0.0
        %4165 = vmatpush1.msra.mxu0 0.0
        %4166 = vmatprep.subr.mxu0 0.0
        %4167 = vmatpush1.msra.mxu0 0.0
        %4168 = vmatprep.subr.mxu0 0.0
        %4169 = vmatpush1.msra.mxu0 0.0
        %4170 = vmatprep.subr.mxu0 0.0
        %4171 = vmatpush1.msra.mxu0 0.0
        %4172 = vmatprep.subr.mxu0 0.0
        %4173 = vmatpush1.msra.mxu0 0.0
        %4174 = vmatprep.subr.mxu0 0.0
        %4175 = vmatpush1.msra.mxu0 0.0
        %4176 = vmatprep.subr.mxu0 0.0
        %4177 = vmatpush1.msra.mxu0 0.0
        %4178 = vmatprep.subr.mxu0 0.0
        %4179 = vmatpush1.msra.mxu0 0.0
        %4180 = vmatprep.subr.mxu0 0.0
        %4181 = vmatpush1.msra.mxu0 0.0
        %4182 = vmatprep.subr.mxu0 0.0
        %4183 = vmatpush1.msra.mxu0 0.0
        %4184 = vmatprep.subr.mxu0 0.0
        %4185 = vmatpush1.msra.mxu0 0.0
        %4186 = vmatprep.subr.mxu0 0.0
        %4187 = vmatpush1.msra.mxu0 0.0
        %4188 = vmatprep.subr.mxu0 0.0
        %4189 = vmatpush1.msra.mxu0 0.0
        %4190 = vmatprep.subr.mxu0 0.0
        %4191 = vmatpush1.msra.mxu0 0.0
        %4192 = vmatprep.subr.mxu0 0.0
        %4193 = vmatpush1.msra.mxu0 0.0
        %4194 = vmatprep.subr.mxu0 0.0
        %4195 = vmatpush1.msra.mxu0 0.0
        %4196 = vmatprep.subr.mxu0 0.0
        %4197 = vmatpush1.msra.mxu0 0.0
        %4198 = vmatprep.subr.mxu0 0.0
        %4199 = vmatpush1.msra.mxu0 0.0
        %4200 = vmatprep.subr.mxu0 0.0
        %4201 = vmatpush1.msra.mxu0 0.0
        %4202 = vmatprep.subr.mxu0 0.0
        %4203 = vmatpush1.msra.mxu0 0.0
        %4204 = vmatprep.subr.mxu0 0.0
        %4205 = vmatpush1.msra.mxu0 0.0
        %4206 = vmatprep.subr.mxu0 0.0
        %4207 = vmatpush1.msra.mxu0 0.0
        %4208 = vmatprep.subr.mxu0 0.0
        %4209 = vmatpush1.msra.mxu0 0.0
        %4210 = vmatprep.mubr.f32.mxu0 0.0
        %4211 = vmatmul.mubr.f32.gmra.mrb[0].mxu0 %v4141
        %v4212 = vpop.f32.mrb[0].mxu0
        %v4213 = vadd.f32 0.0, %v4212
        %v4214 = vpop.f32.mrb[0].mxu0
        %4215 = vdwg.mxu0
        %v4216 = vsel %vm447, %v3681, 0.0
        %v4217 = vsel %vm447, %v3757, 0.0
        %v4218 = vadd.f32 %v4216, %v4217
        %v4219 = vsel %vm447, %v3833, 0.0
        %v4220 = vadd.f32 %v4218, %v4219
        %v4221 = vsel %vm447, %v3909, 0.0
        %v4222 = vadd.f32 %v4220, %v4221
        %v4223 = vsel %vm447, %v3985, 0.0
        %v4224 = vadd.f32 %v4222, %v4223
        %v4225 = vsel %vm447, %v4061, 0.0
        %v4226 = vadd.f32 %v4224, %v4225
        %v4227 = vsel %vm447, %v4137, 0.0
        %v4228 = vadd.f32 %v4226, %v4227
        %v4229 = vsel %vm447, %v4213, 0.0
        %v4230 = vadd.f32 %v4228, %v4229
        %v4231 = vld [vmem:[%s8] sm:$0x1]
        %v4233 = vlaneseq
        %v4234 = vshrl.u32 %v4233, 7
        %v4235 = vsub.s32 0, %v4234
        %v4236 = vrot.slane %v4231, %v4235
        %v4238 = vadd.f32 %v4230, %v4236
        %4239 = vst.msk [vmem:[%s386] sm:$0xff] %vm447, %v4238
        %s4240 = sand.u32 %s256, 1
        %s4241 = scalar_lea.sflag [#allocation3], %s4240
        %s4242 = sand.u32 %s256, 1
        %s4243 = smul.addr %s4242, 8
        %s4244 = scalar_lea.vmem [#allocation2], %s4243
        // Predicated region
        $region57: #{tpu_custom_call.1} parent=55 // pred_check
          %p4245 = pneg %p266
        $region58: #{tpu_custom_call.1} parent=55 // pred_check_branch
          %4247 = sbr.rel (%p4245) target = $region60
        $region59: #{tpu_custom_call.1} parent=55 // pred_region
          %s4249 = ssub.s32 128, 128
          %4250 = vsyncadd %s4241, %s4249
          %s4251 = sadd.s32 %s28, %s27
          %s4252 = smul.addr %s4251, 128
          %s4253 = scalar_lea.hbm %s9, %s4252
          %s4255 = sshll.u32 %s4244, 4
          %s4256 = int_to_ptr.vmem [resolvable:$true] %s4255
          %4258 = dma.vmem_to_hbm [thread:$0]  %s4256, 128, %s4253, %s4241
        $region60: #{tpu_custom_call.1} parent=55 // pred_fallthru
          _
      $region56: #{tpu_custom_call.1} parent=5 // pred_fallthru
        _
      %p4259 = scmp.le.s32.totalorder 2, %s18
      // Predicated region
      $region61: #{tpu_custom_call.1} parent=5 // pred_check
        %p4260 = pneg %p4259
      $region62: #{tpu_custom_call.1} parent=5 // pred_check_branch
        %4262 = sbr.rel (%p4260) target = $region64
      $region63: #{tpu_custom_call.1} parent=5 // pred_region
        %s4263 = ssub.s32 %s18, 2
        // Predicated region
        $region65: #{tpu_custom_call.1} parent=63 // pred_check
          %p4264 = pneg %p272
        $region66: #{tpu_custom_call.1} parent=63 // pred_check_branch
          %4266 = sbr.rel (%p4264) target = $region68
        $region67: #{tpu_custom_call.1} parent=63 // pred_region
          %s4267 = sand.u32 %s257, 1
          %s4268 = scalar_lea.sflag [#allocation3], %s4267
          %s4269 = sand.u32 %s257, 1
          %s4270 = smul.addr %s4269, 8
          %s4271 = scalar_lea.vmem [#allocation2], %s4270
          %4272 = dma.done %s4268, 128
        $region68: #{tpu_custom_call.1} parent=63 // pred_fallthru
          _
      $region64: #{tpu_custom_call.1} parent=5 // pred_fallthru
        _
    $region6: #{tpu_custom_call.1} parent=1 // loop_footer
      %s22 = sadd.s32 1, %s18
    $region7: #{tpu_custom_call.1} parent=1 // loop_footer_branch
      %17 = sbr.rel target = $region3
    $region8: #{tpu_custom_call.1} parent=1 // loop_exit
      _
    %4273 = vsyncpa [#allocation3], 1
    %s4274 = scalar_lea.sflag [#allocation3], 1
    %4275 = vsyncpa %s4274, 1

</llo_original>
